<compile_context>
chip_gen: v5e
topology: v5e:2x2
jax: 0.10.0
libtpu: 0.0.40
codegen_flags: <defaults>
</compile_context>

<pallas_src>
import functools
import math

import jax
import jax.numpy as jnp
import numpy as np
from jax import lax
from jax.experimental import pallas as pl
from jax.experimental.pallas import tpu as pltpu

LANE = 128
BF16_SUBLANE = 16


def _round_up(x, m):
    return ((x + m - 1) // m) * m


# --------------------------------------------------------------------------
# Pallas kernel: one batch element per grid step.
# --------------------------------------------------------------------------
def _resblock_kernel(xpad_ref, w1_ref, w2_ref, bias_ref, o_ref, pad2_ref,
                     *pool_scratch, H, W, Cinp, Coutp, downsample):
    HW = H * W
    H2, W2 = H // 2, W // 2

    # ---- ReLU once on the whole padded input; 9 conv1 taps sliced from it --
    # relu(0) == 0, so ReLU of the zero-padded input == padding of relu(x).
    xr = jnp.maximum(xpad_ref[0], 0)                                # (H+2, Wp, Cinp) bf16
    taps1 = [xr[dy:dy + H, dx:dx + W, :] for dy in range(3) for dx in range(3)]
    slab1 = jnp.concatenate(taps1, axis=-1).reshape(HW, 9 * Cinp)   # bf16
    h1 = jnp.dot(slab1, w1_ref[...], preferred_element_type=jnp.float32)
    h1 = jnp.maximum(h1 + bias_ref[0:1, :], 0.0)                    # (HW, Coutp) f32

    # ---- stage relu(conv1(.)) into the padded VMEM scratch -----------------
    # Only the 1-pixel halo actually read by the taps is zeroed (interior is
    # always overwritten; columns beyond W+1 are never read).
    zrow = jnp.zeros((1, W + 2, Coutp), pad2_ref.dtype)
    zcol = jnp.zeros((H + 2, 1, Coutp), pad2_ref.dtype)
    pad2_ref[0:1, 0:W + 2, :] = zrow
    pad2_ref[H + 1:H + 2, 0:W + 2, :] = zrow
    pad2_ref[:, 0:1, :] = zcol
    pad2_ref[:, W + 1:W + 2, :] = zcol
    pad2_ref[1:H + 1, 1:W + 1, :] = h1.reshape(H, W, Coutp).astype(pad2_ref.dtype)

    # ---- conv2 (and, if downsampling, the fused 1x1 bypass) -----------------
    taps2 = [pad2_ref[dy:dy + H, dx:dx + W, :]
             for dy in range(3) for dx in range(3)]
    slab2 = jnp.concatenate(taps2, axis=-1).reshape(HW, 9 * Coutp)  # bf16

    if downsample:
        pool_ref, = pool_scratch
        # Fused conv2 + 1x1 bypass: [slab2 | x] @ [w2 ; wb], one bias row.
        xin = xpad_ref[0, 1:H + 1, 1:W + 1, :].reshape(HW, Cinp)    # raw x, bf16
        slab_full = jnp.concatenate([slab2, xin], axis=-1)          # (HW, 9*Coutp+Cinp)
        h2 = jnp.dot(slab_full, w2_ref[...], preferred_element_type=jnp.float32)
        h2 = h2 + bias_ref[1:2, :]                                  # (HW, Coutp) f32

        # AvgPool2d(2) on the VPU: pair-sum rows via a free leading-dim split,
        # pair-sum columns via documented strided sublane reads from a small
        # VMEM scratch, then scale by 1/4.  (Single pool pass thanks to fusion.)
        v4 = h2.reshape(H2, 2, W, Coutp)
        pool_ref[...] = (v4[:, 0] + v4[:, 1]).reshape(H2 * W, Coutp)
        pooled = (pool_ref[pl.ds(0, H2 * W2, stride=2), :]
                  + pool_ref[pl.ds(1, H2 * W2, stride=2), :])       # (H2*W2, Coutp)
        o_ref[...] = (0.25 * pooled).reshape(1, H2 * W2, Coutp)
    else:
        # stride == 1: plain conv2, identity bypass (requires Cin == Cout).
        h2 = jnp.dot(slab2, w2_ref[...], preferred_element_type=jnp.float32)
        h2 = h2 + bias_ref[1:2, :]
        xin = xpad_ref[0, 1:H + 1, 1:W + 1, :].astype(jnp.float32).reshape(HW, Cinp)
        o_ref[...] = (h2 + xin).reshape(1, HW, Coutp)


# --------------------------------------------------------------------------
# VMEM budget for CompilerParams (per-step working set with headroom).
# --------------------------------------------------------------------------
def _vmem_limit_bytes(H, W, Wp, Cinp, Coutp, HoWo, downsample):
    bf2, f4 = 2, 4
    HW = H * W
    kextra = Cinp if downsample else 0
    xpad_blk = (H + 2) * Wp * Cinp * bf2
    w1 = 9 * Cinp * Coutp * bf2
    w2 = (9 * Coutp + kextra) * Coutp * bf2
    bias = 2 * Coutp * f4
    out_blk = HoWo * Coutp * f4
    pad2 = (H + 2) * Wp * Coutp * bf2
    pool = (H // 2) * W * Coutp * f4 if downsample else 0
    slabs = HW * 9 * Cinp * bf2 + HW * (9 * Coutp + kextra) * bf2
    interm = slabs + 3 * HW * Coutp * f4 + xpad_blk       # h1, h2, relu'd input
    working = 2 * (xpad_blk + w1 + w2 + bias + out_blk) + pad2 + pool + interm
    return int(min(max(2 * working + (8 << 20), 32 << 20), 128 << 20))


# --------------------------------------------------------------------------
# Wrapper: layout plumbing (NCHW<->NHWC, channel padding to 128 lanes,
# sublane-aligned padded width, weight repacking, bf16 casts, bias folding).
# --------------------------------------------------------------------------
def res_block_discriminator(x_nchw, w1, b1, w2, b2, wb=None, bb=None, *, stride=1):
    """x_nchw: (B, Cin, H, W) f32; weights in PyTorch OIHW layout; returns NCHW."""
    B, Cin, H, W = x_nchw.shape
    Cout = w1.shape[0]
    downsample = stride != 1
    if downsample:
        assert H % 2 == 0 and W % 2 == 0, "AvgPool2d(2) needs even H, W"
        assert wb is not None and bb is not None
    else:
        assert Cin == Cout, "identity bypass requires in_channels == out_channels"

    Cinp = _round_up(Cin, LANE)
    Coutp = _round_up(Cout, LANE)
    Ho, Wo = (H // 2, W // 2) if downsample else (H, W)
    Wp = _round_up(W + 2, BF16_SUBLANE)      # sublane-aligned padded width (bf16)

    # NCHW -> NHWC (channels -> lanes); zero-pad: 1-pixel halo (+ extra width
    # columns up to Wp) and channels up to 128 lanes; cast MXU operand to bf16.
    x_nhwc = jnp.transpose(x_nchw, (0, 2, 3, 1))
    xpad = jnp.pad(x_nhwc, ((0, 0), (1, 1), (1, Wp - W - 1), (0, Cinp - Cin)))
    xpad = xpad.astype(jnp.bfloat16)

    def pack_w3x3(w, cin, cinp):
        # OIHW -> (kh, kw, Cin, Cout) -> zero-pad channels -> (9*Cin_p, Cout_p)
        wt = jnp.transpose(w, (2, 3, 1, 0))
        wt = jnp.pad(wt, ((0, 0), (0, 0), (0, cinp - cin), (0, Coutp - Cout)))
        return wt.reshape(9 * cinp, Coutp).astype(jnp.bfloat16)

    def pad_bias(b):
        return jnp.pad(b.astype(jnp.float32), (0, Coutp - Cout))

    w1k = pack_w3x3(w1, Cin, Cinp)
    w2k = pack_w3x3(w2, Cout, Coutp)

    if downsample:
        wbk = jnp.pad(jnp.transpose(wb[:, :, 0, 0], (1, 0)),
                      ((0, Cinp - Cin), (0, Coutp - Cout))).astype(jnp.bfloat16)
        # Fuse conv2 + bypass along K; fold (b2 + bb) into one bias row.
        w2_arg = jnp.concatenate([w2k, wbk], axis=0)        # (9*Coutp + Cinp, Coutp)
        bias = jnp.stack([pad_bias(b1), pad_bias(b2) + pad_bias(bb)])
    else:
        w2_arg = w2k                                        # (9*Coutp, Coutp)
        bias = jnp.stack([pad_bias(b1), pad_bias(b2)])

    kernel = functools.partial(_resblock_kernel, H=H, W=W, Cinp=Cinp,
                               Coutp=Coutp, downsample=downsample)

    def const2d(shape):
        return pl.BlockSpec(shape, lambda b: (0, 0))

    in_specs = [
        pl.BlockSpec((1, H + 2, Wp, Cinp), lambda b: (b, 0, 0, 0)),
        const2d(w1k.shape),
        const2d(w2_arg.shape),
        const2d(bias.shape),
    ]
    args = [xpad, w1k, w2_arg, bias]

    scratch = [pltpu.VMEM((H + 2, Wp, Coutp), jnp.bfloat16)]
    if downsample:
        scratch.append(pltpu.VMEM(((H // 2) * W, Coutp), jnp.float32))

    out_flat = pl.pallas_call(
        kernel,
        out_shape=jax.ShapeDtypeStruct((B, Ho * Wo, Coutp), jnp.float32),
        grid_spec=pltpu.PrefetchScalarGridSpec(
            num_scalar_prefetch=0,
            grid=(B,),
            in_specs=in_specs,
            out_specs=pl.BlockSpec((1, Ho * Wo, Coutp), lambda b: (b, 0, 0)),
            scratch_shapes=scratch,
        ),
        compiler_params=pltpu.CompilerParams(
            dimension_semantics=("parallel",),
            vmem_limit_bytes=_vmem_limit_bytes(H, W, Wp, Cinp, Coutp,
                                               Ho * Wo, downsample)),
    )(*args)

    out = out_flat.reshape(B, Ho, Wo, Coutp)[..., :Cout]
    return jnp.transpose(out, (0, 3, 1, 2))                 # back to NCHW


# --------------------------------------------------------------------------
# Deterministic parameter initialization (mirrors the module's __init__)
# --------------------------------------------------------------------------
def xavier_uniform(key, shape, gain):
    # shape = (Cout, Cin, kh, kw), PyTorch OIHW
    fan_in = shape[1] * shape[2] * shape[3]
    fan_out = shape[0] * shape[2] * shape[3]
    bound = gain * math.sqrt(6.0 / (fan_in + fan_out))
    return jax.random.uniform(key, shape, jnp.float32, -bound, bound)


def conv_bias(key, w_shape):
    fan_in = w_shape[1] * w_shape[2] * w_shape[3]
    bound = 1.0 / math.sqrt(fan_in)
    return jax.random.uniform(key, (w_shape[0],), jnp.float32, -bound, bound)


def spectral_normalize(w, key, n_iter=1, eps=1e-12):
    # TODO(synk): PyTorch SpectralNorm keeps a persistent power-iteration
    # u-vector; approximated here with a deterministic 1-step power iteration.
    cout = w.shape[0]
    wmat = w.reshape(cout, -1)
    u = jax.random.normal(key, (cout,), jnp.float32)
    u = u / (jnp.linalg.norm(u) + eps)
    v = wmat.T @ u
    for _ in range(n_iter):
        v = wmat.T @ u
        v = v / (jnp.linalg.norm(v) + eps)
        u = wmat @ v
        u = u / (jnp.linalg.norm(u) + eps)
    sigma = u @ (wmat @ v)
    return w / sigma


# --------------------------------------------------------------------------
# Pure-JAX reference (for correctness check only)
# --------------------------------------------------------------------------
def _avgpool2_nchw(x):
    B, C, H, W = x.shape
    return x.reshape(B, C, H // 2, 2, W // 2, 2).mean(axis=(3, 5))


def ref_forward(x, w1, b1, w2, b2, wb=None, bb=None, *, stride=1):
    dn = ('NCHW', 'OIHW', 'NCHW')
    y = jnp.maximum(x, 0.0)
    y = lax.conv_general_dilated(y, w1, (1, 1), ((1, 1), (1, 1)),
                                 dimension_numbers=dn) + b1[None, :, None, None]
    y = jnp.maximum(y, 0.0)
    y = lax.conv_general_dilated(y, w2, (1, 1), ((1, 1), (1, 1)),
                                 dimension_numbers=dn) + b2[None, :, None, None]
    if stride != 1:
        y = _avgpool2_nchw(y)
        bp = lax.conv_general_dilated(x, wb, (1, 1), ((0, 0), (0, 0)),
                                      dimension_numbers=dn) + bb[None, :, None, None]
        bp = _avgpool2_nchw(bp)
    else:
        bp = x
    return y + bp


if __name__ == "__main__":
    key = jax.random.PRNGKey(0)
    keys = jax.random.split(key, 20)

    # ---- stride=2 (downsampling) block: (B, Cin, H, W) = (2, 4, 16, 16) ----
    B, Cin, Cout, H, W = 2, 4, 8, 16, 16
    x = jax.random.normal(keys[0], (B, Cin, H, W), jnp.float32)
    w1 = spectral_normalize(xavier_uniform(keys[1], (Cout, Cin, 3, 3), 1.0), keys[7])
    w2 = spectral_normalize(xavier_uniform(keys[2], (Cout, Cout, 3, 3), 1.0), keys[8])
    wb = spectral_normalize(xavier_uniform(keys[3], (Cout, Cin, 1, 1),
                                           math.sqrt(2.0)), keys[9])
    b1 = conv_bias(keys[4], (Cout, Cin, 3, 3))
    b2 = conv_bias(keys[5], (Cout, Cout, 3, 3))
    bb = conv_bias(keys[6], (Cout, Cin, 1, 1))

    out = res_block_discriminator(x, w1, b1, w2, b2, wb, bb, stride=2)
    out = jax.block_until_ready(out)
    assert out.shape == (B, Cout, H // 2, W // 2)
    ref = ref_forward(x, w1, b1, w2, b2, wb, bb, stride=2)
    # MXU operands are bf16 (f32 accumulation) -> relaxed tolerance.
    np.testing.assert_allclose(np.asarray(out), np.asarray(ref),
                               rtol=3e-2, atol=3e-2)

    # ---- stride=1 block (identity bypass): (2, 8, 16, 16) -> (2, 8, 16, 16) --
    C1 = 8
    x1 = jax.random.normal(keys[10], (B, C1, H, W), jnp.float32)
    v1 = spectral_normalize(xavier_uniform(keys[11], (C1, C1, 3, 3), 1.0), keys[15])
    v2 = spectral_normalize(xavier_uniform(keys[12], (C1, C1, 3, 3), 1.0), keys[16])
    c1 = conv_bias(keys[13], (C1, C1, 3, 3))
    c2 = conv_bias(keys[14], (C1, C1, 3, 3))

    out1 = res_block_discriminator(x1, v1, c1, v2, c2, stride=1)
    out1 = jax.block_until_ready(out1)
    assert out1.shape == (B, C1, H, W)
    ref1 = ref_forward(x1, v1, c1, v2, c2, stride=1)
    np.testing.assert_allclose(np.asarray(out1), np.asarray(ref1),
                               rtol=3e-2, atol=3e-2)

    print("KERNEL_OK")
</pallas_src>

<mosaic_0001>
module attributes {stable_mosaic.version = 11 : i64} {
  func.func @_resblock_kernel(%arg0: i32, %arg1: memref<1x18x32x128xbf16, #tpu.memory_space<vmem>>, %arg2: memref<1152x128xbf16, #tpu.memory_space<vmem>>, %arg3: memref<1280x128xbf16, #tpu.memory_space<vmem>>, %arg4: memref<2x128xf32, #tpu.memory_space<vmem>>, %arg5: memref<1x64x128xf32, #tpu.memory_space<vmem>>, %arg6: memref<18x32x128xbf16, #tpu.memory_space<vmem>>, %arg7: memref<128x128xf32, #tpu.memory_space<vmem>>) attributes {dimension_semantics = [#tpu.dimension_semantics<parallel>], iteration_bounds = array<i64: 2>, scalar_prefetch = 0 : i64, scratch_operands = 2 : i64, tpu.core_type = #tpu.core_type<tc>, window_params = [{transform_indices = @transform_0, window_bounds = array<i64: 1, 18, 32, 128>}, {pipeline_mode = #tpu.pipeline_mode<synchronous>, transform_indices = @transform_1, window_bounds = array<i64: 1152, 128>}, {pipeline_mode = #tpu.pipeline_mode<synchronous>, transform_indices = @transform_2, window_bounds = array<i64: 1280, 128>}, {pipeline_mode = #tpu.pipeline_mode<synchronous>, transform_indices = @transform_3, window_bounds = array<i64: 2, 128>}, {transform_indices = @transform_4, window_bounds = array<i64: 1, 64, 128>}]} {
    %c0 = arith.constant 0 : index
    %c0_0 = arith.constant 0 : index
    %c0_1 = arith.constant 0 : index
    %c0_2 = arith.constant 0 : index
    %0 = vector.load %arg1[%c0, %c0_0, %c0_1, %c0_2] : memref<1x18x32x128xbf16, #tpu.memory_space<vmem>>, vector<1x18x32x128xbf16>
    %1 = vector.shape_cast %0 : vector<1x18x32x128xbf16> to vector<18x32x128xbf16>
    %cst = arith.constant 0.000000e+00 : bf16
    %2 = vector.broadcast %cst : bf16 to vector<18x32x128xbf16>
    %3 = arith.maximumf %1, %2 : vector<18x32x128xbf16>
    %4 = vector.extract_strided_slice %3 {offsets = [0, 0, 0], sizes = [16, 16, 128], strides = [1, 1, 1]} : vector<18x32x128xbf16> to vector<16x16x128xbf16>
    %5 = vector.extract_strided_slice %3 {offsets = [0, 1, 0], sizes = [16, 16, 128], strides = [1, 1, 1]} : vector<18x32x128xbf16> to vector<16x16x128xbf16>
    %6 = vector.extract_strided_slice %3 {offsets = [0, 2, 0], sizes = [16, 16, 128], strides = [1, 1, 1]} : vector<18x32x128xbf16> to vector<16x16x128xbf16>
    %7 = vector.extract_strided_slice %3 {offsets = [1, 0, 0], sizes = [16, 16, 128], strides = [1, 1, 1]} : vector<18x32x128xbf16> to vector<16x16x128xbf16>
    %8 = vector.extract_strided_slice %3 {offsets = [1, 1, 0], sizes = [16, 16, 128], strides = [1, 1, 1]} : vector<18x32x128xbf16> to vector<16x16x128xbf16>
    %9 = vector.extract_strided_slice %3 {offsets = [1, 2, 0], sizes = [16, 16, 128], strides = [1, 1, 1]} : vector<18x32x128xbf16> to vector<16x16x128xbf16>
    %10 = vector.extract_strided_slice %3 {offsets = [2, 0, 0], sizes = [16, 16, 128], strides = [1, 1, 1]} : vector<18x32x128xbf16> to vector<16x16x128xbf16>
    %11 = vector.extract_strided_slice %3 {offsets = [2, 1, 0], sizes = [16, 16, 128], strides = [1, 1, 1]} : vector<18x32x128xbf16> to vector<16x16x128xbf16>
    %12 = vector.extract_strided_slice %3 {offsets = [2, 2, 0], sizes = [16, 16, 128], strides = [1, 1, 1]} : vector<18x32x128xbf16> to vector<16x16x128xbf16>
    %13 = tpu.concatenate %4, %5, %6, %7, %8, %9, %10, %11, %12 in 2 : vector<16x16x128xbf16>, vector<16x16x128xbf16>, vector<16x16x128xbf16>, vector<16x16x128xbf16>, vector<16x16x128xbf16>, vector<16x16x128xbf16>, vector<16x16x128xbf16>, vector<16x16x128xbf16>, vector<16x16x128xbf16> -> vector<16x16x1152xbf16>
    %14 = vector.shape_cast %13 : vector<16x16x1152xbf16> to vector<256x1152xbf16>
    %c0_3 = arith.constant 0 : index
    %c0_4 = arith.constant 0 : index
    %15 = vector.load %arg2[%c0_3, %c0_4] : memref<1152x128xbf16, #tpu.memory_space<vmem>>, vector<1152x128xbf16>
    %cst_5 = arith.constant dense<0.000000e+00> : vector<256x128xf32>
    %16 = tpu.matmul %14, %15, %cst_5 {dimension_numbers = #tpu.dot_dimension_numbers<[1], [0], [0], [1], [0, 0, 1, 1], [], []>} : vector<256x1152xbf16>, vector<1152x128xbf16>, vector<256x128xf32> -> vector<256x128xf32>
    %c0_6 = arith.constant 0 : index
    %c0_7 = arith.constant 0 : index
    %17 = vector.load %arg4[%c0_6, %c0_7] : memref<2x128xf32, #tpu.memory_space<vmem>>, vector<1x128xf32>
    %18 = vector.broadcast %17 : vector<1x128xf32> to vector<256x128xf32>
    %19 = arith.addf %16, %18 : vector<256x128xf32>
    %cst_8 = arith.constant 0.000000e+00 : f32
    %20 = vector.broadcast %cst_8 : f32 to vector<256x128xf32>
    %21 = arith.maximumf %19, %20 : vector<256x128xf32>
    %cst_9 = arith.constant 0.000000e+00 : bf16
    %22 = vector.broadcast %cst_9 : bf16 to vector<1x18x128xbf16>
    %cst_10 = arith.constant 0.000000e+00 : bf16
    %23 = vector.broadcast %cst_10 : bf16 to vector<18x1x128xbf16>
    %c0_11 = arith.constant 0 : index
    %c0_12 = arith.constant 0 : index
    %c0_13 = arith.constant 0 : index
    %24 = vector.load %arg6[%c0_11, %c0_12, %c0_13] : memref<18x32x128xbf16, #tpu.memory_space<vmem>>, vector<1x18x128xbf16>
    tpu.vector_store %arg6[%c0_11, %c0_12, %c0_13], %22 {strides = array<i32>} : memref<18x32x128xbf16, #tpu.memory_space<vmem>>, vector<1x18x128xbf16>,
    %c17 = arith.constant 17 : index
    %c0_14 = arith.constant 0 : index
    %c0_15 = arith.constant 0 : index
    %25 = vector.load %arg6[%c17, %c0_14, %c0_15] : memref<18x32x128xbf16, #tpu.memory_space<vmem>>, vector<1x18x128xbf16>
    tpu.vector_store %arg6[%c17, %c0_14, %c0_15], %22 {strides = array<i32>} : memref<18x32x128xbf16, #tpu.memory_space<vmem>>, vector<1x18x128xbf16>,
    %c0_16 = arith.constant 0 : index
    %c0_17 = arith.constant 0 : index
    %c0_18 = arith.constant 0 : index
    %26 = vector.load %arg6[%c0_16, %c0_17, %c0_18] : memref<18x32x128xbf16, #tpu.memory_space<vmem>>, vector<18x1x128xbf16>
    tpu.vector_store %arg6[%c0_16, %c0_17, %c0_18], %23 {strides = array<i32>} : memref<18x32x128xbf16, #tpu.memory_space<vmem>>, vector<18x1x128xbf16>,
    %c0_19 = arith.constant 0 : index
    %c17_20 = arith.constant 17 : index
    %c0_21 = arith.constant 0 : index
    %27 = vector.load %arg6[%c0_19, %c17_20, %c0_21] : memref<18x32x128xbf16, #tpu.memory_space<vmem>>, vector<18x1x128xbf16>
    tpu.vector_store %arg6[%c0_19, %c17_20, %c0_21], %23 {strides = array<i32>} : memref<18x32x128xbf16, #tpu.memory_space<vmem>>, vector<18x1x128xbf16>,
    %28 = vector.shape_cast %21 : vector<256x128xf32> to vector<16x16x128xf32>
    %29 = arith.truncf %28 : vector<16x16x128xf32> to vector<16x16x128xbf16>
    %c1 = arith.constant 1 : index
    %c1_22 = arith.constant 1 : index
    %c0_23 = arith.constant 0 : index
    %30 = vector.load %arg6[%c1, %c1_22, %c0_23] : memref<18x32x128xbf16, #tpu.memory_space<vmem>>, vector<16x16x128xbf16>
    tpu.vector_store %arg6[%c1, %c1_22, %c0_23], %29 {strides = array<i32>} : memref<18x32x128xbf16, #tpu.memory_space<vmem>>, vector<16x16x128xbf16>,
    %c0_24 = arith.constant 0 : index
    %c0_25 = arith.constant 0 : index
    %c0_26 = arith.constant 0 : index
    %31 = vector.load %arg6[%c0_24, %c0_25, %c0_26] : memref<18x32x128xbf16, #tpu.memory_space<vmem>>, vector<16x16x128xbf16>
    %c0_27 = arith.constant 0 : index
    %c1_28 = arith.constant 1 : index
    %c0_29 = arith.constant 0 : index
    %32 = vector.load %arg6[%c0_27, %c1_28, %c0_29] : memref<18x32x128xbf16, #tpu.memory_space<vmem>>, vector<16x16x128xbf16>
    %c0_30 = arith.constant 0 : index
    %c2 = arith.constant 2 : index
    %c0_31 = arith.constant 0 : index
    %33 = vector.load %arg6[%c0_30, %c2, %c0_31] : memref<18x32x128xbf16, #tpu.memory_space<vmem>>, vector<16x16x128xbf16>
    %c1_32 = arith.constant 1 : index
    %c0_33 = arith.constant 0 : index
    %c0_34 = arith.constant 0 : index
    %34 = vector.load %arg6[%c1_32, %c0_33, %c0_34] : memref<18x32x128xbf16, #tpu.memory_space<vmem>>, vector<16x16x128xbf16>
    %c1_35 = arith.constant 1 : index
    %c1_36 = arith.constant 1 : index
    %c0_37 = arith.constant 0 : index
    %35 = vector.load %arg6[%c1_35, %c1_36, %c0_37] : memref<18x32x128xbf16, #tpu.memory_space<vmem>>, vector<16x16x128xbf16>
    %c1_38 = arith.constant 1 : index
    %c2_39 = arith.constant 2 : index
    %c0_40 = arith.constant 0 : index
    %36 = vector.load %arg6[%c1_38, %c2_39, %c0_40] : memref<18x32x128xbf16, #tpu.memory_space<vmem>>, vector<16x16x128xbf16>
    %c2_41 = arith.constant 2 : index
    %c0_42 = arith.constant 0 : index
    %c0_43 = arith.constant 0 : index
    %37 = vector.load %arg6[%c2_41, %c0_42, %c0_43] : memref<18x32x128xbf16, #tpu.memory_space<vmem>>, vector<16x16x128xbf16>
    %c2_44 = arith.constant 2 : index
    %c1_45 = arith.constant 1 : index
    %c0_46 = arith.constant 0 : index
    %38 = vector.load %arg6[%c2_44, %c1_45, %c0_46] : memref<18x32x128xbf16, #tpu.memory_space<vmem>>, vector<16x16x128xbf16>
    %c2_47 = arith.constant 2 : index
    %c2_48 = arith.constant 2 : index
    %c0_49 = arith.constant 0 : index
    %39 = vector.load %arg6[%c2_47, %c2_48, %c0_49] : memref<18x32x128xbf16, #tpu.memory_space<vmem>>, vector<16x16x128xbf16>
    %40 = tpu.concatenate %31, %32, %33, %34, %35, %36, %37, %38, %39 in 2 : vector<16x16x128xbf16>, vector<16x16x128xbf16>, vector<16x16x128xbf16>, vector<16x16x128xbf16>, vector<16x16x128xbf16>, vector<16x16x128xbf16>, vector<16x16x128xbf16>, vector<16x16x128xbf16>, vector<16x16x128xbf16> -> vector<16x16x1152xbf16>
    %41 = vector.shape_cast %40 : vector<16x16x1152xbf16> to vector<256x1152xbf16>
    %c0_50 = arith.constant 0 : index
    %c1_51 = arith.constant 1 : index
    %c1_52 = arith.constant 1 : index
    %c0_53 = arith.constant 0 : index
    %42 = vector.load %arg1[%c0_50, %c1_51, %c1_52, %c0_53] : memref<1x18x32x128xbf16, #tpu.memory_space<vmem>>, vector<1x16x16x128xbf16>
    %43 = vector.shape_cast %42 : vector<1x16x16x128xbf16> to vector<16x16x128xbf16>
    %44 = vector.shape_cast %43 : vector<16x16x128xbf16> to vector<256x128xbf16>
    %45 = tpu.concatenate %41, %44 in 1 : vector<256x1152xbf16>, vector<256x128xbf16> -> vector<256x1280xbf16>
    %c0_54 = arith.constant 0 : index
    %c0_55 = arith.constant 0 : index
    %46 = vector.load %arg3[%c0_54, %c0_55] : memref<1280x128xbf16, #tpu.memory_space<vmem>>, vector<1280x128xbf16>
    %cst_56 = arith.constant dense<0.000000e+00> : vector<256x128xf32>
    %47 = tpu.matmul %45, %46, %cst_56 {dimension_numbers = #tpu.dot_dimension_numbers<[1], [0], [0], [1], [0, 0, 1, 1], [], []>} : vector<256x1280xbf16>, vector<1280x128xbf16>, vector<256x128xf32> -> vector<256x128xf32>
    %c1_57 = arith.constant 1 : index
    %c0_58 = arith.constant 0 : index
    %48 = vector.load %arg4[%c1_57, %c0_58] : memref<2x128xf32, #tpu.memory_space<vmem>>, vector<1x128xf32>
    %49 = vector.broadcast %48 : vector<1x128xf32> to vector<256x128xf32>
    %50 = arith.addf %47, %49 : vector<256x128xf32>
    %51 = vector.shape_cast %50 : vector<256x128xf32> to vector<8x2x16x128xf32>
    %52 = vector.extract_strided_slice %51 {offsets = [0, 0, 0, 0], sizes = [8, 1, 16, 128], strides = [1, 1, 1, 1]} : vector<8x2x16x128xf32> to vector<8x1x16x128xf32>
    %53 = vector.shape_cast %52 : vector<8x1x16x128xf32> to vector<8x16x128xf32>
    %54 = vector.extract_strided_slice %51 {offsets = [0, 1, 0, 0], sizes = [8, 1, 16, 128], strides = [1, 1, 1, 1]} : vector<8x2x16x128xf32> to vector<8x1x16x128xf32>
    %55 = vector.shape_cast %54 : vector<8x1x16x128xf32> to vector<8x16x128xf32>
    %56 = arith.addf %53, %55 : vector<8x16x128xf32>
    %57 = vector.shape_cast %56 : vector<8x16x128xf32> to vector<128x128xf32>
    %c0_59 = arith.constant 0 : index
    %c0_60 = arith.constant 0 : index
    %58 = vector.load %arg7[%c0_59, %c0_60] : memref<128x128xf32, #tpu.memory_space<vmem>>, vector<128x128xf32>
    tpu.vector_store %arg7[%c0_59, %c0_60], %57 {strides = array<i32>} : memref<128x128xf32, #tpu.memory_space<vmem>>, vector<128x128xf32>,
    %c0_61 = arith.constant 0 : index
    %c0_62 = arith.constant 0 : index
    %59 = tpu.strided_load %arg7[%c0_61, %c0_62] {strides = array<i32: 2, 1>} : memref<128x128xf32, #tpu.memory_space<vmem>>, vector<64x128xf32>
    %c1_63 = arith.constant 1 : index
    %c0_64 = arith.constant 0 : index
    %60 = tpu.strided_load %arg7[%c1_63, %c0_64] {strides = array<i32: 2, 1>} : memref<128x128xf32, #tpu.memory_space<vmem>>, vector<64x128xf32>
    %61 = arith.addf %59, %60 : vector<64x128xf32>
    %cst_65 = arith.constant 2.500000e-01 : f32
    %62 = vector.broadcast %cst_65 : f32 to vector<64x128xf32>
    %63 = arith.mulf %62, %61 : vector<64x128xf32>
    %64 = vector.shape_cast %63 : vector<64x128xf32> to vector<1x64x128xf32>
    %c0_66 = arith.constant 0 : index
    %c0_67 = arith.constant 0 : index
    %c0_68 = arith.constant 0 : index
    %65 = vector.load %arg5[%c0_66, %c0_67, %c0_68] : memref<1x64x128xf32, #tpu.memory_space<vmem>>, vector<1x64x128xf32>
    tpu.vector_store %arg5[%c0_66, %c0_67, %c0_68], %64 {strides = array<i32>} : memref<1x64x128xf32, #tpu.memory_space<vmem>>, vector<1x64x128xf32>,
    return
  }
  func.func @transform_0(%arg0: i32) -> (i32, i32, i32, i32) {
    %c0_i32 = arith.constant 0 : i32
    %c0_i32_0 = arith.constant 0 : i32
    %c0_i32_1 = arith.constant 0 : i32
    %c0_i32_2 = arith.constant 0 : i32
    return %arg0, %c0_i32, %c0_i32_0, %c0_i32_1 : i32, i32, i32, i32
  }
  func.func @transform_1(%arg0: i32) -> (i32, i32) {
    %c0_i32 = arith.constant 0 : i32
    %c0_i32_0 = arith.constant 0 : i32
    %c0_i32_1 = arith.constant 0 : i32
    return %c0_i32, %c0_i32_0 : i32, i32
  }
  func.func @transform_2(%arg0: i32) -> (i32, i32) {
    %c0_i32 = arith.constant 0 : i32
    %c0_i32_0 = arith.constant 0 : i32
    %c0_i32_1 = arith.constant 0 : i32
    return %c0_i32, %c0_i32_0 : i32, i32
  }
  func.func @transform_3(%arg0: i32) -> (i32, i32) {
    %c0_i32 = arith.constant 0 : i32
    %c0_i32_0 = arith.constant 0 : i32
    %c0_i32_1 = arith.constant 0 : i32
    return %c0_i32, %c0_i32_0 : i32, i32
  }
  func.func @transform_4(%arg0: i32) -> (i32, i32, i32) {
    %c0_i32 = arith.constant 0 : i32
    %c0_i32_0 = arith.constant 0 : i32
    %c0_i32_1 = arith.constant 0 : i32
    return %arg0, %c0_i32, %c0_i32_0 : i32, i32, i32
  }
}

</mosaic_0001>

<llo_original>
// kernel: tpu_custom_call.1
$region0: #{tpu_custom_call.1}
  #allocation0 [shape = 'u32[]', space=smem, size = 0x4, offset = 0x4, fixed_abs, tag = 'smem constant byte address 0x4 - core index']
  #allocation1 [shape = 'u32[72,128]{1,0:T(1,128)}', space=vmem, size = 0x9000, scoped, tag = 'internal scratch']
  #allocation2 [shape = 'bf16[18,32,128]{2,1,0:T(8,128)(2,1)}', space=vmem, size = 0x24000, scoped, tag = 'scratch operand']
  #allocation3 [shape = 'f32[128,128]{1,0:T(8,128)}', space=vmem, size = 0x10000, scoped, tag = 'scratch operand']
  %s0 = inlined_call_operand.hbm [shape: bf16[2,18,32,128], index: 0, kind: input, shape index: {}]
  %s1 = inlined_call_operand.hbm [shape: bf16[1152,128], index: 1, kind: input, shape index: {}]
  %s2 = inlined_call_operand.hbm [shape: bf16[1280,128], index: 2, kind: input, shape index: {}]
  %s3 = inlined_call_operand.vmem [shape: f32[2,128], index: 3, kind: input, shape index: {}]
  %s4 = inlined_call_operand.hbm [shape: f32[2,64,128], index: 4, kind: output, shape index: {}]
  %s5 = sld [smem:[#allocation0]]
  $region61: #{tpu_custom_call.1} parent=0
    _
  %s7 = ssub.s32 1, %s5
  %s8 = scalar_select 0, %s7, %s5
  $region1: #{tpu_custom_call.1} parent=0
    #allocation4 [shape = 'u8[294912]{0}', space=vmem, size = 0x48000, scoped, tag = 'input window, operand 0']
    #allocation5 [shape = 's32[2]{0}', space=sflag, size = 0x8, scoped, tag = 'scoped memory for tpu_custom_call.1']
    #allocation6 [shape = 's32[2]{0}', space=sflag, size = 0x8, scoped, tag = 'scoped memory for tpu_custom_call.1']
    #allocation7 [shape = 'u8[294912]{0}', space=vmem, size = 0x48000, scoped, tag = 'input window, operand 1, single buffered']
    #allocation8 [shape = 's32[1]{0}', space=sflag, size = 0x4, scoped, tag = 'scoped memory for tpu_custom_call.1']
    #allocation9 [shape = 'u8[327680]{0}', space=vmem, size = 0x50000, scoped, tag = 'input window, operand 2, single buffered']
    #allocation10 [shape = 'u8[65536]{0}', space=vmem, size = 0x10000, scoped, tag = 'output window, operand 0']
    %9 = vsyncpa [#allocation5], 0
    %s10 = scalar_lea.sflag [#allocation5], 1
    %11 = vsyncpa %s10, 0
    %12 = vsyncpa [#allocation8], 0
    %13 = vsyncpa [#allocation6], 0
    %s14 = scalar_lea.sflag [#allocation6], 1
    %15 = vsyncpa %s14, 0
    loop: start=0, step=1, limit=4
    $region2: #{tpu_custom_call.1} parent=1 // loop_pre_header
      _
    $region3: #{tpu_custom_call.1} parent=1 // loop_header
      %s17 = sphi 0, %s21
      %p18 = scmp.ge.s32.totalorder %s17, 4
      %s27 = sphi 0, %s29
      %s30 = sphi 0, %s27
      %s31 = sphi 0, %s30
      %s47 = sphi 0, %s31
      %s51 = sphi 0, %s51
      %s53 = sphi 0, %s51
      %s54 = sphi 0, %s53
      %s68 = sphi 0, %s54
      %s72 = sphi 0, %s72
      %s74 = sphi 0, %s72
      %s75 = sphi 0, %s74
      %s89 = sphi 0, %s75
      %s93 = sphi 0, %s93
      %s95 = sphi 0, %s93
      %s96 = sphi 0, %s95
      %s110 = sphi 0, %s96
      %s116 = sphi 0, %s118
      %s119 = sphi 0, %s116
      %s120 = sphi 0, %s119
      %s136 = sphi 0, %s120
    $region4: #{tpu_custom_call.1} parent=1 // loop_header_branch
      %20 = sbr.rel (%p18) target = $region8
    $region5: #{tpu_custom_call.1} parent=1 // loop_body
      %s22 = ssub.s32 %s17, 1
      %s23 = ssub.s32 %s17, 2
      %s24 = sadd.s32 %s17, 1
      %s25 = ssub.s32 %s17, %s24
      %p26 = scmp.eq.s32.totalorder %s25, 0
      %s28 = sadd.s32 %s27, 1
      %s29 = scalar_select %p26, %s27, %s28
      %p32 = pneg %p26
      %p33 = scmp.eq.s32.totalorder %s17, 1
      %p34 = por %p32, %p33
      %p35 = scmp.ne.s32.totalorder %s27, %s30
      %p36 = scmp.eq.s32.totalorder %s17, 0
      %p37 = por %p35, %p36
      %p38 = scmp.ne.s32.totalorder %s27, %s30
      %p39 = scmp.eq.s32.totalorder %s22, 1
      %p40 = por %p38, %p39
      %p41 = scmp.ne.s32.totalorder %s30, %s31
      %p42 = scmp.eq.s32.totalorder %s22, 0
      %p43 = por %p41, %p42
      %p44 = scmp.ne.s32.totalorder %s30, %s31
      %p45 = scmp.eq.s32.totalorder %s23, 1
      %p46 = por %p44, %p45
      %p48 = scmp.ne.s32.totalorder %s31, %s47
      %p49 = scmp.eq.s32.totalorder %s23, 0
      %p50 = por %p48, %p49
      %s52 = sadd.s32 %s51, 1
      %p55 = scmp.eq.s32.totalorder %s17, 1
      %p56 = scmp.ne.s32.totalorder %s51, %s53
      %p57 = scmp.eq.s32.totalorder %s17, 0
      %p58 = por %p56, %p57
      %p59 = scmp.ne.s32.totalorder %s51, %s53
      %p60 = scmp.eq.s32.totalorder %s22, 1
      %p61 = por %p59, %p60
      %p62 = scmp.ne.s32.totalorder %s53, %s54
      %p63 = scmp.eq.s32.totalorder %s22, 0
      %p64 = por %p62, %p63
      %p65 = scmp.ne.s32.totalorder %s53, %s54
      %p66 = scmp.eq.s32.totalorder %s23, 1
      %p67 = por %p65, %p66
      %p69 = scmp.ne.s32.totalorder %s54, %s68
      %p70 = scmp.eq.s32.totalorder %s23, 0
      %p71 = por %p69, %p70
      %s73 = sadd.s32 %s72, 1
      %p76 = scmp.eq.s32.totalorder %s17, 1
      %p77 = scmp.ne.s32.totalorder %s72, %s74
      %p78 = scmp.eq.s32.totalorder %s17, 0
      %p79 = por %p77, %p78
      %p80 = scmp.ne.s32.totalorder %s72, %s74
      %p81 = scmp.eq.s32.totalorder %s22, 1
      %p82 = por %p80, %p81
      %p83 = scmp.ne.s32.totalorder %s74, %s75
      %p84 = scmp.eq.s32.totalorder %s22, 0
      %p85 = por %p83, %p84
      %p86 = scmp.ne.s32.totalorder %s74, %s75
      %p87 = scmp.eq.s32.totalorder %s23, 1
      %p88 = por %p86, %p87
      %p90 = scmp.ne.s32.totalorder %s75, %s89
      %p91 = scmp.eq.s32.totalorder %s23, 0
      %p92 = por %p90, %p91
      %s94 = sadd.s32 %s93, 1
      %p97 = scmp.eq.s32.totalorder %s17, 1
      %p98 = scmp.ne.s32.totalorder %s93, %s95
      %p99 = scmp.eq.s32.totalorder %s17, 0
      %p100 = por %p98, %p99
      %p101 = scmp.ne.s32.totalorder %s93, %s95
      %p102 = scmp.eq.s32.totalorder %s22, 1
      %p103 = por %p101, %p102
      %p104 = scmp.ne.s32.totalorder %s95, %s96
      %p105 = scmp.eq.s32.totalorder %s22, 0
      %p106 = por %p104, %p105
      %p107 = scmp.ne.s32.totalorder %s95, %s96
      %p108 = scmp.eq.s32.totalorder %s23, 1
      %p109 = por %p107, %p108
      %p111 = scmp.ne.s32.totalorder %s96, %s110
      %p112 = scmp.eq.s32.totalorder %s23, 0
      %p113 = por %p111, %p112
      %s114 = ssub.s32 %s17, %s24
      %p115 = scmp.eq.s32.totalorder %s114, 0
      %s117 = sadd.s32 %s116, 1
      %s118 = scalar_select %p115, %s116, %s117
      %p121 = pneg %p115
      %p122 = scmp.eq.s32.totalorder %s17, 1
      %p123 = por %p121, %p122
      %p124 = scmp.ne.s32.totalorder %s116, %s119
      %p125 = scmp.eq.s32.totalorder %s17, 0
      %p126 = por %p124, %p125
      %p127 = scmp.ne.s32.totalorder %s116, %s119
      %p128 = scmp.eq.s32.totalorder %s22, 1
      %p129 = por %p127, %p128
      %p130 = scmp.ne.s32.totalorder %s119, %s120
      %p131 = scmp.eq.s32.totalorder %s22, 0
      %p132 = por %p130, %p131
      %p133 = scmp.ne.s32.totalorder %s119, %s120
      %p134 = scmp.eq.s32.totalorder %s23, 1
      %p135 = por %p133, %p134
      %p137 = scmp.ne.s32.totalorder %s120, %s136
      %p138 = scmp.eq.s32.totalorder %s23, 0
      %p139 = por %p137, %p138
      %p140 = scmp.le.s32.totalorder 1, %s17
      %p141 = scmp.lt.s32.totalorder %s17, 3
      %p142 = pnand %p140, %p141
      %p143 = pneg %p142
      // Predicated region
      $region9: #{tpu_custom_call.1} parent=5 // pred_check
        _
      $region10: #{tpu_custom_call.1} parent=5 // pred_check_branch
        %145 = sbr.rel (%p142) target = $region12
      $region11: #{tpu_custom_call.1} parent=5 // pred_region
        %s146 = ssub.s32 %s17, 1
        // Predicated region
        $region13: #{tpu_custom_call.1} parent=11 // pred_check
          %p147 = pneg %p64
        $region14: #{tpu_custom_call.1} parent=11 // pred_check_branch
          %149 = sbr.rel (%p147) target = $region16
        $region15: #{tpu_custom_call.1} parent=11 // pred_region
          %151 = vsyncadd [#allocation8], 0
          %s152 = sshll.u32 %s1, 4
          %s153 = int_to_ptr.hbm [resolvable:$true] %s152
          %s154 = sshll.u32 [#allocation7], 4
          %s155 = int_to_ptr.vmem [resolvable:$true] %s154
          %160 = dma.hbm_to_vmem [thread:$0]  %s153, 9216, %s155, [#allocation8], 64, 64, 4
        $region16: #{tpu_custom_call.1} parent=11 // pred_fallthru
          _
        // Predicated region
        $region17: #{tpu_custom_call.1} parent=11 // pred_check
          %p161 = pneg %p85
        $region18: #{tpu_custom_call.1} parent=11 // pred_check_branch
          %163 = sbr.rel (%p161) target = $region20
        $region19: #{tpu_custom_call.1} parent=11 // pred_region
          %165 = vsyncadd [#allocation8], 0
          %s166 = sshll.u32 %s2, 4
          %s167 = int_to_ptr.hbm [resolvable:$true] %s166
          %s168 = sshll.u32 [#allocation9], 4
          %s169 = int_to_ptr.vmem [resolvable:$true] %s168
          %174 = dma.hbm_to_vmem [thread:$0]  %s167, 10240, %s169, [#allocation8], 64, 64, 4
        $region20: #{tpu_custom_call.1} parent=11 // pred_fallthru
          _
        // Predicated region
        $region21: #{tpu_custom_call.1} parent=11 // pred_check
          %p175 = pneg %p106
        $region22: #{tpu_custom_call.1} parent=11 // pred_check_branch
          %177 = sbr.rel (%p175) target = $region24
        $region23: #{tpu_custom_call.1} parent=11 // pred_region
          _
        $region24: #{tpu_custom_call.1} parent=11 // pred_fallthru
          _
      $region12: #{tpu_custom_call.1} parent=5 // pred_fallthru
        _
      %p178 = scmp.lt.s32.totalorder %s17, 2
      // Predicated region
      $region25: #{tpu_custom_call.1} parent=5 // pred_check
        %p179 = pneg %p178
      $region26: #{tpu_custom_call.1} parent=5 // pred_check_branch
        %181 = sbr.rel (%p179) target = $region28
      $region27: #{tpu_custom_call.1} parent=5 // pred_region
        // Predicated region
        $region29: #{tpu_custom_call.1} parent=27 // pred_check
          %p182 = pneg %p37
        $region30: #{tpu_custom_call.1} parent=27 // pred_check_branch
          %184 = sbr.rel (%p182) target = $region32
        $region31: #{tpu_custom_call.1} parent=27 // pred_region
          %s185 = sand.u32 %s27, 1
          %s186 = scalar_lea.sflag [#allocation5], %s185
          %s187 = sand.u32 %s27, 1
          %s188 = smul.addr %s187, 288
          %s189 = scalar_lea.vmem [#allocation4], %s188
          %191 = vsyncadd %s186, 0
          %s192 = smul.addr %s17, 72
          %s193 = smul.addr %s192, 4
          %s194 = scalar_lea.hbm %s0, %s193
          %s195 = sshll.u32 %s194, 4
          %s196 = int_to_ptr.hbm [resolvable:$true] %s195
          %s197 = sshll.u32 %s189, 4
          %s198 = int_to_ptr.vmem [resolvable:$true] %s197
          %203 = dma.hbm_to_vmem [thread:$0]  %s196, 4608, %s198, %s186, 64, 64, 4
        $region32: #{tpu_custom_call.1} parent=27 // pred_fallthru
          _
      $region28: #{tpu_custom_call.1} parent=5 // pred_fallthru
        _
      %p204 = scmp.le.s32.totalorder 1, %s17
      %p205 = scmp.lt.s32.totalorder %s17, 3
      %p206 = pnand %p204, %p205
      %p207 = pneg %p206
      // Predicated region
      $region33: #{tpu_custom_call.1} parent=5 // pred_check
        _
      $region34: #{tpu_custom_call.1} parent=5 // pred_check_branch
        %209 = sbr.rel (%p206) target = $region36
      $region35: #{tpu_custom_call.1} parent=5 // pred_region
        %s210 = ssub.s32 %s17, 1
        %s211 = sand.u32 %s30, 1
        %s212 = scalar_lea.sflag [#allocation5], %s211
        %s213 = sand.u32 %s30, 1
        %s214 = smul.addr %s213, 288
        %s215 = scalar_lea.vmem [#allocation4], %s214
        // Predicated region
        $region37: #{tpu_custom_call.1} parent=35 // pred_check
          %p216 = pneg %p43
        $region38: #{tpu_custom_call.1} parent=35 // pred_check_branch
          %218 = sbr.rel (%p216) target = $region40
        $region39: #{tpu_custom_call.1} parent=35 // pred_region
          %220 = dma.done %s212, 4608
        $region40: #{tpu_custom_call.1} parent=35 // pred_fallthru
          _
        // Predicated region
        $region41: #{tpu_custom_call.1} parent=35 // pred_check
          %p221 = pneg %p64
        $region42: #{tpu_custom_call.1} parent=35 // pred_check_branch
          %223 = sbr.rel (%p221) target = $region44
        $region43: #{tpu_custom_call.1} parent=35 // pred_region
          %225 = dma.done [#allocation8], 9216
        $region44: #{tpu_custom_call.1} parent=35 // pred_fallthru
          _
        // Predicated region
        $region45: #{tpu_custom_call.1} parent=35 // pred_check
          %p226 = pneg %p85
        $region46: #{tpu_custom_call.1} parent=35 // pred_check_branch
          %228 = sbr.rel (%p226) target = $region48
        $region47: #{tpu_custom_call.1} parent=35 // pred_region
          %230 = dma.done [#allocation8], 10240
        $region48: #{tpu_custom_call.1} parent=35 // pred_fallthru
          _
        %s231 = sand.u32 %s30, 1
        %s232 = scalar_lea.sflag [#allocation5], %s231
        %s233 = sand.u32 %s30, 1
        %s234 = smul.addr %s233, 288
        %s235 = scalar_lea.vmem [#allocation4], %s234
        %p236 = pneg %p43
        %p237 = pneg %p40
        %p238 = pneg %p64
        %p239 = pneg %p61
        %p240 = pneg %p85
        %p241 = pneg %p82
        %p242 = pneg %p106
        %p243 = pneg %p103
        %p244 = pneg %p132
        %p245 = pneg %p129
        %s246 = sand.u32 %s119, 1
        %s247 = scalar_lea.sflag [#allocation6], %s246
        %s248 = sand.u32 %s119, 1
        %s249 = smul.addr %s248, 64
        %s250 = scalar_lea.vmem [#allocation10], %s249
        %v252 = vld [vmem:[%s215] sm:$0xf]
        %v253 = vld [vmem:[%s215 + $0x4] sm:$0xf]
        %v254 = vld [vmem:[%s215 + $0x8] sm:$0xf]
        %v255 = vld [vmem:[%s215 + $0x10] sm:$0xf]
        %v256 = vld [vmem:[%s215 + $0x14] sm:$0xf]
        %v257 = vld [vmem:[%s215 + $0x18] sm:$0xf]
        %v258 = vld [vmem:[%s215 + $0x20] sm:$0xf]
        %v259 = vld [vmem:[%s215 + $0x24] sm:$0xf]
        %v260 = vld [vmem:[%s215 + $0x28] sm:$0xf]
        %v261 = vld [vmem:[%s215 + $0x30] sm:$0xf]
        %v262 = vld [vmem:[%s215 + $0x34] sm:$0xf]
        %v263 = vld [vmem:[%s215 + $0x38] sm:$0xf]
        %v264 = vld [vmem:[%s215 + $0x40] sm:$0xf]
        %v265 = vld [vmem:[%s215 + $0x44] sm:$0xf]
        %v266 = vld [vmem:[%s215 + $0x48] sm:$0xf]
        %v267 = vld [vmem:[%s215 + $0x50] sm:$0xf]
        %v268 = vld [vmem:[%s215 + $0x54] sm:$0xf]
        %v269 = vld [vmem:[%s215 + $0x58] sm:$0xf]
        %v270 = vld [vmem:[%s215 + $0x60] sm:$0xf]
        %v271 = vld [vmem:[%s215 + $0x64] sm:$0xf]
        %v272 = vld [vmem:[%s215 + $0x68] sm:$0xf]
        %v273 = vld [vmem:[%s215 + $0x70] sm:$0xf]
        %v274 = vld [vmem:[%s215 + $0x74] sm:$0xf]
        %v275 = vld [vmem:[%s215 + $0x78] sm:$0xf]
        %v276 = vld [vmem:[%s215 + $0x80] sm:$0xf]
        %v277 = vld [vmem:[%s215 + $0x84] sm:$0xf]
        %v278 = vld [vmem:[%s215 + $0x88] sm:$0xf]
        %v279 = vld [vmem:[%s215 + $0x90] sm:$0xf]
        %v280 = vld [vmem:[%s215 + $0x94] sm:$0xf]
        %v281 = vld [vmem:[%s215 + $0x98] sm:$0xf]
        %v282 = vld [vmem:[%s215 + $0xa0] sm:$0xf]
        %v283 = vld [vmem:[%s215 + $0xa4] sm:$0xf]
        %v284 = vld [vmem:[%s215 + $0xa8] sm:$0xf]
        %v285 = vld [vmem:[%s215 + $0xb0] sm:$0xf]
        %v286 = vld [vmem:[%s215 + $0xb4] sm:$0xf]
        %v287 = vld [vmem:[%s215 + $0xb8] sm:$0xf]
        %v288 = vld [vmem:[%s215 + $0xc0] sm:$0xf]
        %v289 = vld [vmem:[%s215 + $0xc4] sm:$0xf]
        %v290 = vld [vmem:[%s215 + $0xc8] sm:$0xf]
        %v291 = vld [vmem:[%s215 + $0xd0] sm:$0xf]
        %v292 = vld [vmem:[%s215 + $0xd4] sm:$0xf]
        %v293 = vld [vmem:[%s215 + $0xd8] sm:$0xf]
        %v294 = vld [vmem:[%s215 + $0xe0] sm:$0xf]
        %v295 = vld [vmem:[%s215 + $0xe4] sm:$0xf]
        %v296 = vld [vmem:[%s215 + $0xe8] sm:$0xf]
        %v297 = vld [vmem:[%s215 + $0xf0] sm:$0xf]
        %v298 = vld [vmem:[%s215 + $0xf4] sm:$0xf]
        %v299 = vld [vmem:[%s215 + $0xf8] sm:$0xf]
        %v300 = vld [vmem:[%s215 + $0x100] sm:$0xf]
        %v301 = vld [vmem:[%s215 + $0x104] sm:$0xf]
        %v302 = vld [vmem:[%s215 + $0x108] sm:$0xf]
        %v303 = vld [vmem:[%s215 + $0x110] sm:$0xf]
        %v304 = vld [vmem:[%s215 + $0x114] sm:$0xf]
        %v305 = vld [vmem:[%s215 + $0x118] sm:$0xf]
        %v306 = vunpack.c.l.bf16 %v252
        %v307 = vunpack.c.l.bf16 %v253
        %v308 = vunpack.c.l.bf16 %v254
        %v309 = vunpack.c.l.bf16 %v255
        %v310 = vunpack.c.l.bf16 %v256
        %v311 = vunpack.c.l.bf16 %v257
        %v312 = vunpack.c.l.bf16 %v258
        %v313 = vunpack.c.l.bf16 %v259
        %v314 = vunpack.c.l.bf16 %v260
        %v315 = vunpack.c.l.bf16 %v261
        %v316 = vunpack.c.l.bf16 %v262
        %v317 = vunpack.c.l.bf16 %v263
        %v318 = vunpack.c.l.bf16 %v264
        %v319 = vunpack.c.l.bf16 %v265
        %v320 = vunpack.c.l.bf16 %v266
        %v321 = vunpack.c.l.bf16 %v267
        %v322 = vunpack.c.l.bf16 %v268
        %v323 = vunpack.c.l.bf16 %v269
        %v324 = vunpack.c.l.bf16 %v270
        %v325 = vunpack.c.l.bf16 %v271
        %v326 = vunpack.c.l.bf16 %v272
        %v327 = vunpack.c.l.bf16 %v273
        %v328 = vunpack.c.l.bf16 %v274
        %v329 = vunpack.c.l.bf16 %v275
        %v330 = vunpack.c.l.bf16 %v276
        %v331 = vunpack.c.l.bf16 %v277
        %v332 = vunpack.c.l.bf16 %v278
        %v333 = vunpack.c.l.bf16 %v279
        %v334 = vunpack.c.l.bf16 %v280
        %v335 = vunpack.c.l.bf16 %v281
        %v336 = vunpack.c.l.bf16 %v282
        %v337 = vunpack.c.l.bf16 %v283
        %v338 = vunpack.c.l.bf16 %v284
        %v339 = vunpack.c.l.bf16 %v285
        %v340 = vunpack.c.l.bf16 %v286
        %v341 = vunpack.c.l.bf16 %v287
        %v342 = vunpack.c.l.bf16 %v288
        %v343 = vunpack.c.l.bf16 %v289
        %v344 = vunpack.c.l.bf16 %v290
        %v345 = vunpack.c.l.bf16 %v291
        %v346 = vunpack.c.l.bf16 %v292
        %v347 = vunpack.c.l.bf16 %v293
        %v348 = vunpack.c.l.bf16 %v294
        %v349 = vunpack.c.l.bf16 %v295
        %v350 = vunpack.c.l.bf16 %v296
        %v351 = vunpack.c.l.bf16 %v297
        %v352 = vunpack.c.l.bf16 %v298
        %v353 = vunpack.c.l.bf16 %v299
        %v354 = vunpack.c.l.bf16 %v300
        %v355 = vunpack.c.l.bf16 %v301
        %v356 = vunpack.c.l.bf16 %v302
        %v357 = vunpack.c.l.bf16 %v303
        %v358 = vunpack.c.l.bf16 %v304
        %v359 = vunpack.c.l.bf16 %v305
        %v360 = vmax.f32 %v306, 0.0
        %v361 = vmax.f32 %v307, 0.0
        %v362 = vmax.f32 %v308, 0.0
        %v363 = vmax.f32 %v309, 0.0
        %v364 = vmax.f32 %v310, 0.0
        %v365 = vmax.f32 %v311, 0.0
        %v366 = vmax.f32 %v312, 0.0
        %v367 = vmax.f32 %v313, 0.0
        %v368 = vmax.f32 %v314, 0.0
        %v369 = vmax.f32 %v315, 0.0
        %v370 = vmax.f32 %v316, 0.0
        %v371 = vmax.f32 %v317, 0.0
        %v372 = vmax.f32 %v318, 0.0
        %v373 = vmax.f32 %v319, 0.0
        %v374 = vmax.f32 %v320, 0.0
        %v375 = vmax.f32 %v321, 0.0
        %v376 = vmax.f32 %v322, 0.0
        %v377 = vmax.f32 %v323, 0.0
        %v378 = vmax.f32 %v324, 0.0
        %v379 = vmax.f32 %v325, 0.0
        %v380 = vmax.f32 %v326, 0.0
        %v381 = vmax.f32 %v327, 0.0
        %v382 = vmax.f32 %v328, 0.0
        %v383 = vmax.f32 %v329, 0.0
        %v384 = vmax.f32 %v330, 0.0
        %v385 = vmax.f32 %v331, 0.0
        %v386 = vmax.f32 %v332, 0.0
        %v387 = vmax.f32 %v333, 0.0
        %v388 = vmax.f32 %v334, 0.0
        %v389 = vmax.f32 %v335, 0.0
        %v390 = vmax.f32 %v336, 0.0
        %v391 = vmax.f32 %v337, 0.0
        %v392 = vmax.f32 %v338, 0.0
        %v393 = vmax.f32 %v339, 0.0
        %v394 = vmax.f32 %v340, 0.0
        %v395 = vmax.f32 %v341, 0.0
        %v396 = vmax.f32 %v342, 0.0
        %v397 = vmax.f32 %v343, 0.0
        %v398 = vmax.f32 %v344, 0.0
        %v399 = vmax.f32 %v345, 0.0
        %v400 = vmax.f32 %v346, 0.0
        %v401 = vmax.f32 %v347, 0.0
        %v402 = vmax.f32 %v348, 0.0
        %v403 = vmax.f32 %v349, 0.0
        %v404 = vmax.f32 %v350, 0.0
        %v405 = vmax.f32 %v351, 0.0
        %v406 = vmax.f32 %v352, 0.0
        %v407 = vmax.f32 %v353, 0.0
        %v408 = vmax.f32 %v354, 0.0
        %v409 = vmax.f32 %v355, 0.0
        %v410 = vmax.f32 %v356, 0.0
        %v411 = vmax.f32 %v357, 0.0
        %v412 = vmax.f32 %v358, 0.0
        %v413 = vmax.f32 %v359, 0.0
        %v414 = vpack.c.bf16 %v360, %v360
        %v415 = vpack.c.bf16 %v361, %v361
        %v416 = vpack.c.bf16 %v362, %v362
        %v417 = vpack.c.bf16 %v363, %v363
        %v418 = vpack.c.bf16 %v364, %v364
        %v419 = vpack.c.bf16 %v365, %v365
        %v420 = vpack.c.bf16 %v366, %v366
        %v421 = vpack.c.bf16 %v367, %v367
        %v422 = vpack.c.bf16 %v368, %v368
        %v423 = vpack.c.bf16 %v369, %v369
        %v424 = vpack.c.bf16 %v370, %v370
        %v425 = vpack.c.bf16 %v371, %v371
        %v426 = vpack.c.bf16 %v372, %v372
        %v427 = vpack.c.bf16 %v373, %v373
        %v428 = vpack.c.bf16 %v374, %v374
        %v429 = vpack.c.bf16 %v375, %v375
        %v430 = vpack.c.bf16 %v376, %v376
        %v431 = vpack.c.bf16 %v377, %v377
        %v432 = vpack.c.bf16 %v378, %v378
        %v433 = vpack.c.bf16 %v379, %v379
        %v434 = vpack.c.bf16 %v380, %v380
        %v435 = vpack.c.bf16 %v381, %v381
        %v436 = vpack.c.bf16 %v382, %v382
        %v437 = vpack.c.bf16 %v383, %v383
        %v438 = vpack.c.bf16 %v384, %v384
        %v439 = vpack.c.bf16 %v385, %v385
        %v440 = vpack.c.bf16 %v386, %v386
        %v441 = vpack.c.bf16 %v387, %v387
        %v442 = vpack.c.bf16 %v388, %v388
        %v443 = vpack.c.bf16 %v389, %v389
        %v444 = vpack.c.bf16 %v390, %v390
        %v445 = vpack.c.bf16 %v391, %v391
        %v446 = vpack.c.bf16 %v392, %v392
        %v447 = vpack.c.bf16 %v393, %v393
        %v448 = vpack.c.bf16 %v394, %v394
        %v449 = vpack.c.bf16 %v395, %v395
        %v450 = vpack.c.bf16 %v396, %v396
        %v451 = vpack.c.bf16 %v397, %v397
        %v452 = vpack.c.bf16 %v398, %v398
        %v453 = vpack.c.bf16 %v399, %v399
        %v454 = vpack.c.bf16 %v400, %v400
        %v455 = vpack.c.bf16 %v401, %v401
        %v456 = vpack.c.bf16 %v402, %v402
        %v457 = vpack.c.bf16 %v403, %v403
        %v458 = vpack.c.bf16 %v404, %v404
        %v459 = vpack.c.bf16 %v405, %v405
        %v460 = vpack.c.bf16 %v406, %v406
        %v461 = vpack.c.bf16 %v407, %v407
        %v462 = vpack.c.bf16 %v408, %v408
        %v463 = vpack.c.bf16 %v409, %v409
        %v464 = vpack.c.bf16 %v410, %v410
        %v465 = vpack.c.bf16 %v411, %v411
        %v466 = vpack.c.bf16 %v412, %v412
        %v467 = vpack.c.bf16 %v413, %v413
        %v500 = vunpack.c.l.b16 %v414
        %v501 = vunpack.c.l.b16 %v415
        %v502 = vunpack.c.l.b16 %v417
        %v503 = vunpack.c.l.b16 %v418
        %v504 = vunpack.c.l.b16 %v420
        %v505 = vunpack.c.l.b16 %v421
        %v506 = vunpack.c.l.b16 %v423
        %v507 = vunpack.c.l.b16 %v424
        %v508 = vunpack.c.l.b16 %v426
        %v509 = vunpack.c.l.b16 %v427
        %v510 = vunpack.c.l.b16 %v429
        %v511 = vunpack.c.l.b16 %v430
        %v512 = vunpack.c.l.b16 %v432
        %v513 = vunpack.c.l.b16 %v433
        %v514 = vunpack.c.l.b16 %v435
        %v515 = vunpack.c.l.b16 %v436
        %v516 = vunpack.c.l.b16 %v438
        %v517 = vunpack.c.l.b16 %v439
        %v518 = vunpack.c.l.b16 %v441
        %v519 = vunpack.c.l.b16 %v442
        %v520 = vunpack.c.l.b16 %v444
        %v521 = vunpack.c.l.b16 %v445
        %v522 = vunpack.c.l.b16 %v447
        %v523 = vunpack.c.l.b16 %v448
        %v524 = vunpack.c.l.b16 %v450
        %v525 = vunpack.c.l.b16 %v451
        %v526 = vunpack.c.l.b16 %v453
        %v527 = vunpack.c.l.b16 %v454
        %v528 = vunpack.c.l.b16 %v456
        %v529 = vunpack.c.l.b16 %v457
        %v530 = vunpack.c.l.b16 %v459
        %v531 = vunpack.c.l.b16 %v460
        %v532 = vpack.c.b16 %v501, %v500
        %v533 = vpack.c.b16 %v503, %v502
        %v534 = vpack.c.b16 %v505, %v504
        %v535 = vpack.c.b16 %v507, %v506
        %v536 = vpack.c.b16 %v509, %v508
        %v537 = vpack.c.b16 %v511, %v510
        %v538 = vpack.c.b16 %v513, %v512
        %v539 = vpack.c.b16 %v515, %v514
        %v540 = vpack.c.b16 %v517, %v516
        %v541 = vpack.c.b16 %v519, %v518
        %v542 = vpack.c.b16 %v521, %v520
        %v543 = vpack.c.b16 %v523, %v522
        %v544 = vpack.c.b16 %v525, %v524
        %v545 = vpack.c.b16 %v527, %v526
        %v546 = vpack.c.b16 %v529, %v528
        %v547 = vpack.c.b16 %v531, %v530
        %v580 = vunpack.c.l.b16 %v416
        %v581 = vunpack.c.l.b16 %v419
        %v582 = vunpack.c.l.b16 %v422
        %v583 = vunpack.c.l.b16 %v425
        %v584 = vunpack.c.l.b16 %v428
        %v585 = vunpack.c.l.b16 %v431
        %v586 = vunpack.c.l.b16 %v434
        %v587 = vunpack.c.l.b16 %v437
        %v588 = vunpack.c.l.b16 %v440
        %v589 = vunpack.c.l.b16 %v443
        %v590 = vunpack.c.l.b16 %v446
        %v591 = vunpack.c.l.b16 %v449
        %v592 = vunpack.c.l.b16 %v452
        %v593 = vunpack.c.l.b16 %v455
        %v594 = vunpack.c.l.b16 %v458
        %v595 = vunpack.c.l.b16 %v461
        %v596 = vpack.c.b16 %v580, %v580
        %v597 = vpack.c.b16 %v581, %v581
        %v598 = vpack.c.b16 %v582, %v582
        %v599 = vpack.c.b16 %v583, %v583
        %v600 = vpack.c.b16 %v584, %v584
        %v601 = vpack.c.b16 %v585, %v585
        %v602 = vpack.c.b16 %v586, %v586
        %v603 = vpack.c.b16 %v587, %v587
        %v604 = vpack.c.b16 %v588, %v588
        %v605 = vpack.c.b16 %v589, %v589
        %v606 = vpack.c.b16 %v590, %v590
        %v607 = vpack.c.b16 %v591, %v591
        %v608 = vpack.c.b16 %v592, %v592
        %v609 = vpack.c.b16 %v593, %v593
        %v610 = vpack.c.b16 %v594, %v594
        %v611 = vpack.c.b16 %v595, %v595
        %vm612 = vsmask.f32 7424
        %v614 = vshrl.u32 %v532, 16
        %v616 = vshll.u32 %v532, 16
        %v618 = vrot.slane %v616, 1
        %v619 = vor.u32 %v614, %v618
        %v621 = vshll.u32 %v596, 16
        %v623 = vrot.slane %v621, 1
        %v624 = vsel %vm612, %v619, %v623
        %v626 = vshrl.u32 %v533, 16
        %v628 = vshll.u32 %v533, 16
        %v630 = vrot.slane %v628, 1
        %v631 = vor.u32 %v626, %v630
        %v633 = vshll.u32 %v597, 16
        %v635 = vrot.slane %v633, 1
        %v636 = vsel %vm612, %v631, %v635
        %v638 = vshrl.u32 %v534, 16
        %v640 = vshll.u32 %v534, 16
        %v642 = vrot.slane %v640, 1
        %v643 = vor.u32 %v638, %v642
        %v645 = vshll.u32 %v598, 16
        %v647 = vrot.slane %v645, 1
        %v648 = vsel %vm612, %v643, %v647
        %v650 = vshrl.u32 %v535, 16
        %v652 = vshll.u32 %v535, 16
        %v654 = vrot.slane %v652, 1
        %v655 = vor.u32 %v650, %v654
        %v657 = vshll.u32 %v599, 16
        %v659 = vrot.slane %v657, 1
        %v660 = vsel %vm612, %v655, %v659
        %v662 = vshrl.u32 %v536, 16
        %v664 = vshll.u32 %v536, 16
        %v666 = vrot.slane %v664, 1
        %v667 = vor.u32 %v662, %v666
        %v669 = vshll.u32 %v600, 16
        %v671 = vrot.slane %v669, 1
        %v672 = vsel %vm612, %v667, %v671
        %v674 = vshrl.u32 %v537, 16
        %v676 = vshll.u32 %v537, 16
        %v678 = vrot.slane %v676, 1
        %v679 = vor.u32 %v674, %v678
        %v681 = vshll.u32 %v601, 16
        %v683 = vrot.slane %v681, 1
        %v684 = vsel %vm612, %v679, %v683
        %v686 = vshrl.u32 %v538, 16
        %v688 = vshll.u32 %v538, 16
        %v690 = vrot.slane %v688, 1
        %v691 = vor.u32 %v686, %v690
        %v693 = vshll.u32 %v602, 16
        %v695 = vrot.slane %v693, 1
        %v696 = vsel %vm612, %v691, %v695
        %v698 = vshrl.u32 %v539, 16
        %v700 = vshll.u32 %v539, 16
        %v702 = vrot.slane %v700, 1
        %v703 = vor.u32 %v698, %v702
        %v705 = vshll.u32 %v603, 16
        %v707 = vrot.slane %v705, 1
        %v708 = vsel %vm612, %v703, %v707
        %v710 = vshrl.u32 %v540, 16
        %v712 = vshll.u32 %v540, 16
        %v714 = vrot.slane %v712, 1
        %v715 = vor.u32 %v710, %v714
        %v717 = vshll.u32 %v604, 16
        %v719 = vrot.slane %v717, 1
        %v720 = vsel %vm612, %v715, %v719
        %v722 = vshrl.u32 %v541, 16
        %v724 = vshll.u32 %v541, 16
        %v726 = vrot.slane %v724, 1
        %v727 = vor.u32 %v722, %v726
        %v729 = vshll.u32 %v605, 16
        %v731 = vrot.slane %v729, 1
        %v732 = vsel %vm612, %v727, %v731
        %v734 = vshrl.u32 %v542, 16
        %v736 = vshll.u32 %v542, 16
        %v738 = vrot.slane %v736, 1
        %v739 = vor.u32 %v734, %v738
        %v741 = vshll.u32 %v606, 16
        %v743 = vrot.slane %v741, 1
        %v744 = vsel %vm612, %v739, %v743
        %v746 = vshrl.u32 %v543, 16
        %v748 = vshll.u32 %v543, 16
        %v750 = vrot.slane %v748, 1
        %v751 = vor.u32 %v746, %v750
        %v753 = vshll.u32 %v607, 16
        %v755 = vrot.slane %v753, 1
        %v756 = vsel %vm612, %v751, %v755
        %v758 = vshrl.u32 %v544, 16
        %v760 = vshll.u32 %v544, 16
        %v762 = vrot.slane %v760, 1
        %v763 = vor.u32 %v758, %v762
        %v765 = vshll.u32 %v608, 16
        %v767 = vrot.slane %v765, 1
        %v768 = vsel %vm612, %v763, %v767
        %v770 = vshrl.u32 %v545, 16
        %v772 = vshll.u32 %v545, 16
        %v774 = vrot.slane %v772, 1
        %v775 = vor.u32 %v770, %v774
        %v777 = vshll.u32 %v609, 16
        %v779 = vrot.slane %v777, 1
        %v780 = vsel %vm612, %v775, %v779
        %v782 = vshrl.u32 %v546, 16
        %v784 = vshll.u32 %v546, 16
        %v786 = vrot.slane %v784, 1
        %v787 = vor.u32 %v782, %v786
        %v789 = vshll.u32 %v610, 16
        %v791 = vrot.slane %v789, 1
        %v792 = vsel %vm612, %v787, %v791
        %v794 = vshrl.u32 %v547, 16
        %v796 = vshll.u32 %v547, 16
        %v798 = vrot.slane %v796, 1
        %v799 = vor.u32 %v794, %v798
        %v801 = vshll.u32 %v611, 16
        %v803 = vrot.slane %v801, 1
        %v804 = vsel %vm612, %v799, %v803
        %vm821 = vcmask 1046528
        %v822 = vrot.slane %v532, 1
        %v823 = vrot.slane %v596, 1
        %v824 = vsel %vm821, %v822, %v823
        %v825 = vrot.slane %v533, 1
        %v826 = vrot.slane %v597, 1
        %v827 = vsel %vm821, %v825, %v826
        %v828 = vrot.slane %v534, 1
        %v829 = vrot.slane %v598, 1
        %v830 = vsel %vm821, %v828, %v829
        %v831 = vrot.slane %v535, 1
        %v832 = vrot.slane %v599, 1
        %v833 = vsel %vm821, %v831, %v832
        %v834 = vrot.slane %v536, 1
        %v835 = vrot.slane %v600, 1
        %v836 = vsel %vm821, %v834, %v835
        %v837 = vrot.slane %v537, 1
        %v838 = vrot.slane %v601, 1
        %v839 = vsel %vm821, %v837, %v838
        %v840 = vrot.slane %v538, 1
        %v841 = vrot.slane %v602, 1
        %v842 = vsel %vm821, %v840, %v841
        %v843 = vrot.slane %v539, 1
        %v844 = vrot.slane %v603, 1
        %v845 = vsel %vm821, %v843, %v844
        %v846 = vrot.slane %v540, 1
        %v847 = vrot.slane %v604, 1
        %v848 = vsel %vm821, %v846, %v847
        %v849 = vrot.slane %v541, 1
        %v850 = vrot.slane %v605, 1
        %v851 = vsel %vm821, %v849, %v850
        %v852 = vrot.slane %v542, 1
        %v853 = vrot.slane %v606, 1
        %v854 = vsel %vm821, %v852, %v853
        %v855 = vrot.slane %v543, 1
        %v856 = vrot.slane %v607, 1
        %v857 = vsel %vm821, %v855, %v856
        %v858 = vrot.slane %v544, 1
        %v859 = vrot.slane %v608, 1
        %v860 = vsel %vm821, %v858, %v859
        %v861 = vrot.slane %v545, 1
        %v862 = vrot.slane %v609, 1
        %v863 = vsel %vm821, %v861, %v862
        %v864 = vrot.slane %v546, 1
        %v865 = vrot.slane %v610, 1
        %v866 = vsel %vm821, %v864, %v865
        %v867 = vrot.slane %v547, 1
        %v868 = vrot.slane %v611, 1
        %v869 = vsel %vm821, %v867, %v868
        %v888 = vunpack.c.l.b16 %v462
        %v889 = vunpack.c.l.b16 %v463
        %v890 = vpack.c.b16 %v889, %v888
        %v893 = vunpack.c.l.b16 %v464
        %v894 = vpack.c.b16 %v893, %v893
        %v896 = vshrl.u32 %v890, 16
        %v898 = vshll.u32 %v890, 16
        %v900 = vrot.slane %v898, 1
        %v901 = vor.u32 %v896, %v900
        %v903 = vshll.u32 %v894, 16
        %v905 = vrot.slane %v903, 1
        %v906 = vsel %vm612, %v901, %v905
        %v908 = vrot.slane %v890, 1
        %v909 = vrot.slane %v894, 1
        %v910 = vsel %vm821, %v908, %v909
        %v914 = vunpack.c.l.b16 %v465
        %v915 = vunpack.c.l.b16 %v466
        %v916 = vpack.c.b16 %v915, %v914
        %v919 = vunpack.c.l.b16 %v467
        %v920 = vpack.c.b16 %v919, %v919
        %v922 = vshrl.u32 %v916, 16
        %v924 = vshll.u32 %v916, 16
        %v926 = vrot.slane %v924, 1
        %v927 = vor.u32 %v922, %v926
        %v929 = vshll.u32 %v920, 16
        %v931 = vrot.slane %v929, 1
        %v932 = vsel %vm612, %v927, %v931
        %v934 = vrot.slane %v916, 1
        %v935 = vrot.slane %v920, 1
        %v936 = vsel %vm821, %v934, %v935
        %v938 = vld [vmem:[#allocation7] sm:$0xf]
        %v939 = vld [vmem:[#allocation7 + $0x4] sm:$0xf]
        %v940 = vld [vmem:[#allocation7 + $0x8] sm:$0xf]
        %v941 = vld [vmem:[#allocation7 + $0xc] sm:$0xf]
        %v942 = vld [vmem:[#allocation7 + $0x10] sm:$0xf]
        %v943 = vld [vmem:[#allocation7 + $0x14] sm:$0xf]
        %v944 = vld [vmem:[#allocation7 + $0x18] sm:$0xf]
        %v945 = vld [vmem:[#allocation7 + $0x1c] sm:$0xf]
        %v946 = vld [vmem:[#allocation7 + $0x20] sm:$0xf]
        %v947 = vld [vmem:[#allocation7 + $0x24] sm:$0xf]
        %v948 = vld [vmem:[#allocation7 + $0x28] sm:$0xf]
        %v949 = vld [vmem:[#allocation7 + $0x2c] sm:$0xf]
        %v950 = vld [vmem:[#allocation7 + $0x30] sm:$0xf]
        %v951 = vld [vmem:[#allocation7 + $0x34] sm:$0xf]
        %v952 = vld [vmem:[#allocation7 + $0x38] sm:$0xf]
        %v953 = vld [vmem:[#allocation7 + $0x3c] sm:$0xf]
        %v954 = vld [vmem:[#allocation7 + $0x40] sm:$0xf]
        %v955 = vld [vmem:[#allocation7 + $0x44] sm:$0xf]
        %v956 = vld [vmem:[#allocation7 + $0x48] sm:$0xf]
        %v957 = vld [vmem:[#allocation7 + $0x4c] sm:$0xf]
        %v958 = vld [vmem:[#allocation7 + $0x50] sm:$0xf]
        %v959 = vld [vmem:[#allocation7 + $0x54] sm:$0xf]
        %v960 = vld [vmem:[#allocation7 + $0x58] sm:$0xf]
        %v961 = vld [vmem:[#allocation7 + $0x5c] sm:$0xf]
        %v962 = vld [vmem:[#allocation7 + $0x60] sm:$0xf]
        %v963 = vld [vmem:[#allocation7 + $0x64] sm:$0xf]
        %v964 = vld [vmem:[#allocation7 + $0x68] sm:$0xf]
        %v965 = vld [vmem:[#allocation7 + $0x6c] sm:$0xf]
        %v966 = vld [vmem:[#allocation7 + $0x70] sm:$0xf]
        %v967 = vld [vmem:[#allocation7 + $0x74] sm:$0xf]
        %v968 = vld [vmem:[#allocation7 + $0x78] sm:$0xf]
        %v969 = vld [vmem:[#allocation7 + $0x7c] sm:$0xf]
        %v970 = vld [vmem:[#allocation7 + $0x80] sm:$0xf]
        %v971 = vld [vmem:[#allocation7 + $0x84] sm:$0xf]
        %v972 = vld [vmem:[#allocation7 + $0x88] sm:$0xf]
        %v973 = vld [vmem:[#allocation7 + $0x8c] sm:$0xf]
        %v974 = vld [vmem:[#allocation7 + $0x90] sm:$0xf]
        %v975 = vld [vmem:[#allocation7 + $0x94] sm:$0xf]
        %v976 = vld [vmem:[#allocation7 + $0x98] sm:$0xf]
        %v977 = vld [vmem:[#allocation7 + $0x9c] sm:$0xf]
        %v978 = vld [vmem:[#allocation7 + $0xa0] sm:$0xf]
        %v979 = vld [vmem:[#allocation7 + $0xa4] sm:$0xf]
        %v980 = vld [vmem:[#allocation7 + $0xa8] sm:$0xf]
        %v981 = vld [vmem:[#allocation7 + $0xac] sm:$0xf]
        %v982 = vld [vmem:[#allocation7 + $0xb0] sm:$0xf]
        %v983 = vld [vmem:[#allocation7 + $0xb4] sm:$0xf]
        %v984 = vld [vmem:[#allocation7 + $0xb8] sm:$0xf]
        %v985 = vld [vmem:[#allocation7 + $0xbc] sm:$0xf]
        %v986 = vld [vmem:[#allocation7 + $0xc0] sm:$0xf]
        %v987 = vld [vmem:[#allocation7 + $0xc4] sm:$0xf]
        %v988 = vld [vmem:[#allocation7 + $0xc8] sm:$0xf]
        %v989 = vld [vmem:[#allocation7 + $0xcc] sm:$0xf]
        %v990 = vld [vmem:[#allocation7 + $0xd0] sm:$0xf]
        %v991 = vld [vmem:[#allocation7 + $0xd4] sm:$0xf]
        %v992 = vld [vmem:[#allocation7 + $0xd8] sm:$0xf]
        %v993 = vld [vmem:[#allocation7 + $0xdc] sm:$0xf]
        %v994 = vld [vmem:[#allocation7 + $0xe0] sm:$0xf]
        %v995 = vld [vmem:[#allocation7 + $0xe4] sm:$0xf]
        %v996 = vld [vmem:[#allocation7 + $0xe8] sm:$0xf]
        %v997 = vld [vmem:[#allocation7 + $0xec] sm:$0xf]
        %v998 = vld [vmem:[#allocation7 + $0xf0] sm:$0xf]
        %v999 = vld [vmem:[#allocation7 + $0xf4] sm:$0xf]
        %v1000 = vld [vmem:[#allocation7 + $0xf8] sm:$0xf]
        %v1001 = vld [vmem:[#allocation7 + $0xfc] sm:$0xf]
        %v1002 = vld [vmem:[#allocation7 + $0x100] sm:$0xf]
        %v1003 = vld [vmem:[#allocation7 + $0x104] sm:$0xf]
        %v1004 = vld [vmem:[#allocation7 + $0x108] sm:$0xf]
        %v1005 = vld [vmem:[#allocation7 + $0x10c] sm:$0xf]
        %v1006 = vld [vmem:[#allocation7 + $0x110] sm:$0xf]
        %v1007 = vld [vmem:[#allocation7 + $0x114] sm:$0xf]
        %v1008 = vld [vmem:[#allocation7 + $0x118] sm:$0xf]
        %v1009 = vld [vmem:[#allocation7 + $0x11c] sm:$0xf]
        %v1010 = vld [vmem:[#allocation7 + $0x120] sm:$0xf]
        %v1011 = vld [vmem:[#allocation7 + $0x124] sm:$0xf]
        %v1012 = vld [vmem:[#allocation7 + $0x128] sm:$0xf]
        %v1013 = vld [vmem:[#allocation7 + $0x12c] sm:$0xf]
        %v1014 = vld [vmem:[#allocation7 + $0x130] sm:$0xf]
        %v1015 = vld [vmem:[#allocation7 + $0x134] sm:$0xf]
        %v1016 = vld [vmem:[#allocation7 + $0x138] sm:$0xf]
        %v1017 = vld [vmem:[#allocation7 + $0x13c] sm:$0xf]
        %v1018 = vld [vmem:[#allocation7 + $0x140] sm:$0xf]
        %v1019 = vld [vmem:[#allocation7 + $0x144] sm:$0xf]
        %v1020 = vld [vmem:[#allocation7 + $0x148] sm:$0xf]
        %v1021 = vld [vmem:[#allocation7 + $0x14c] sm:$0xf]
        %v1022 = vld [vmem:[#allocation7 + $0x150] sm:$0xf]
        %v1023 = vld [vmem:[#allocation7 + $0x154] sm:$0xf]
        %v1024 = vld [vmem:[#allocation7 + $0x158] sm:$0xf]
        %v1025 = vld [vmem:[#allocation7 + $0x15c] sm:$0xf]
        %v1026 = vld [vmem:[#allocation7 + $0x160] sm:$0xf]
        %v1027 = vld [vmem:[#allocation7 + $0x164] sm:$0xf]
        %v1028 = vld [vmem:[#allocation7 + $0x168] sm:$0xf]
        %v1029 = vld [vmem:[#allocation7 + $0x16c] sm:$0xf]
        %v1030 = vld [vmem:[#allocation7 + $0x170] sm:$0xf]
        %v1031 = vld [vmem:[#allocation7 + $0x174] sm:$0xf]
        %v1032 = vld [vmem:[#allocation7 + $0x178] sm:$0xf]
        %v1033 = vld [vmem:[#allocation7 + $0x17c] sm:$0xf]
        %v1034 = vld [vmem:[#allocation7 + $0x180] sm:$0xf]
        %v1035 = vld [vmem:[#allocation7 + $0x184] sm:$0xf]
        %v1036 = vld [vmem:[#allocation7 + $0x188] sm:$0xf]
        %v1037 = vld [vmem:[#allocation7 + $0x18c] sm:$0xf]
        %v1038 = vld [vmem:[#allocation7 + $0x190] sm:$0xf]
        %v1039 = vld [vmem:[#allocation7 + $0x194] sm:$0xf]
        %v1040 = vld [vmem:[#allocation7 + $0x198] sm:$0xf]
        %v1041 = vld [vmem:[#allocation7 + $0x19c] sm:$0xf]
        %v1042 = vld [vmem:[#allocation7 + $0x1a0] sm:$0xf]
        %v1043 = vld [vmem:[#allocation7 + $0x1a4] sm:$0xf]
        %v1044 = vld [vmem:[#allocation7 + $0x1a8] sm:$0xf]
        %v1045 = vld [vmem:[#allocation7 + $0x1ac] sm:$0xf]
        %v1046 = vld [vmem:[#allocation7 + $0x1b0] sm:$0xf]
        %v1047 = vld [vmem:[#allocation7 + $0x1b4] sm:$0xf]
        %v1048 = vld [vmem:[#allocation7 + $0x1b8] sm:$0xf]
        %v1049 = vld [vmem:[#allocation7 + $0x1bc] sm:$0xf]
        %v1050 = vld [vmem:[#allocation7 + $0x1c0] sm:$0xf]
        %v1051 = vld [vmem:[#allocation7 + $0x1c4] sm:$0xf]
        %v1052 = vld [vmem:[#allocation7 + $0x1c8] sm:$0xf]
        %v1053 = vld [vmem:[#allocation7 + $0x1cc] sm:$0xf]
        %v1054 = vld [vmem:[#allocation7 + $0x1d0] sm:$0xf]
        %v1055 = vld [vmem:[#allocation7 + $0x1d4] sm:$0xf]
        %v1056 = vld [vmem:[#allocation7 + $0x1d8] sm:$0xf]
        %v1057 = vld [vmem:[#allocation7 + $0x1dc] sm:$0xf]
        %v1058 = vld [vmem:[#allocation7 + $0x1e0] sm:$0xf]
        %v1059 = vld [vmem:[#allocation7 + $0x1e4] sm:$0xf]
        %v1060 = vld [vmem:[#allocation7 + $0x1e8] sm:$0xf]
        %v1061 = vld [vmem:[#allocation7 + $0x1ec] sm:$0xf]
        %v1062 = vld [vmem:[#allocation7 + $0x1f0] sm:$0xf]
        %v1063 = vld [vmem:[#allocation7 + $0x1f4] sm:$0xf]
        %v1064 = vld [vmem:[#allocation7 + $0x1f8] sm:$0xf]
        %v1065 = vld [vmem:[#allocation7 + $0x1fc] sm:$0xf]
        %v1066 = vld [vmem:[#allocation7 + $0x200] sm:$0xf]
        %v1067 = vld [vmem:[#allocation7 + $0x204] sm:$0xf]
        %v1068 = vld [vmem:[#allocation7 + $0x208] sm:$0xf]
        %v1069 = vld [vmem:[#allocation7 + $0x20c] sm:$0xf]
        %v1070 = vld [vmem:[#allocation7 + $0x210] sm:$0xf]
        %v1071 = vld [vmem:[#allocation7 + $0x214] sm:$0xf]
        %v1072 = vld [vmem:[#allocation7 + $0x218] sm:$0xf]
        %v1073 = vld [vmem:[#allocation7 + $0x21c] sm:$0xf]
        %v1074 = vld [vmem:[#allocation7 + $0x220] sm:$0xf]
        %v1075 = vld [vmem:[#allocation7 + $0x224] sm:$0xf]
        %v1076 = vld [vmem:[#allocation7 + $0x228] sm:$0xf]
        %v1077 = vld [vmem:[#allocation7 + $0x22c] sm:$0xf]
        %v1078 = vld [vmem:[#allocation7 + $0x230] sm:$0xf]
        %v1079 = vld [vmem:[#allocation7 + $0x234] sm:$0xf]
        %v1080 = vld [vmem:[#allocation7 + $0x238] sm:$0xf]
        %v1081 = vld [vmem:[#allocation7 + $0x23c] sm:$0xf]
        %v1082 = vld [vmem:[%s3] sm:$0x1]
        %v1083 = vperm.slane %v1082, 0
        %v1228 = vunpack.c.l.b16 %v938
        %v1229 = vunpack.c.l.b16 %v939
        %v1230 = vunpack.c.l.b16 %v940
        %v1231 = vunpack.c.l.b16 %v941
        %v1232 = vunpack.c.l.b16 %v942
        %v1233 = vunpack.c.l.b16 %v943
        %v1234 = vunpack.c.l.b16 %v944
        %v1235 = vunpack.c.l.b16 %v945
        %v1236 = vunpack.c.l.b16 %v946
        %v1237 = vunpack.c.l.b16 %v947
        %v1238 = vunpack.c.l.b16 %v948
        %v1239 = vunpack.c.l.b16 %v949
        %v1240 = vunpack.c.l.b16 %v950
        %v1241 = vunpack.c.l.b16 %v951
        %v1242 = vunpack.c.l.b16 %v952
        %v1243 = vunpack.c.l.b16 %v953
        %v1244 = vunpack.c.l.b16 %v954
        %v1245 = vunpack.c.l.b16 %v955
        %v1246 = vunpack.c.l.b16 %v956
        %v1247 = vunpack.c.l.b16 %v957
        %v1248 = vunpack.c.l.b16 %v958
        %v1249 = vunpack.c.l.b16 %v959
        %v1250 = vunpack.c.l.b16 %v960
        %v1251 = vunpack.c.l.b16 %v961
        %v1252 = vunpack.c.l.b16 %v962
        %v1253 = vunpack.c.l.b16 %v963
        %v1254 = vunpack.c.l.b16 %v964
        %v1255 = vunpack.c.l.b16 %v965
        %v1256 = vunpack.c.l.b16 %v966
        %v1257 = vunpack.c.l.b16 %v967
        %v1258 = vunpack.c.l.b16 %v968
        %v1259 = vunpack.c.l.b16 %v969
        %v1260 = vunpack.c.l.b16 %v970
        %v1261 = vunpack.c.l.b16 %v971
        %v1262 = vunpack.c.l.b16 %v972
        %v1263 = vunpack.c.l.b16 %v973
        %v1264 = vunpack.c.l.b16 %v974
        %v1265 = vunpack.c.l.b16 %v975
        %v1266 = vunpack.c.l.b16 %v976
        %v1267 = vunpack.c.l.b16 %v977
        %v1268 = vunpack.c.l.b16 %v978
        %v1269 = vunpack.c.l.b16 %v979
        %v1270 = vunpack.c.l.b16 %v980
        %v1271 = vunpack.c.l.b16 %v981
        %v1272 = vunpack.c.l.b16 %v982
        %v1273 = vunpack.c.l.b16 %v983
        %v1274 = vunpack.c.l.b16 %v984
        %v1275 = vunpack.c.l.b16 %v985
        %v1276 = vunpack.c.l.b16 %v986
        %v1277 = vunpack.c.l.b16 %v987
        %v1278 = vunpack.c.l.b16 %v988
        %v1279 = vunpack.c.l.b16 %v989
        %v1280 = vunpack.c.l.b16 %v990
        %v1281 = vunpack.c.l.b16 %v991
        %v1282 = vunpack.c.l.b16 %v992
        %v1283 = vunpack.c.l.b16 %v993
        %v1284 = vunpack.c.l.b16 %v994
        %v1285 = vunpack.c.l.b16 %v995
        %v1286 = vunpack.c.l.b16 %v996
        %v1287 = vunpack.c.l.b16 %v997
        %v1288 = vunpack.c.l.b16 %v998
        %v1289 = vunpack.c.l.b16 %v999
        %v1290 = vunpack.c.l.b16 %v1000
        %v1291 = vunpack.c.l.b16 %v1001
        %v1292 = vunpack.c.l.b16 %v1002
        %v1293 = vunpack.c.l.b16 %v1003
        %v1294 = vunpack.c.l.b16 %v1004
        %v1295 = vunpack.c.l.b16 %v1005
        %v1296 = vunpack.c.l.b16 %v1006
        %v1297 = vunpack.c.l.b16 %v1007
        %v1298 = vunpack.c.l.b16 %v1008
        %v1299 = vunpack.c.l.b16 %v1009
        %v1300 = vunpack.c.l.b16 %v1010
        %v1301 = vunpack.c.l.b16 %v1011
        %v1302 = vunpack.c.l.b16 %v1012
        %v1303 = vunpack.c.l.b16 %v1013
        %v1304 = vunpack.c.l.b16 %v1014
        %v1305 = vunpack.c.l.b16 %v1015
        %v1306 = vunpack.c.l.b16 %v1016
        %v1307 = vunpack.c.l.b16 %v1017
        %v1308 = vunpack.c.l.b16 %v1018
        %v1309 = vunpack.c.l.b16 %v1019
        %v1310 = vunpack.c.l.b16 %v1020
        %v1311 = vunpack.c.l.b16 %v1021
        %v1312 = vunpack.c.l.b16 %v1022
        %v1313 = vunpack.c.l.b16 %v1023
        %v1314 = vunpack.c.l.b16 %v1024
        %v1315 = vunpack.c.l.b16 %v1025
        %v1316 = vunpack.c.l.b16 %v1026
        %v1317 = vunpack.c.l.b16 %v1027
        %v1318 = vunpack.c.l.b16 %v1028
        %v1319 = vunpack.c.l.b16 %v1029
        %v1320 = vunpack.c.l.b16 %v1030
        %v1321 = vunpack.c.l.b16 %v1031
        %v1322 = vunpack.c.l.b16 %v1032
        %v1323 = vunpack.c.l.b16 %v1033
        %v1324 = vunpack.c.l.b16 %v1034
        %v1325 = vunpack.c.l.b16 %v1035
        %v1326 = vunpack.c.l.b16 %v1036
        %v1327 = vunpack.c.l.b16 %v1037
        %v1328 = vunpack.c.l.b16 %v1038
        %v1329 = vunpack.c.l.b16 %v1039
        %v1330 = vunpack.c.l.b16 %v1040
        %v1331 = vunpack.c.l.b16 %v1041
        %v1332 = vunpack.c.l.b16 %v1042
        %v1333 = vunpack.c.l.b16 %v1043
        %v1334 = vunpack.c.l.b16 %v1044
        %v1335 = vunpack.c.l.b16 %v1045
        %v1336 = vunpack.c.l.b16 %v1046
        %v1337 = vunpack.c.l.b16 %v1047
        %v1338 = vunpack.c.l.b16 %v1048
        %v1339 = vunpack.c.l.b16 %v1049
        %v1340 = vunpack.c.l.b16 %v1050
        %v1341 = vunpack.c.l.b16 %v1051
        %v1342 = vunpack.c.l.b16 %v1052
        %v1343 = vunpack.c.l.b16 %v1053
        %v1344 = vunpack.c.l.b16 %v1054
        %v1345 = vunpack.c.l.b16 %v1055
        %v1346 = vunpack.c.l.b16 %v1056
        %v1347 = vunpack.c.l.b16 %v1057
        %v1348 = vunpack.c.l.b16 %v1058
        %v1349 = vunpack.c.l.b16 %v1059
        %v1350 = vunpack.c.l.b16 %v1060
        %v1351 = vunpack.c.l.b16 %v1061
        %v1352 = vunpack.c.l.b16 %v1062
        %v1353 = vunpack.c.l.b16 %v1063
        %v1354 = vunpack.c.l.b16 %v1064
        %v1355 = vunpack.c.l.b16 %v1065
        %v1356 = vunpack.c.l.b16 %v1066
        %v1357 = vunpack.c.l.b16 %v1067
        %v1358 = vunpack.c.l.b16 %v1068
        %v1359 = vunpack.c.l.b16 %v1069
        %v1360 = vunpack.c.l.b16 %v1070
        %v1361 = vunpack.c.l.b16 %v1071
        %v1362 = vunpack.c.l.b16 %v1072
        %v1363 = vunpack.c.l.b16 %v1073
        %v1364 = vunpack.c.l.b16 %v1074
        %v1365 = vunpack.c.l.b16 %v1075
        %v1366 = vunpack.c.l.b16 %v1076
        %v1367 = vunpack.c.l.b16 %v1077
        %v1368 = vunpack.c.l.b16 %v1078
        %v1369 = vunpack.c.l.b16 %v1079
        %v1370 = vunpack.c.l.b16 %v1080
        %v1371 = vunpack.c.l.b16 %v1081
        %v1372 = vpack.c.b16 %v1229, %v1228
        %v1373 = vpack.c.b16 %v1231, %v1230
        %v1374 = vpack.c.b16 %v1233, %v1232
        %v1375 = vpack.c.b16 %v1235, %v1234
        %v1376 = vpack.c.b16 %v1237, %v1236
        %v1377 = vpack.c.b16 %v1239, %v1238
        %v1378 = vpack.c.b16 %v1241, %v1240
        %v1379 = vpack.c.b16 %v1243, %v1242
        %v1380 = vpack.c.b16 %v1245, %v1244
        %v1381 = vpack.c.b16 %v1247, %v1246
        %v1382 = vpack.c.b16 %v1249, %v1248
        %v1383 = vpack.c.b16 %v1251, %v1250
        %v1384 = vpack.c.b16 %v1253, %v1252
        %v1385 = vpack.c.b16 %v1255, %v1254
        %v1386 = vpack.c.b16 %v1257, %v1256
        %v1387 = vpack.c.b16 %v1259, %v1258
        %v1388 = vpack.c.b16 %v1261, %v1260
        %v1389 = vpack.c.b16 %v1263, %v1262
        %v1390 = vpack.c.b16 %v1265, %v1264
        %v1391 = vpack.c.b16 %v1267, %v1266
        %v1392 = vpack.c.b16 %v1269, %v1268
        %v1393 = vpack.c.b16 %v1271, %v1270
        %v1394 = vpack.c.b16 %v1273, %v1272
        %v1395 = vpack.c.b16 %v1275, %v1274
        %v1396 = vpack.c.b16 %v1277, %v1276
        %v1397 = vpack.c.b16 %v1279, %v1278
        %v1398 = vpack.c.b16 %v1281, %v1280
        %v1399 = vpack.c.b16 %v1283, %v1282
        %v1400 = vpack.c.b16 %v1285, %v1284
        %v1401 = vpack.c.b16 %v1287, %v1286
        %v1402 = vpack.c.b16 %v1289, %v1288
        %v1403 = vpack.c.b16 %v1291, %v1290
        %v1404 = vpack.c.b16 %v1293, %v1292
        %v1405 = vpack.c.b16 %v1295, %v1294
        %v1406 = vpack.c.b16 %v1297, %v1296
        %v1407 = vpack.c.b16 %v1299, %v1298
        %v1408 = vpack.c.b16 %v1301, %v1300
        %v1409 = vpack.c.b16 %v1303, %v1302
        %v1410 = vpack.c.b16 %v1305, %v1304
        %v1411 = vpack.c.b16 %v1307, %v1306
        %v1412 = vpack.c.b16 %v1309, %v1308
        %v1413 = vpack.c.b16 %v1311, %v1310
        %v1414 = vpack.c.b16 %v1313, %v1312
        %v1415 = vpack.c.b16 %v1315, %v1314
        %v1416 = vpack.c.b16 %v1317, %v1316
        %v1417 = vpack.c.b16 %v1319, %v1318
        %v1418 = vpack.c.b16 %v1321, %v1320
        %v1419 = vpack.c.b16 %v1323, %v1322
        %v1420 = vpack.c.b16 %v1325, %v1324
        %v1421 = vpack.c.b16 %v1327, %v1326
        %v1422 = vpack.c.b16 %v1329, %v1328
        %v1423 = vpack.c.b16 %v1331, %v1330
        %v1424 = vpack.c.b16 %v1333, %v1332
        %v1425 = vpack.c.b16 %v1335, %v1334
        %v1426 = vpack.c.b16 %v1337, %v1336
        %v1427 = vpack.c.b16 %v1339, %v1338
        %v1428 = vpack.c.b16 %v1341, %v1340
        %v1429 = vpack.c.b16 %v1343, %v1342
        %v1430 = vpack.c.b16 %v1345, %v1344
        %v1431 = vpack.c.b16 %v1347, %v1346
        %v1432 = vpack.c.b16 %v1349, %v1348
        %v1433 = vpack.c.b16 %v1351, %v1350
        %v1434 = vpack.c.b16 %v1353, %v1352
        %v1435 = vpack.c.b16 %v1355, %v1354
        %v1436 = vpack.c.b16 %v1357, %v1356
        %v1437 = vpack.c.b16 %v1359, %v1358
        %v1438 = vpack.c.b16 %v1361, %v1360
        %v1439 = vpack.c.b16 %v1363, %v1362
        %v1440 = vpack.c.b16 %v1365, %v1364
        %v1441 = vpack.c.b16 %v1367, %v1366
        %v1442 = vpack.c.b16 %v1369, %v1368
        %v1443 = vpack.c.b16 %v1371, %v1370
        %1516 = vmatpush.bf16.msra.mxu0 %v1379
        %1517 = vmatpush.bf16.msra.mxu0 %v1378
        %1518 = vmatpush.bf16.msra.mxu0 %v1377
        %1519 = vmatpush.bf16.msra.mxu0 %v1376
        %1520 = vmatpush.bf16.msra.mxu0 %v1375
        %1521 = vmatpush.bf16.msra.mxu0 %v1374
        %1522 = vmatpush.bf16.msra.mxu0 %v1373
        %1523 = vmatpush.bf16.msra.mxu0 %v1372
        %1524 = vmatmul.bf16.gmra.mxu0 %v532
        %v1525 = vpop.f32.mrf.mxu0
        %v1526 = vadd.f32 %v1083, %v1525
        %v1527 = vpop.f32.mrf.mxu0
        %v1528 = vadd.f32 %v1083, %v1527
        %1529 = vmatmul.bf16.gmra.mxu0 %v533
        %v1530 = vpop.f32.mrf.mxu0
        %v1531 = vadd.f32 %v1083, %v1530
        %v1532 = vpop.f32.mrf.mxu0
        %v1533 = vadd.f32 %v1083, %v1532
        %1534 = vmatmul.bf16.gmra.mxu0 %v534
        %v1535 = vpop.f32.mrf.mxu0
        %v1536 = vadd.f32 %v1083, %v1535
        %v1537 = vpop.f32.mrf.mxu0
        %v1538 = vadd.f32 %v1083, %v1537
        %1539 = vmatmul.bf16.gmra.mxu0 %v535
        %v1540 = vpop.f32.mrf.mxu0
        %v1541 = vadd.f32 %v1083, %v1540
        %v1542 = vpop.f32.mrf.mxu0
        %v1543 = vadd.f32 %v1083, %v1542
        %1544 = vmatmul.bf16.gmra.mxu0 %v536
        %v1545 = vpop.f32.mrf.mxu0
        %v1546 = vadd.f32 %v1083, %v1545
        %v1547 = vpop.f32.mrf.mxu0
        %v1548 = vadd.f32 %v1083, %v1547
        %1549 = vmatmul.bf16.gmra.mxu0 %v537
        %v1550 = vpop.f32.mrf.mxu0
        %v1551 = vadd.f32 %v1083, %v1550
        %v1552 = vpop.f32.mrf.mxu0
        %v1553 = vadd.f32 %v1083, %v1552
        %1554 = vmatmul.bf16.gmra.mxu0 %v538
        %v1555 = vpop.f32.mrf.mxu0
        %v1556 = vadd.f32 %v1083, %v1555
        %v1557 = vpop.f32.mrf.mxu0
        %v1558 = vadd.f32 %v1083, %v1557
        %1559 = vmatmul.bf16.gmra.mxu0 %v539
        %v1560 = vpop.f32.mrf.mxu0
        %v1561 = vadd.f32 %v1083, %v1560
        %v1562 = vpop.f32.mrf.mxu0
        %v1563 = vadd.f32 %v1083, %v1562
        %1564 = vmatmul.bf16.gmra.mxu0 %v540
        %v1565 = vpop.f32.mrf.mxu0
        %v1566 = vadd.f32 %v1083, %v1565
        %v1567 = vpop.f32.mrf.mxu0
        %v1568 = vadd.f32 %v1083, %v1567
        %1569 = vmatmul.bf16.gmra.mxu0 %v541
        %v1570 = vpop.f32.mrf.mxu0
        %v1571 = vadd.f32 %v1083, %v1570
        %v1572 = vpop.f32.mrf.mxu0
        %v1573 = vadd.f32 %v1083, %v1572
        %1574 = vmatmul.bf16.gmra.mxu0 %v542
        %v1575 = vpop.f32.mrf.mxu0
        %v1576 = vadd.f32 %v1083, %v1575
        %v1577 = vpop.f32.mrf.mxu0
        %v1578 = vadd.f32 %v1083, %v1577
        %1579 = vmatmul.bf16.gmra.mxu0 %v543
        %v1580 = vpop.f32.mrf.mxu0
        %v1581 = vadd.f32 %v1083, %v1580
        %v1582 = vpop.f32.mrf.mxu0
        %v1583 = vadd.f32 %v1083, %v1582
        %1584 = vmatmul.bf16.gmra.mxu0 %v544
        %v1585 = vpop.f32.mrf.mxu0
        %v1586 = vadd.f32 %v1083, %v1585
        %v1587 = vpop.f32.mrf.mxu0
        %v1588 = vadd.f32 %v1083, %v1587
        %1589 = vmatmul.bf16.gmra.mxu0 %v545
        %v1590 = vpop.f32.mrf.mxu0
        %v1591 = vadd.f32 %v1083, %v1590
        %v1592 = vpop.f32.mrf.mxu0
        %v1593 = vadd.f32 %v1083, %v1592
        %1594 = vmatmul.bf16.gmra.mxu0 %v546
        %v1595 = vpop.f32.mrf.mxu0
        %v1596 = vadd.f32 %v1083, %v1595
        %v1597 = vpop.f32.mrf.mxu0
        %v1598 = vadd.f32 %v1083, %v1597
        %1599 = vmatmul.bf16.gmra.mxu0 %v547
        %v1600 = vpop.f32.mrf.mxu0
        %v1601 = vadd.f32 %v1083, %v1600
        %v1602 = vpop.f32.mrf.mxu0
        %v1603 = vadd.f32 %v1083, %v1602
        %1604 = vdwg.mxu0
        %1605 = vmatpush.bf16.msra.mxu0 %v1387
        %1606 = vmatpush.bf16.msra.mxu0 %v1386
        %1607 = vmatpush.bf16.msra.mxu0 %v1385
        %1608 = vmatpush.bf16.msra.mxu0 %v1384
        %1609 = vmatpush.bf16.msra.mxu0 %v1383
        %1610 = vmatpush.bf16.msra.mxu0 %v1382
        %1611 = vmatpush.bf16.msra.mxu0 %v1381
        %1612 = vmatpush.bf16.msra.mxu0 %v1380
        %1613 = vmatmul.bf16.gmra.mxu0 %v624
        %v1614 = vpop.f32.mrf.mxu0
        %v1615 = vadd.f32 %v1526, %v1614
        %v1616 = vpop.f32.mrf.mxu0
        %v1617 = vadd.f32 %v1528, %v1616
        %1618 = vmatmul.bf16.gmra.mxu0 %v636
        %v1619 = vpop.f32.mrf.mxu0
        %v1620 = vadd.f32 %v1531, %v1619
        %v1621 = vpop.f32.mrf.mxu0
        %v1622 = vadd.f32 %v1533, %v1621
        %1623 = vmatmul.bf16.gmra.mxu0 %v648
        %v1624 = vpop.f32.mrf.mxu0
        %v1625 = vadd.f32 %v1536, %v1624
        %v1626 = vpop.f32.mrf.mxu0
        %v1627 = vadd.f32 %v1538, %v1626
        %1628 = vmatmul.bf16.gmra.mxu0 %v660
        %v1629 = vpop.f32.mrf.mxu0
        %v1630 = vadd.f32 %v1541, %v1629
        %v1631 = vpop.f32.mrf.mxu0
        %v1632 = vadd.f32 %v1543, %v1631
        %1633 = vmatmul.bf16.gmra.mxu0 %v672
        %v1634 = vpop.f32.mrf.mxu0
        %v1635 = vadd.f32 %v1546, %v1634
        %v1636 = vpop.f32.mrf.mxu0
        %v1637 = vadd.f32 %v1548, %v1636
        %1638 = vmatmul.bf16.gmra.mxu0 %v684
        %v1639 = vpop.f32.mrf.mxu0
        %v1640 = vadd.f32 %v1551, %v1639
        %v1641 = vpop.f32.mrf.mxu0
        %v1642 = vadd.f32 %v1553, %v1641
        %1643 = vmatmul.bf16.gmra.mxu0 %v696
        %v1644 = vpop.f32.mrf.mxu0
        %v1645 = vadd.f32 %v1556, %v1644
        %v1646 = vpop.f32.mrf.mxu0
        %v1647 = vadd.f32 %v1558, %v1646
        %1648 = vmatmul.bf16.gmra.mxu0 %v708
        %v1649 = vpop.f32.mrf.mxu0
        %v1650 = vadd.f32 %v1561, %v1649
        %v1651 = vpop.f32.mrf.mxu0
        %v1652 = vadd.f32 %v1563, %v1651
        %1653 = vmatmul.bf16.gmra.mxu0 %v720
        %v1654 = vpop.f32.mrf.mxu0
        %v1655 = vadd.f32 %v1566, %v1654
        %v1656 = vpop.f32.mrf.mxu0
        %v1657 = vadd.f32 %v1568, %v1656
        %1658 = vmatmul.bf16.gmra.mxu0 %v732
        %v1659 = vpop.f32.mrf.mxu0
        %v1660 = vadd.f32 %v1571, %v1659
        %v1661 = vpop.f32.mrf.mxu0
        %v1662 = vadd.f32 %v1573, %v1661
        %1663 = vmatmul.bf16.gmra.mxu0 %v744
        %v1664 = vpop.f32.mrf.mxu0
        %v1665 = vadd.f32 %v1576, %v1664
        %v1666 = vpop.f32.mrf.mxu0
        %v1667 = vadd.f32 %v1578, %v1666
        %1668 = vmatmul.bf16.gmra.mxu0 %v756
        %v1669 = vpop.f32.mrf.mxu0
        %v1670 = vadd.f32 %v1581, %v1669
        %v1671 = vpop.f32.mrf.mxu0
        %v1672 = vadd.f32 %v1583, %v1671
        %1673 = vmatmul.bf16.gmra.mxu0 %v768
        %v1674 = vpop.f32.mrf.mxu0
        %v1675 = vadd.f32 %v1586, %v1674
        %v1676 = vpop.f32.mrf.mxu0
        %v1677 = vadd.f32 %v1588, %v1676
        %1678 = vmatmul.bf16.gmra.mxu0 %v780
        %v1679 = vpop.f32.mrf.mxu0
        %v1680 = vadd.f32 %v1591, %v1679
        %v1681 = vpop.f32.mrf.mxu0
        %v1682 = vadd.f32 %v1593, %v1681
        %1683 = vmatmul.bf16.gmra.mxu0 %v792
        %v1684 = vpop.f32.mrf.mxu0
        %v1685 = vadd.f32 %v1596, %v1684
        %v1686 = vpop.f32.mrf.mxu0
        %v1687 = vadd.f32 %v1598, %v1686
        %1688 = vmatmul.bf16.gmra.mxu0 %v804
        %v1689 = vpop.f32.mrf.mxu0
        %v1690 = vadd.f32 %v1601, %v1689
        %v1691 = vpop.f32.mrf.mxu0
        %v1692 = vadd.f32 %v1603, %v1691
        %1693 = vdwg.mxu0
        %1694 = vmatpush.bf16.msra.mxu0 %v1395
        %1695 = vmatpush.bf16.msra.mxu0 %v1394
        %1696 = vmatpush.bf16.msra.mxu0 %v1393
        %1697 = vmatpush.bf16.msra.mxu0 %v1392
        %1698 = vmatpush.bf16.msra.mxu0 %v1391
        %1699 = vmatpush.bf16.msra.mxu0 %v1390
        %1700 = vmatpush.bf16.msra.mxu0 %v1389
        %1701 = vmatpush.bf16.msra.mxu0 %v1388
        %1702 = vmatmul.bf16.gmra.mxu0 %v824
        %v1703 = vpop.f32.mrf.mxu0
        %v1704 = vadd.f32 %v1615, %v1703
        %v1705 = vpop.f32.mrf.mxu0
        %v1706 = vadd.f32 %v1617, %v1705
        %1707 = vmatmul.bf16.gmra.mxu0 %v827
        %v1708 = vpop.f32.mrf.mxu0
        %v1709 = vadd.f32 %v1620, %v1708
        %v1710 = vpop.f32.mrf.mxu0
        %v1711 = vadd.f32 %v1622, %v1710
        %1712 = vmatmul.bf16.gmra.mxu0 %v830
        %v1713 = vpop.f32.mrf.mxu0
        %v1714 = vadd.f32 %v1625, %v1713
        %v1715 = vpop.f32.mrf.mxu0
        %v1716 = vadd.f32 %v1627, %v1715
        %1717 = vmatmul.bf16.gmra.mxu0 %v833
        %v1718 = vpop.f32.mrf.mxu0
        %v1719 = vadd.f32 %v1630, %v1718
        %v1720 = vpop.f32.mrf.mxu0
        %v1721 = vadd.f32 %v1632, %v1720
        %1722 = vmatmul.bf16.gmra.mxu0 %v836
        %v1723 = vpop.f32.mrf.mxu0
        %v1724 = vadd.f32 %v1635, %v1723
        %v1725 = vpop.f32.mrf.mxu0
        %v1726 = vadd.f32 %v1637, %v1725
        %1727 = vmatmul.bf16.gmra.mxu0 %v839
        %v1728 = vpop.f32.mrf.mxu0
        %v1729 = vadd.f32 %v1640, %v1728
        %v1730 = vpop.f32.mrf.mxu0
        %v1731 = vadd.f32 %v1642, %v1730
        %1732 = vmatmul.bf16.gmra.mxu0 %v842
        %v1733 = vpop.f32.mrf.mxu0
        %v1734 = vadd.f32 %v1645, %v1733
        %v1735 = vpop.f32.mrf.mxu0
        %v1736 = vadd.f32 %v1647, %v1735
        %1737 = vmatmul.bf16.gmra.mxu0 %v845
        %v1738 = vpop.f32.mrf.mxu0
        %v1739 = vadd.f32 %v1650, %v1738
        %v1740 = vpop.f32.mrf.mxu0
        %v1741 = vadd.f32 %v1652, %v1740
        %1742 = vmatmul.bf16.gmra.mxu0 %v848
        %v1743 = vpop.f32.mrf.mxu0
        %v1744 = vadd.f32 %v1655, %v1743
        %v1745 = vpop.f32.mrf.mxu0
        %v1746 = vadd.f32 %v1657, %v1745
        %1747 = vmatmul.bf16.gmra.mxu0 %v851
        %v1748 = vpop.f32.mrf.mxu0
        %v1749 = vadd.f32 %v1660, %v1748
        %v1750 = vpop.f32.mrf.mxu0
        %v1751 = vadd.f32 %v1662, %v1750
        %1752 = vmatmul.bf16.gmra.mxu0 %v854
        %v1753 = vpop.f32.mrf.mxu0
        %v1754 = vadd.f32 %v1665, %v1753
        %v1755 = vpop.f32.mrf.mxu0
        %v1756 = vadd.f32 %v1667, %v1755
        %1757 = vmatmul.bf16.gmra.mxu0 %v857
        %v1758 = vpop.f32.mrf.mxu0
        %v1759 = vadd.f32 %v1670, %v1758
        %v1760 = vpop.f32.mrf.mxu0
        %v1761 = vadd.f32 %v1672, %v1760
        %1762 = vmatmul.bf16.gmra.mxu0 %v860
        %v1763 = vpop.f32.mrf.mxu0
        %v1764 = vadd.f32 %v1675, %v1763
        %v1765 = vpop.f32.mrf.mxu0
        %v1766 = vadd.f32 %v1677, %v1765
        %1767 = vmatmul.bf16.gmra.mxu0 %v863
        %v1768 = vpop.f32.mrf.mxu0
        %v1769 = vadd.f32 %v1680, %v1768
        %v1770 = vpop.f32.mrf.mxu0
        %v1771 = vadd.f32 %v1682, %v1770
        %1772 = vmatmul.bf16.gmra.mxu0 %v866
        %v1773 = vpop.f32.mrf.mxu0
        %v1774 = vadd.f32 %v1685, %v1773
        %v1775 = vpop.f32.mrf.mxu0
        %v1776 = vadd.f32 %v1687, %v1775
        %1777 = vmatmul.bf16.gmra.mxu0 %v869
        %v1778 = vpop.f32.mrf.mxu0
        %v1779 = vadd.f32 %v1690, %v1778
        %v1780 = vpop.f32.mrf.mxu0
        %v1781 = vadd.f32 %v1692, %v1780
        %1782 = vdwg.mxu0
        %1783 = vmatpush.bf16.msra.mxu0 %v1403
        %1784 = vmatpush.bf16.msra.mxu0 %v1402
        %1785 = vmatpush.bf16.msra.mxu0 %v1401
        %1786 = vmatpush.bf16.msra.mxu0 %v1400
        %1787 = vmatpush.bf16.msra.mxu0 %v1399
        %1788 = vmatpush.bf16.msra.mxu0 %v1398
        %1789 = vmatpush.bf16.msra.mxu0 %v1397
        %1790 = vmatpush.bf16.msra.mxu0 %v1396
        %1791 = vmatmul.bf16.gmra.mxu0 %v533
        %v1792 = vpop.f32.mrf.mxu0
        %v1793 = vadd.f32 %v1704, %v1792
        %v1794 = vpop.f32.mrf.mxu0
        %v1795 = vadd.f32 %v1706, %v1794
        %1796 = vmatmul.bf16.gmra.mxu0 %v534
        %v1797 = vpop.f32.mrf.mxu0
        %v1798 = vadd.f32 %v1709, %v1797
        %v1799 = vpop.f32.mrf.mxu0
        %v1800 = vadd.f32 %v1711, %v1799
        %1801 = vmatmul.bf16.gmra.mxu0 %v535
        %v1802 = vpop.f32.mrf.mxu0
        %v1803 = vadd.f32 %v1714, %v1802
        %v1804 = vpop.f32.mrf.mxu0
        %v1805 = vadd.f32 %v1716, %v1804
        %1806 = vmatmul.bf16.gmra.mxu0 %v536
        %v1807 = vpop.f32.mrf.mxu0
        %v1808 = vadd.f32 %v1719, %v1807
        %v1809 = vpop.f32.mrf.mxu0
        %v1810 = vadd.f32 %v1721, %v1809
        %1811 = vmatmul.bf16.gmra.mxu0 %v537
        %v1812 = vpop.f32.mrf.mxu0
        %v1813 = vadd.f32 %v1724, %v1812
        %v1814 = vpop.f32.mrf.mxu0
        %v1815 = vadd.f32 %v1726, %v1814
        %1816 = vmatmul.bf16.gmra.mxu0 %v538
        %v1817 = vpop.f32.mrf.mxu0
        %v1818 = vadd.f32 %v1729, %v1817
        %v1819 = vpop.f32.mrf.mxu0
        %v1820 = vadd.f32 %v1731, %v1819
        %1821 = vmatmul.bf16.gmra.mxu0 %v539
        %v1822 = vpop.f32.mrf.mxu0
        %v1823 = vadd.f32 %v1734, %v1822
        %v1824 = vpop.f32.mrf.mxu0
        %v1825 = vadd.f32 %v1736, %v1824
        %1826 = vmatmul.bf16.gmra.mxu0 %v540
        %v1827 = vpop.f32.mrf.mxu0
        %v1828 = vadd.f32 %v1739, %v1827
        %v1829 = vpop.f32.mrf.mxu0
        %v1830 = vadd.f32 %v1741, %v1829
        %1831 = vmatmul.bf16.gmra.mxu0 %v541
        %v1832 = vpop.f32.mrf.mxu0
        %v1833 = vadd.f32 %v1744, %v1832
        %v1834 = vpop.f32.mrf.mxu0
        %v1835 = vadd.f32 %v1746, %v1834
        %1836 = vmatmul.bf16.gmra.mxu0 %v542
        %v1837 = vpop.f32.mrf.mxu0
        %v1838 = vadd.f32 %v1749, %v1837
        %v1839 = vpop.f32.mrf.mxu0
        %v1840 = vadd.f32 %v1751, %v1839
        %1841 = vmatmul.bf16.gmra.mxu0 %v543
        %v1842 = vpop.f32.mrf.mxu0
        %v1843 = vadd.f32 %v1754, %v1842
        %v1844 = vpop.f32.mrf.mxu0
        %v1845 = vadd.f32 %v1756, %v1844
        %1846 = vmatmul.bf16.gmra.mxu0 %v544
        %v1847 = vpop.f32.mrf.mxu0
        %v1848 = vadd.f32 %v1759, %v1847
        %v1849 = vpop.f32.mrf.mxu0
        %v1850 = vadd.f32 %v1761, %v1849
        %1851 = vmatmul.bf16.gmra.mxu0 %v545
        %v1852 = vpop.f32.mrf.mxu0
        %v1853 = vadd.f32 %v1764, %v1852
        %v1854 = vpop.f32.mrf.mxu0
        %v1855 = vadd.f32 %v1766, %v1854
        %1856 = vmatmul.bf16.gmra.mxu0 %v546
        %v1857 = vpop.f32.mrf.mxu0
        %v1858 = vadd.f32 %v1769, %v1857
        %v1859 = vpop.f32.mrf.mxu0
        %v1860 = vadd.f32 %v1771, %v1859
        %1861 = vmatmul.bf16.gmra.mxu0 %v547
        %v1862 = vpop.f32.mrf.mxu0
        %v1863 = vadd.f32 %v1774, %v1862
        %v1864 = vpop.f32.mrf.mxu0
        %v1865 = vadd.f32 %v1776, %v1864
        %1866 = vmatmul.bf16.gmra.mxu0 %v890
        %v1867 = vpop.f32.mrf.mxu0
        %v1868 = vadd.f32 %v1779, %v1867
        %v1869 = vpop.f32.mrf.mxu0
        %v1870 = vadd.f32 %v1781, %v1869
        %1871 = vdwg.mxu0
        %1872 = vmatpush.bf16.msra.mxu0 %v1411
        %1873 = vmatpush.bf16.msra.mxu0 %v1410
        %1874 = vmatpush.bf16.msra.mxu0 %v1409
        %1875 = vmatpush.bf16.msra.mxu0 %v1408
        %1876 = vmatpush.bf16.msra.mxu0 %v1407
        %1877 = vmatpush.bf16.msra.mxu0 %v1406
        %1878 = vmatpush.bf16.msra.mxu0 %v1405
        %1879 = vmatpush.bf16.msra.mxu0 %v1404
        %1880 = vmatmul.bf16.gmra.mxu0 %v636
        %v1881 = vpop.f32.mrf.mxu0
        %v1882 = vadd.f32 %v1793, %v1881
        %v1883 = vpop.f32.mrf.mxu0
        %v1884 = vadd.f32 %v1795, %v1883
        %1885 = vmatmul.bf16.gmra.mxu0 %v648
        %v1886 = vpop.f32.mrf.mxu0
        %v1887 = vadd.f32 %v1798, %v1886
        %v1888 = vpop.f32.mrf.mxu0
        %v1889 = vadd.f32 %v1800, %v1888
        %1890 = vmatmul.bf16.gmra.mxu0 %v660
        %v1891 = vpop.f32.mrf.mxu0
        %v1892 = vadd.f32 %v1803, %v1891
        %v1893 = vpop.f32.mrf.mxu0
        %v1894 = vadd.f32 %v1805, %v1893
        %1895 = vmatmul.bf16.gmra.mxu0 %v672
        %v1896 = vpop.f32.mrf.mxu0
        %v1897 = vadd.f32 %v1808, %v1896
        %v1898 = vpop.f32.mrf.mxu0
        %v1899 = vadd.f32 %v1810, %v1898
        %1900 = vmatmul.bf16.gmra.mxu0 %v684
        %v1901 = vpop.f32.mrf.mxu0
        %v1902 = vadd.f32 %v1813, %v1901
        %v1903 = vpop.f32.mrf.mxu0
        %v1904 = vadd.f32 %v1815, %v1903
        %1905 = vmatmul.bf16.gmra.mxu0 %v696
        %v1906 = vpop.f32.mrf.mxu0
        %v1907 = vadd.f32 %v1818, %v1906
        %v1908 = vpop.f32.mrf.mxu0
        %v1909 = vadd.f32 %v1820, %v1908
        %1910 = vmatmul.bf16.gmra.mxu0 %v708
        %v1911 = vpop.f32.mrf.mxu0
        %v1912 = vadd.f32 %v1823, %v1911
        %v1913 = vpop.f32.mrf.mxu0
        %v1914 = vadd.f32 %v1825, %v1913
        %1915 = vmatmul.bf16.gmra.mxu0 %v720
        %v1916 = vpop.f32.mrf.mxu0
        %v1917 = vadd.f32 %v1828, %v1916
        %v1918 = vpop.f32.mrf.mxu0
        %v1919 = vadd.f32 %v1830, %v1918
        %1920 = vmatmul.bf16.gmra.mxu0 %v732
        %v1921 = vpop.f32.mrf.mxu0
        %v1922 = vadd.f32 %v1833, %v1921
        %v1923 = vpop.f32.mrf.mxu0
        %v1924 = vadd.f32 %v1835, %v1923
        %1925 = vmatmul.bf16.gmra.mxu0 %v744
        %v1926 = vpop.f32.mrf.mxu0
        %v1927 = vadd.f32 %v1838, %v1926
        %v1928 = vpop.f32.mrf.mxu0
        %v1929 = vadd.f32 %v1840, %v1928
        %1930 = vmatmul.bf16.gmra.mxu0 %v756
        %v1931 = vpop.f32.mrf.mxu0
        %v1932 = vadd.f32 %v1843, %v1931
        %v1933 = vpop.f32.mrf.mxu0
        %v1934 = vadd.f32 %v1845, %v1933
        %1935 = vmatmul.bf16.gmra.mxu0 %v768
        %v1936 = vpop.f32.mrf.mxu0
        %v1937 = vadd.f32 %v1848, %v1936
        %v1938 = vpop.f32.mrf.mxu0
        %v1939 = vadd.f32 %v1850, %v1938
        %1940 = vmatmul.bf16.gmra.mxu0 %v780
        %v1941 = vpop.f32.mrf.mxu0
        %v1942 = vadd.f32 %v1853, %v1941
        %v1943 = vpop.f32.mrf.mxu0
        %v1944 = vadd.f32 %v1855, %v1943
        %1945 = vmatmul.bf16.gmra.mxu0 %v792
        %v1946 = vpop.f32.mrf.mxu0
        %v1947 = vadd.f32 %v1858, %v1946
        %v1948 = vpop.f32.mrf.mxu0
        %v1949 = vadd.f32 %v1860, %v1948
        %1950 = vmatmul.bf16.gmra.mxu0 %v804
        %v1951 = vpop.f32.mrf.mxu0
        %v1952 = vadd.f32 %v1863, %v1951
        %v1953 = vpop.f32.mrf.mxu0
        %v1954 = vadd.f32 %v1865, %v1953
        %1955 = vmatmul.bf16.gmra.mxu0 %v906
        %v1956 = vpop.f32.mrf.mxu0
        %v1957 = vadd.f32 %v1868, %v1956
        %v1958 = vpop.f32.mrf.mxu0
        %v1959 = vadd.f32 %v1870, %v1958
        %1960 = vdwg.mxu0
        %1961 = vmatpush.bf16.msra.mxu0 %v1419
        %1962 = vmatpush.bf16.msra.mxu0 %v1418
        %1963 = vmatpush.bf16.msra.mxu0 %v1417
        %1964 = vmatpush.bf16.msra.mxu0 %v1416
        %1965 = vmatpush.bf16.msra.mxu0 %v1415
        %1966 = vmatpush.bf16.msra.mxu0 %v1414
        %1967 = vmatpush.bf16.msra.mxu0 %v1413
        %1968 = vmatpush.bf16.msra.mxu0 %v1412
        %1969 = vmatmul.bf16.gmra.mxu0 %v827
        %v1970 = vpop.f32.mrf.mxu0
        %v1971 = vadd.f32 %v1882, %v1970
        %v1972 = vpop.f32.mrf.mxu0
        %v1973 = vadd.f32 %v1884, %v1972
        %1974 = vmatmul.bf16.gmra.mxu0 %v830
        %v1975 = vpop.f32.mrf.mxu0
        %v1976 = vadd.f32 %v1887, %v1975
        %v1977 = vpop.f32.mrf.mxu0
        %v1978 = vadd.f32 %v1889, %v1977
        %1979 = vmatmul.bf16.gmra.mxu0 %v833
        %v1980 = vpop.f32.mrf.mxu0
        %v1981 = vadd.f32 %v1892, %v1980
        %v1982 = vpop.f32.mrf.mxu0
        %v1983 = vadd.f32 %v1894, %v1982
        %1984 = vmatmul.bf16.gmra.mxu0 %v836
        %v1985 = vpop.f32.mrf.mxu0
        %v1986 = vadd.f32 %v1897, %v1985
        %v1987 = vpop.f32.mrf.mxu0
        %v1988 = vadd.f32 %v1899, %v1987
        %1989 = vmatmul.bf16.gmra.mxu0 %v839
        %v1990 = vpop.f32.mrf.mxu0
        %v1991 = vadd.f32 %v1902, %v1990
        %v1992 = vpop.f32.mrf.mxu0
        %v1993 = vadd.f32 %v1904, %v1992
        %1994 = vmatmul.bf16.gmra.mxu0 %v842
        %v1995 = vpop.f32.mrf.mxu0
        %v1996 = vadd.f32 %v1907, %v1995
        %v1997 = vpop.f32.mrf.mxu0
        %v1998 = vadd.f32 %v1909, %v1997
        %1999 = vmatmul.bf16.gmra.mxu0 %v845
        %v2000 = vpop.f32.mrf.mxu0
        %v2001 = vadd.f32 %v1912, %v2000
        %v2002 = vpop.f32.mrf.mxu0
        %v2003 = vadd.f32 %v1914, %v2002
        %2004 = vmatmul.bf16.gmra.mxu0 %v848
        %v2005 = vpop.f32.mrf.mxu0
        %v2006 = vadd.f32 %v1917, %v2005
        %v2007 = vpop.f32.mrf.mxu0
        %v2008 = vadd.f32 %v1919, %v2007
        %2009 = vmatmul.bf16.gmra.mxu0 %v851
        %v2010 = vpop.f32.mrf.mxu0
        %v2011 = vadd.f32 %v1922, %v2010
        %v2012 = vpop.f32.mrf.mxu0
        %v2013 = vadd.f32 %v1924, %v2012
        %2014 = vmatmul.bf16.gmra.mxu0 %v854
        %v2015 = vpop.f32.mrf.mxu0
        %v2016 = vadd.f32 %v1927, %v2015
        %v2017 = vpop.f32.mrf.mxu0
        %v2018 = vadd.f32 %v1929, %v2017
        %2019 = vmatmul.bf16.gmra.mxu0 %v857
        %v2020 = vpop.f32.mrf.mxu0
        %v2021 = vadd.f32 %v1932, %v2020
        %v2022 = vpop.f32.mrf.mxu0
        %v2023 = vadd.f32 %v1934, %v2022
        %2024 = vmatmul.bf16.gmra.mxu0 %v860
        %v2025 = vpop.f32.mrf.mxu0
        %v2026 = vadd.f32 %v1937, %v2025
        %v2027 = vpop.f32.mrf.mxu0
        %v2028 = vadd.f32 %v1939, %v2027
        %2029 = vmatmul.bf16.gmra.mxu0 %v863
        %v2030 = vpop.f32.mrf.mxu0
        %v2031 = vadd.f32 %v1942, %v2030
        %v2032 = vpop.f32.mrf.mxu0
        %v2033 = vadd.f32 %v1944, %v2032
        %2034 = vmatmul.bf16.gmra.mxu0 %v866
        %v2035 = vpop.f32.mrf.mxu0
        %v2036 = vadd.f32 %v1947, %v2035
        %v2037 = vpop.f32.mrf.mxu0
        %v2038 = vadd.f32 %v1949, %v2037
        %2039 = vmatmul.bf16.gmra.mxu0 %v869
        %v2040 = vpop.f32.mrf.mxu0
        %v2041 = vadd.f32 %v1952, %v2040
        %v2042 = vpop.f32.mrf.mxu0
        %v2043 = vadd.f32 %v1954, %v2042
        %2044 = vmatmul.bf16.gmra.mxu0 %v910
        %v2045 = vpop.f32.mrf.mxu0
        %v2046 = vadd.f32 %v1957, %v2045
        %v2047 = vpop.f32.mrf.mxu0
        %v2048 = vadd.f32 %v1959, %v2047
        %2049 = vdwg.mxu0
        %2050 = vmatpush.bf16.msra.mxu0 %v1427
        %2051 = vmatpush.bf16.msra.mxu0 %v1426
        %2052 = vmatpush.bf16.msra.mxu0 %v1425
        %2053 = vmatpush.bf16.msra.mxu0 %v1424
        %2054 = vmatpush.bf16.msra.mxu0 %v1423
        %2055 = vmatpush.bf16.msra.mxu0 %v1422
        %2056 = vmatpush.bf16.msra.mxu0 %v1421
        %2057 = vmatpush.bf16.msra.mxu0 %v1420
        %2058 = vmatmul.bf16.gmra.mxu0 %v534
        %v2059 = vpop.f32.mrf.mxu0
        %v2060 = vadd.f32 %v1971, %v2059
        %v2061 = vpop.f32.mrf.mxu0
        %v2062 = vadd.f32 %v1973, %v2061
        %2063 = vmatmul.bf16.gmra.mxu0 %v535
        %v2064 = vpop.f32.mrf.mxu0
        %v2065 = vadd.f32 %v1976, %v2064
        %v2066 = vpop.f32.mrf.mxu0
        %v2067 = vadd.f32 %v1978, %v2066
        %2068 = vmatmul.bf16.gmra.mxu0 %v536
        %v2069 = vpop.f32.mrf.mxu0
        %v2070 = vadd.f32 %v1981, %v2069
        %v2071 = vpop.f32.mrf.mxu0
        %v2072 = vadd.f32 %v1983, %v2071
        %2073 = vmatmul.bf16.gmra.mxu0 %v537
        %v2074 = vpop.f32.mrf.mxu0
        %v2075 = vadd.f32 %v1986, %v2074
        %v2076 = vpop.f32.mrf.mxu0
        %v2077 = vadd.f32 %v1988, %v2076
        %2078 = vmatmul.bf16.gmra.mxu0 %v538
        %v2079 = vpop.f32.mrf.mxu0
        %v2080 = vadd.f32 %v1991, %v2079
        %v2081 = vpop.f32.mrf.mxu0
        %v2082 = vadd.f32 %v1993, %v2081
        %2083 = vmatmul.bf16.gmra.mxu0 %v539
        %v2084 = vpop.f32.mrf.mxu0
        %v2085 = vadd.f32 %v1996, %v2084
        %v2086 = vpop.f32.mrf.mxu0
        %v2087 = vadd.f32 %v1998, %v2086
        %2088 = vmatmul.bf16.gmra.mxu0 %v540
        %v2089 = vpop.f32.mrf.mxu0
        %v2090 = vadd.f32 %v2001, %v2089
        %v2091 = vpop.f32.mrf.mxu0
        %v2092 = vadd.f32 %v2003, %v2091
        %2093 = vmatmul.bf16.gmra.mxu0 %v541
        %v2094 = vpop.f32.mrf.mxu0
        %v2095 = vadd.f32 %v2006, %v2094
        %v2096 = vpop.f32.mrf.mxu0
        %v2097 = vadd.f32 %v2008, %v2096
        %2098 = vmatmul.bf16.gmra.mxu0 %v542
        %v2099 = vpop.f32.mrf.mxu0
        %v2100 = vadd.f32 %v2011, %v2099
        %v2101 = vpop.f32.mrf.mxu0
        %v2102 = vadd.f32 %v2013, %v2101
        %2103 = vmatmul.bf16.gmra.mxu0 %v543
        %v2104 = vpop.f32.mrf.mxu0
        %v2105 = vadd.f32 %v2016, %v2104
        %v2106 = vpop.f32.mrf.mxu0
        %v2107 = vadd.f32 %v2018, %v2106
        %2108 = vmatmul.bf16.gmra.mxu0 %v544
        %v2109 = vpop.f32.mrf.mxu0
        %v2110 = vadd.f32 %v2021, %v2109
        %v2111 = vpop.f32.mrf.mxu0
        %v2112 = vadd.f32 %v2023, %v2111
        %2113 = vmatmul.bf16.gmra.mxu0 %v545
        %v2114 = vpop.f32.mrf.mxu0
        %v2115 = vadd.f32 %v2026, %v2114
        %v2116 = vpop.f32.mrf.mxu0
        %v2117 = vadd.f32 %v2028, %v2116
        %2118 = vmatmul.bf16.gmra.mxu0 %v546
        %v2119 = vpop.f32.mrf.mxu0
        %v2120 = vadd.f32 %v2031, %v2119
        %v2121 = vpop.f32.mrf.mxu0
        %v2122 = vadd.f32 %v2033, %v2121
        %2123 = vmatmul.bf16.gmra.mxu0 %v547
        %v2124 = vpop.f32.mrf.mxu0
        %v2125 = vadd.f32 %v2036, %v2124
        %v2126 = vpop.f32.mrf.mxu0
        %v2127 = vadd.f32 %v2038, %v2126
        %2128 = vmatmul.bf16.gmra.mxu0 %v890
        %v2129 = vpop.f32.mrf.mxu0
        %v2130 = vadd.f32 %v2041, %v2129
        %v2131 = vpop.f32.mrf.mxu0
        %v2132 = vadd.f32 %v2043, %v2131
        %2133 = vmatmul.bf16.gmra.mxu0 %v916
        %v2134 = vpop.f32.mrf.mxu0
        %v2135 = vadd.f32 %v2046, %v2134
        %v2136 = vpop.f32.mrf.mxu0
        %v2137 = vadd.f32 %v2048, %v2136
        %2138 = vdwg.mxu0
        %2139 = vmatpush.bf16.msra.mxu0 %v1435
        %2140 = vmatpush.bf16.msra.mxu0 %v1434
        %2141 = vmatpush.bf16.msra.mxu0 %v1433
        %2142 = vmatpush.bf16.msra.mxu0 %v1432
        %2143 = vmatpush.bf16.msra.mxu0 %v1431
        %2144 = vmatpush.bf16.msra.mxu0 %v1430
        %2145 = vmatpush.bf16.msra.mxu0 %v1429
        %2146 = vmatpush.bf16.msra.mxu0 %v1428
        %2147 = vmatmul.bf16.gmra.mxu0 %v648
        %v2148 = vpop.f32.mrf.mxu0
        %v2149 = vadd.f32 %v2060, %v2148
        %v2150 = vpop.f32.mrf.mxu0
        %v2151 = vadd.f32 %v2062, %v2150
        %2152 = vmatmul.bf16.gmra.mxu0 %v660
        %v2153 = vpop.f32.mrf.mxu0
        %v2154 = vadd.f32 %v2065, %v2153
        %v2155 = vpop.f32.mrf.mxu0
        %v2156 = vadd.f32 %v2067, %v2155
        %2157 = vmatmul.bf16.gmra.mxu0 %v672
        %v2158 = vpop.f32.mrf.mxu0
        %v2159 = vadd.f32 %v2070, %v2158
        %v2160 = vpop.f32.mrf.mxu0
        %v2161 = vadd.f32 %v2072, %v2160
        %2162 = vmatmul.bf16.gmra.mxu0 %v684
        %v2163 = vpop.f32.mrf.mxu0
        %v2164 = vadd.f32 %v2075, %v2163
        %v2165 = vpop.f32.mrf.mxu0
        %v2166 = vadd.f32 %v2077, %v2165
        %2167 = vmatmul.bf16.gmra.mxu0 %v696
        %v2168 = vpop.f32.mrf.mxu0
        %v2169 = vadd.f32 %v2080, %v2168
        %v2170 = vpop.f32.mrf.mxu0
        %v2171 = vadd.f32 %v2082, %v2170
        %2172 = vmatmul.bf16.gmra.mxu0 %v708
        %v2173 = vpop.f32.mrf.mxu0
        %v2174 = vadd.f32 %v2085, %v2173
        %v2175 = vpop.f32.mrf.mxu0
        %v2176 = vadd.f32 %v2087, %v2175
        %2177 = vmatmul.bf16.gmra.mxu0 %v720
        %v2178 = vpop.f32.mrf.mxu0
        %v2179 = vadd.f32 %v2090, %v2178
        %v2180 = vpop.f32.mrf.mxu0
        %v2181 = vadd.f32 %v2092, %v2180
        %2182 = vmatmul.bf16.gmra.mxu0 %v732
        %v2183 = vpop.f32.mrf.mxu0
        %v2184 = vadd.f32 %v2095, %v2183
        %v2185 = vpop.f32.mrf.mxu0
        %v2186 = vadd.f32 %v2097, %v2185
        %2187 = vmatmul.bf16.gmra.mxu0 %v744
        %v2188 = vpop.f32.mrf.mxu0
        %v2189 = vadd.f32 %v2100, %v2188
        %v2190 = vpop.f32.mrf.mxu0
        %v2191 = vadd.f32 %v2102, %v2190
        %2192 = vmatmul.bf16.gmra.mxu0 %v756
        %v2193 = vpop.f32.mrf.mxu0
        %v2194 = vadd.f32 %v2105, %v2193
        %v2195 = vpop.f32.mrf.mxu0
        %v2196 = vadd.f32 %v2107, %v2195
        %2197 = vmatmul.bf16.gmra.mxu0 %v768
        %v2198 = vpop.f32.mrf.mxu0
        %v2199 = vadd.f32 %v2110, %v2198
        %v2200 = vpop.f32.mrf.mxu0
        %v2201 = vadd.f32 %v2112, %v2200
        %2202 = vmatmul.bf16.gmra.mxu0 %v780
        %v2203 = vpop.f32.mrf.mxu0
        %v2204 = vadd.f32 %v2115, %v2203
        %v2205 = vpop.f32.mrf.mxu0
        %v2206 = vadd.f32 %v2117, %v2205
        %2207 = vmatmul.bf16.gmra.mxu0 %v792
        %v2208 = vpop.f32.mrf.mxu0
        %v2209 = vadd.f32 %v2120, %v2208
        %v2210 = vpop.f32.mrf.mxu0
        %v2211 = vadd.f32 %v2122, %v2210
        %2212 = vmatmul.bf16.gmra.mxu0 %v804
        %v2213 = vpop.f32.mrf.mxu0
        %v2214 = vadd.f32 %v2125, %v2213
        %v2215 = vpop.f32.mrf.mxu0
        %v2216 = vadd.f32 %v2127, %v2215
        %2217 = vmatmul.bf16.gmra.mxu0 %v906
        %v2218 = vpop.f32.mrf.mxu0
        %v2219 = vadd.f32 %v2130, %v2218
        %v2220 = vpop.f32.mrf.mxu0
        %v2221 = vadd.f32 %v2132, %v2220
        %2222 = vmatmul.bf16.gmra.mxu0 %v932
        %v2223 = vpop.f32.mrf.mxu0
        %v2224 = vadd.f32 %v2135, %v2223
        %v2225 = vpop.f32.mrf.mxu0
        %v2226 = vadd.f32 %v2137, %v2225
        %2227 = vdwg.mxu0
        %2228 = vmatpush.bf16.msra.mxu0 %v1443
        %2229 = vmatpush.bf16.msra.mxu0 %v1442
        %2230 = vmatpush.bf16.msra.mxu0 %v1441
        %2231 = vmatpush.bf16.msra.mxu0 %v1440
        %2232 = vmatpush.bf16.msra.mxu0 %v1439
        %2233 = vmatpush.bf16.msra.mxu0 %v1438
        %2234 = vmatpush.bf16.msra.mxu0 %v1437
        %2235 = vmatpush.bf16.msra.mxu0 %v1436
        %2236 = vmatmul.bf16.gmra.mxu0 %v830
        %v2237 = vpop.f32.mrf.mxu0
        %v2238 = vadd.f32 %v2149, %v2237
        %v2239 = vpop.f32.mrf.mxu0
        %v2240 = vadd.f32 %v2151, %v2239
        %2241 = vmatmul.bf16.gmra.mxu0 %v833
        %v2242 = vpop.f32.mrf.mxu0
        %v2243 = vadd.f32 %v2154, %v2242
        %v2244 = vpop.f32.mrf.mxu0
        %v2245 = vadd.f32 %v2156, %v2244
        %2246 = vmatmul.bf16.gmra.mxu0 %v836
        %v2247 = vpop.f32.mrf.mxu0
        %v2248 = vadd.f32 %v2159, %v2247
        %v2249 = vpop.f32.mrf.mxu0
        %v2250 = vadd.f32 %v2161, %v2249
        %2251 = vmatmul.bf16.gmra.mxu0 %v839
        %v2252 = vpop.f32.mrf.mxu0
        %v2253 = vadd.f32 %v2164, %v2252
        %v2254 = vpop.f32.mrf.mxu0
        %v2255 = vadd.f32 %v2166, %v2254
        %2256 = vmatmul.bf16.gmra.mxu0 %v842
        %v2257 = vpop.f32.mrf.mxu0
        %v2258 = vadd.f32 %v2169, %v2257
        %v2259 = vpop.f32.mrf.mxu0
        %v2260 = vadd.f32 %v2171, %v2259
        %2261 = vmatmul.bf16.gmra.mxu0 %v845
        %v2262 = vpop.f32.mrf.mxu0
        %v2263 = vadd.f32 %v2174, %v2262
        %v2264 = vpop.f32.mrf.mxu0
        %v2265 = vadd.f32 %v2176, %v2264
        %2266 = vmatmul.bf16.gmra.mxu0 %v848
        %v2267 = vpop.f32.mrf.mxu0
        %v2268 = vadd.f32 %v2179, %v2267
        %v2269 = vpop.f32.mrf.mxu0
        %v2270 = vadd.f32 %v2181, %v2269
        %2271 = vmatmul.bf16.gmra.mxu0 %v851
        %v2272 = vpop.f32.mrf.mxu0
        %v2273 = vadd.f32 %v2184, %v2272
        %v2274 = vpop.f32.mrf.mxu0
        %v2275 = vadd.f32 %v2186, %v2274
        %2276 = vmatmul.bf16.gmra.mxu0 %v854
        %v2277 = vpop.f32.mrf.mxu0
        %v2278 = vadd.f32 %v2189, %v2277
        %v2279 = vpop.f32.mrf.mxu0
        %v2280 = vadd.f32 %v2191, %v2279
        %2281 = vmatmul.bf16.gmra.mxu0 %v857
        %v2282 = vpop.f32.mrf.mxu0
        %v2283 = vadd.f32 %v2194, %v2282
        %v2284 = vpop.f32.mrf.mxu0
        %v2285 = vadd.f32 %v2196, %v2284
        %2286 = vmatmul.bf16.gmra.mxu0 %v860
        %v2287 = vpop.f32.mrf.mxu0
        %v2288 = vadd.f32 %v2199, %v2287
        %v2289 = vpop.f32.mrf.mxu0
        %v2290 = vadd.f32 %v2201, %v2289
        %2291 = vmatmul.bf16.gmra.mxu0 %v863
        %v2292 = vpop.f32.mrf.mxu0
        %v2293 = vadd.f32 %v2204, %v2292
        %v2294 = vpop.f32.mrf.mxu0
        %v2295 = vadd.f32 %v2206, %v2294
        %2296 = vmatmul.bf16.gmra.mxu0 %v866
        %v2297 = vpop.f32.mrf.mxu0
        %v2298 = vadd.f32 %v2209, %v2297
        %v2299 = vpop.f32.mrf.mxu0
        %v2300 = vadd.f32 %v2211, %v2299
        %2301 = vmatmul.bf16.gmra.mxu0 %v869
        %v2302 = vpop.f32.mrf.mxu0
        %v2303 = vadd.f32 %v2214, %v2302
        %v2304 = vpop.f32.mrf.mxu0
        %v2305 = vadd.f32 %v2216, %v2304
        %2306 = vmatmul.bf16.gmra.mxu0 %v910
        %v2307 = vpop.f32.mrf.mxu0
        %v2308 = vadd.f32 %v2219, %v2307
        %v2309 = vpop.f32.mrf.mxu0
        %v2310 = vadd.f32 %v2221, %v2309
        %2311 = vmatmul.bf16.gmra.mxu0 %v936
        %v2312 = vpop.f32.mrf.mxu0
        %v2313 = vadd.f32 %v2224, %v2312
        %v2314 = vpop.f32.mrf.mxu0
        %v2315 = vadd.f32 %v2226, %v2314
        %2316 = vdwg.mxu0
        %v2317 = vmax.f32 %v2238, 0.0
        %v2318 = vmax.f32 %v2240, 0.0
        %v2319 = vmax.f32 %v2243, 0.0
        %v2320 = vmax.f32 %v2245, 0.0
        %v2321 = vmax.f32 %v2248, 0.0
        %v2322 = vmax.f32 %v2250, 0.0
        %v2323 = vmax.f32 %v2253, 0.0
        %v2324 = vmax.f32 %v2255, 0.0
        %v2325 = vmax.f32 %v2258, 0.0
        %v2326 = vmax.f32 %v2260, 0.0
        %v2327 = vmax.f32 %v2263, 0.0
        %v2328 = vmax.f32 %v2265, 0.0
        %v2329 = vmax.f32 %v2268, 0.0
        %v2330 = vmax.f32 %v2270, 0.0
        %v2331 = vmax.f32 %v2273, 0.0
        %v2332 = vmax.f32 %v2275, 0.0
        %v2333 = vmax.f32 %v2278, 0.0
        %v2334 = vmax.f32 %v2280, 0.0
        %v2335 = vmax.f32 %v2283, 0.0
        %v2336 = vmax.f32 %v2285, 0.0
        %v2337 = vmax.f32 %v2288, 0.0
        %v2338 = vmax.f32 %v2290, 0.0
        %v2339 = vmax.f32 %v2293, 0.0
        %v2340 = vmax.f32 %v2295, 0.0
        %v2341 = vmax.f32 %v2298, 0.0
        %v2342 = vmax.f32 %v2300, 0.0
        %v2343 = vmax.f32 %v2303, 0.0
        %v2344 = vmax.f32 %v2305, 0.0
        %v2345 = vmax.f32 %v2308, 0.0
        %v2346 = vmax.f32 %v2310, 0.0
        %v2347 = vmax.f32 %v2313, 0.0
        %v2348 = vmax.f32 %v2315, 0.0
        %2349 = vst [vmem:[#allocation2] sm:$0xf] 0
        %2350 = vst [vmem:[#allocation2 + $0x4] sm:$0xf] 0
        %2351 = vst [vmem:[#allocation2 + $0x8] sm:$0x1] 0
        %s2352 = scalar_lea.vmem [#allocation2], 272
        %2353 = vst [vmem:[%s2352] sm:$0xf] 0
        %2354 = vst [vmem:[%s2352 + $0x4] sm:$0xf] 0
        %2355 = vst [vmem:[%s2352 + $0x8] sm:$0x1] 0
        %vm2356 = vcmask 1040384
        %vm2357 = vsmask.f32 256
        %vm2358 = vmand %vm2356, %vm2357
        %v2359 = vld [vmem:[#allocation2] sm:$0x1]
        %v2360 = vsel %vm2358, 0, %v2359
        %2361 = vst [vmem:[#allocation2] sm:$0x1] %v2360
        %v2362 = vld [vmem:[#allocation2 + $0x10] sm:$0x1]
        %v2363 = vsel %vm2358, 0, %v2362
        %2364 = vst [vmem:[#allocation2 + $0x10] sm:$0x1] %v2363
        %v2365 = vld [vmem:[#allocation2 + $0x20] sm:$0x1]
        %v2366 = vsel %vm2358, 0, %v2365
        %2367 = vst [vmem:[#allocation2 + $0x20] sm:$0x1] %v2366
        %v2368 = vld [vmem:[#allocation2 + $0x30] sm:$0x1]
        %v2369 = vsel %vm2358, 0, %v2368
        %2370 = vst [vmem:[#allocation2 + $0x30] sm:$0x1] %v2369
        %v2371 = vld [vmem:[#allocation2 + $0x40] sm:$0x1]
        %v2372 = vsel %vm2358, 0, %v2371
        %2373 = vst [vmem:[#allocation2 + $0x40] sm:$0x1] %v2372
        %v2374 = vld [vmem:[#allocation2 + $0x50] sm:$0x1]
        %v2375 = vsel %vm2358, 0, %v2374
        %2376 = vst [vmem:[#allocation2 + $0x50] sm:$0x1] %v2375
        %v2377 = vld [vmem:[#allocation2 + $0x60] sm:$0x1]
        %v2378 = vsel %vm2358, 0, %v2377
        %2379 = vst [vmem:[#allocation2 + $0x60] sm:$0x1] %v2378
        %v2380 = vld [vmem:[#allocation2 + $0x70] sm:$0x1]
        %v2381 = vsel %vm2358, 0, %v2380
        %2382 = vst [vmem:[#allocation2 + $0x70] sm:$0x1] %v2381
        %v2383 = vld [vmem:[#allocation2 + $0x80] sm:$0x1]
        %v2384 = vsel %vm2358, 0, %v2383
        %2385 = vst [vmem:[#allocation2 + $0x80] sm:$0x1] %v2384
        %v2386 = vld [vmem:[#allocation2 + $0x90] sm:$0x1]
        %v2387 = vsel %vm2358, 0, %v2386
        %2388 = vst [vmem:[#allocation2 + $0x90] sm:$0x1] %v2387
        %v2389 = vld [vmem:[#allocation2 + $0xa0] sm:$0x1]
        %v2390 = vsel %vm2358, 0, %v2389
        %2391 = vst [vmem:[#allocation2 + $0xa0] sm:$0x1] %v2390
        %v2392 = vld [vmem:[#allocation2 + $0xb0] sm:$0x1]
        %v2393 = vsel %vm2358, 0, %v2392
        %2394 = vst [vmem:[#allocation2 + $0xb0] sm:$0x1] %v2393
        %v2395 = vld [vmem:[#allocation2 + $0xc0] sm:$0x1]
        %v2396 = vsel %vm2358, 0, %v2395
        %2397 = vst [vmem:[#allocation2 + $0xc0] sm:$0x1] %v2396
        %v2398 = vld [vmem:[#allocation2 + $0xd0] sm:$0x1]
        %v2399 = vsel %vm2358, 0, %v2398
        %2400 = vst [vmem:[#allocation2 + $0xd0] sm:$0x1] %v2399
        %v2401 = vld [vmem:[#allocation2 + $0xe0] sm:$0x1]
        %v2402 = vsel %vm2358, 0, %v2401
        %2403 = vst [vmem:[#allocation2 + $0xe0] sm:$0x1] %v2402
        %v2404 = vld [vmem:[#allocation2 + $0xf0] sm:$0x1]
        %v2405 = vsel %vm2358, 0, %v2404
        %2406 = vst [vmem:[#allocation2 + $0xf0] sm:$0x1] %v2405
        %v2407 = vld [vmem:[#allocation2 + $0x100] sm:$0x1]
        %v2408 = vsel %vm2358, 0, %v2407
        %2409 = vst [vmem:[#allocation2 + $0x100] sm:$0x1] %v2408
        %v2410 = vld [vmem:[#allocation2 + $0x110] sm:$0x1]
        %v2411 = vsel %vm2358, 0, %v2410
        %2412 = vst [vmem:[#allocation2 + $0x110] sm:$0x1] %v2411
        %vm2413 = vsmask.f32 7938
        %vm2414 = vmand %vm2356, %vm2413
        %v2415 = vld [vmem:[#allocation2 + $0x8] sm:$0x1]
        %v2416 = vsel %vm2414, 0, %v2415
        %2417 = vst [vmem:[#allocation2 + $0x8] sm:$0x1] %v2416
        %v2418 = vld [vmem:[#allocation2 + $0x18] sm:$0x1]
        %v2419 = vsel %vm2414, 0, %v2418
        %2420 = vst [vmem:[#allocation2 + $0x18] sm:$0x1] %v2419
        %v2421 = vld [vmem:[#allocation2 + $0x28] sm:$0x1]
        %v2422 = vsel %vm2414, 0, %v2421
        %2423 = vst [vmem:[#allocation2 + $0x28] sm:$0x1] %v2422
        %v2424 = vld [vmem:[#allocation2 + $0x38] sm:$0x1]
        %v2425 = vsel %vm2414, 0, %v2424
        %2426 = vst [vmem:[#allocation2 + $0x38] sm:$0x1] %v2425
        %v2427 = vld [vmem:[#allocation2 + $0x48] sm:$0x1]
        %v2428 = vsel %vm2414, 0, %v2427
        %2429 = vst [vmem:[#allocation2 + $0x48] sm:$0x1] %v2428
        %v2430 = vld [vmem:[#allocation2 + $0x58] sm:$0x1]
        %v2431 = vsel %vm2414, 0, %v2430
        %2432 = vst [vmem:[#allocation2 + $0x58] sm:$0x1] %v2431
        %v2433 = vld [vmem:[#allocation2 + $0x68] sm:$0x1]
        %v2434 = vsel %vm2414, 0, %v2433
        %2435 = vst [vmem:[#allocation2 + $0x68] sm:$0x1] %v2434
        %v2436 = vld [vmem:[#allocation2 + $0x78] sm:$0x1]
        %v2437 = vsel %vm2414, 0, %v2436
        %2438 = vst [vmem:[#allocation2 + $0x78] sm:$0x1] %v2437
        %v2439 = vld [vmem:[#allocation2 + $0x88] sm:$0x1]
        %v2440 = vsel %vm2414, 0, %v2439
        %2441 = vst [vmem:[#allocation2 + $0x88] sm:$0x1] %v2440
        %v2442 = vld [vmem:[#allocation2 + $0x98] sm:$0x1]
        %v2443 = vsel %vm2414, 0, %v2442
        %2444 = vst [vmem:[#allocation2 + $0x98] sm:$0x1] %v2443
        %v2445 = vld [vmem:[#allocation2 + $0xa8] sm:$0x1]
        %v2446 = vsel %vm2414, 0, %v2445
        %2447 = vst [vmem:[#allocation2 + $0xa8] sm:$0x1] %v2446
        %v2448 = vld [vmem:[#allocation2 + $0xb8] sm:$0x1]
        %v2449 = vsel %vm2414, 0, %v2448
        %2450 = vst [vmem:[#allocation2 + $0xb8] sm:$0x1] %v2449
        %v2451 = vld [vmem:[#allocation2 + $0xc8] sm:$0x1]
        %v2452 = vsel %vm2414, 0, %v2451
        %2453 = vst [vmem:[#allocation2 + $0xc8] sm:$0x1] %v2452
        %v2454 = vld [vmem:[#allocation2 + $0xd8] sm:$0x1]
        %v2455 = vsel %vm2414, 0, %v2454
        %2456 = vst [vmem:[#allocation2 + $0xd8] sm:$0x1] %v2455
        %v2457 = vld [vmem:[#allocation2 + $0xe8] sm:$0x1]
        %v2458 = vsel %vm2414, 0, %v2457
        %2459 = vst [vmem:[#allocation2 + $0xe8] sm:$0x1] %v2458
        %v2460 = vld [vmem:[#allocation2 + $0xf8] sm:$0x1]
        %v2461 = vsel %vm2414, 0, %v2460
        %2462 = vst [vmem:[#allocation2 + $0xf8] sm:$0x1] %v2461
        %v2463 = vld [vmem:[#allocation2 + $0x108] sm:$0x1]
        %v2464 = vsel %vm2414, 0, %v2463
        %2465 = vst [vmem:[#allocation2 + $0x108] sm:$0x1] %v2464
        %v2466 = vld [vmem:[#allocation2 + $0x118] sm:$0x1]
        %v2467 = vsel %vm2414, 0, %v2466
        %2468 = vst [vmem:[#allocation2 + $0x118] sm:$0x1] %v2467
        %v2469 = vpack.c.bf16 %v2317, %v2317
        %v2470 = vpack.c.bf16 %v2318, %v2318
        %v2471 = vpack.c.bf16 %v2319, %v2319
        %v2472 = vpack.c.bf16 %v2320, %v2320
        %v2473 = vpack.c.bf16 %v2321, %v2321
        %v2474 = vpack.c.bf16 %v2322, %v2322
        %v2475 = vpack.c.bf16 %v2323, %v2323
        %v2476 = vpack.c.bf16 %v2324, %v2324
        %v2477 = vpack.c.bf16 %v2325, %v2325
        %v2478 = vpack.c.bf16 %v2326, %v2326
        %v2479 = vpack.c.bf16 %v2327, %v2327
        %v2480 = vpack.c.bf16 %v2328, %v2328
        %v2481 = vpack.c.bf16 %v2329, %v2329
        %v2482 = vpack.c.bf16 %v2330, %v2330
        %v2483 = vpack.c.bf16 %v2331, %v2331
        %v2484 = vpack.c.bf16 %v2332, %v2332
        %v2485 = vpack.c.bf16 %v2333, %v2333
        %v2486 = vpack.c.bf16 %v2334, %v2334
        %v2487 = vpack.c.bf16 %v2335, %v2335
        %v2488 = vpack.c.bf16 %v2336, %v2336
        %v2489 = vpack.c.bf16 %v2337, %v2337
        %v2490 = vpack.c.bf16 %v2338, %v2338
        %v2491 = vpack.c.bf16 %v2339, %v2339
        %v2492 = vpack.c.bf16 %v2340, %v2340
        %v2493 = vpack.c.bf16 %v2341, %v2341
        %v2494 = vpack.c.bf16 %v2342, %v2342
        %v2495 = vpack.c.bf16 %v2343, %v2343
        %v2496 = vpack.c.bf16 %v2344, %v2344
        %v2497 = vpack.c.bf16 %v2345, %v2345
        %v2498 = vpack.c.bf16 %v2346, %v2346
        %v2499 = vpack.c.bf16 %v2347, %v2347
        %v2500 = vpack.c.bf16 %v2348, %v2348
        %vm2501 = vsmask.f32 4368
        %vm2502 = vmor %vm2357, %vm2501
        %v2504 = vshrl.u32 %v2469, 16
        %v2506 = vrot.slane %v2504, 7
        %v2507 = vshll.u32 %v2469, 16
        %v2509 = vor.u32 %v2506, %v2507
        %v2510 = vrot.slane %v2506, 4
        %v2512 = vshrl.u32 %v2470, 16
        %v2514 = vrot.slane %v2512, 7
        %v2515 = vshll.u32 %v2470, 16
        %v2517 = vor.u32 %v2514, %v2515
        %v2518 = vsel %vm2502, %v2510, %v2517
        %v2519 = vrot.slane %v2514, 4
        %v2521 = vshrl.u32 %v2471, 16
        %v2523 = vrot.slane %v2521, 7
        %v2524 = vshll.u32 %v2471, 16
        %v2526 = vor.u32 %v2523, %v2524
        %v2527 = vrot.slane %v2523, 4
        %v2529 = vshrl.u32 %v2472, 16
        %v2531 = vrot.slane %v2529, 7
        %v2532 = vshll.u32 %v2472, 16
        %v2534 = vor.u32 %v2531, %v2532
        %v2535 = vsel %vm2502, %v2527, %v2534
        %v2536 = vrot.slane %v2531, 4
        %v2538 = vshrl.u32 %v2473, 16
        %v2540 = vrot.slane %v2538, 7
        %v2541 = vshll.u32 %v2473, 16
        %v2543 = vor.u32 %v2540, %v2541
        %v2544 = vrot.slane %v2540, 4
        %v2546 = vshrl.u32 %v2474, 16
        %v2548 = vrot.slane %v2546, 7
        %v2549 = vshll.u32 %v2474, 16
        %v2551 = vor.u32 %v2548, %v2549
        %v2552 = vsel %vm2502, %v2544, %v2551
        %v2553 = vrot.slane %v2548, 4
        %v2555 = vshrl.u32 %v2475, 16
        %v2557 = vrot.slane %v2555, 7
        %v2558 = vshll.u32 %v2475, 16
        %v2560 = vor.u32 %v2557, %v2558
        %v2561 = vrot.slane %v2557, 4
        %v2563 = vshrl.u32 %v2476, 16
        %v2565 = vrot.slane %v2563, 7
        %v2566 = vshll.u32 %v2476, 16
        %v2568 = vor.u32 %v2565, %v2566
        %v2569 = vsel %vm2502, %v2561, %v2568
        %v2570 = vrot.slane %v2565, 4
        %v2572 = vshrl.u32 %v2477, 16
        %v2574 = vrot.slane %v2572, 7
        %v2575 = vshll.u32 %v2477, 16
        %v2577 = vor.u32 %v2574, %v2575
        %v2578 = vrot.slane %v2574, 4
        %v2580 = vshrl.u32 %v2478, 16
        %v2582 = vrot.slane %v2580, 7
        %v2583 = vshll.u32 %v2478, 16
        %v2585 = vor.u32 %v2582, %v2583
        %v2586 = vsel %vm2502, %v2578, %v2585
        %v2587 = vrot.slane %v2582, 4
        %v2589 = vshrl.u32 %v2479, 16
        %v2591 = vrot.slane %v2589, 7
        %v2592 = vshll.u32 %v2479, 16
        %v2594 = vor.u32 %v2591, %v2592
        %v2595 = vrot.slane %v2591, 4
        %v2597 = vshrl.u32 %v2480, 16
        %v2599 = vrot.slane %v2597, 7
        %v2600 = vshll.u32 %v2480, 16
        %v2602 = vor.u32 %v2599, %v2600
        %v2603 = vsel %vm2502, %v2595, %v2602
        %v2604 = vrot.slane %v2599, 4
        %v2606 = vshrl.u32 %v2481, 16
        %v2608 = vrot.slane %v2606, 7
        %v2609 = vshll.u32 %v2481, 16
        %v2611 = vor.u32 %v2608, %v2609
        %v2612 = vrot.slane %v2608, 4
        %v2614 = vshrl.u32 %v2482, 16
        %v2616 = vrot.slane %v2614, 7
        %v2617 = vshll.u32 %v2482, 16
        %v2619 = vor.u32 %v2616, %v2617
        %v2620 = vsel %vm2502, %v2612, %v2619
        %v2621 = vrot.slane %v2616, 4
        %v2623 = vshrl.u32 %v2483, 16
        %v2625 = vrot.slane %v2623, 7
        %v2626 = vshll.u32 %v2483, 16
        %v2628 = vor.u32 %v2625, %v2626
        %v2629 = vrot.slane %v2625, 4
        %v2631 = vshrl.u32 %v2484, 16
        %v2633 = vrot.slane %v2631, 7
        %v2634 = vshll.u32 %v2484, 16
        %v2636 = vor.u32 %v2633, %v2634
        %v2637 = vsel %vm2502, %v2629, %v2636
        %v2638 = vrot.slane %v2633, 4
        %v2640 = vshrl.u32 %v2485, 16
        %v2642 = vrot.slane %v2640, 7
        %v2643 = vshll.u32 %v2485, 16
        %v2645 = vor.u32 %v2642, %v2643
        %v2646 = vrot.slane %v2642, 4
        %v2648 = vshrl.u32 %v2486, 16
        %v2650 = vrot.slane %v2648, 7
        %v2651 = vshll.u32 %v2486, 16
        %v2653 = vor.u32 %v2650, %v2651
        %v2654 = vsel %vm2502, %v2646, %v2653
        %v2655 = vrot.slane %v2650, 4
        %v2657 = vshrl.u32 %v2487, 16
        %v2659 = vrot.slane %v2657, 7
        %v2660 = vshll.u32 %v2487, 16
        %v2662 = vor.u32 %v2659, %v2660
        %v2663 = vrot.slane %v2659, 4
        %v2665 = vshrl.u32 %v2488, 16
        %v2667 = vrot.slane %v2665, 7
        %v2668 = vshll.u32 %v2488, 16
        %v2670 = vor.u32 %v2667, %v2668
        %v2671 = vsel %vm2502, %v2663, %v2670
        %v2672 = vrot.slane %v2667, 4
        %v2674 = vshrl.u32 %v2489, 16
        %v2676 = vrot.slane %v2674, 7
        %v2677 = vshll.u32 %v2489, 16
        %v2679 = vor.u32 %v2676, %v2677
        %v2680 = vrot.slane %v2676, 4
        %v2682 = vshrl.u32 %v2490, 16
        %v2684 = vrot.slane %v2682, 7
        %v2685 = vshll.u32 %v2490, 16
        %v2687 = vor.u32 %v2684, %v2685
        %v2688 = vsel %vm2502, %v2680, %v2687
        %v2689 = vrot.slane %v2684, 4
        %v2691 = vshrl.u32 %v2491, 16
        %v2693 = vrot.slane %v2691, 7
        %v2694 = vshll.u32 %v2491, 16
        %v2696 = vor.u32 %v2693, %v2694
        %v2697 = vrot.slane %v2693, 4
        %v2699 = vshrl.u32 %v2492, 16
        %v2701 = vrot.slane %v2699, 7
        %v2702 = vshll.u32 %v2492, 16
        %v2704 = vor.u32 %v2701, %v2702
        %v2705 = vsel %vm2502, %v2697, %v2704
        %v2706 = vrot.slane %v2701, 4
        %v2708 = vshrl.u32 %v2493, 16
        %v2710 = vrot.slane %v2708, 7
        %v2711 = vshll.u32 %v2493, 16
        %v2713 = vor.u32 %v2710, %v2711
        %v2714 = vrot.slane %v2710, 4
        %v2716 = vshrl.u32 %v2494, 16
        %v2718 = vrot.slane %v2716, 7
        %v2719 = vshll.u32 %v2494, 16
        %v2721 = vor.u32 %v2718, %v2719
        %v2722 = vsel %vm2502, %v2714, %v2721
        %v2723 = vrot.slane %v2718, 4
        %v2725 = vshrl.u32 %v2495, 16
        %v2727 = vrot.slane %v2725, 7
        %v2728 = vshll.u32 %v2495, 16
        %v2730 = vor.u32 %v2727, %v2728
        %v2731 = vrot.slane %v2727, 4
        %v2733 = vshrl.u32 %v2496, 16
        %v2735 = vrot.slane %v2733, 7
        %v2736 = vshll.u32 %v2496, 16
        %v2738 = vor.u32 %v2735, %v2736
        %v2739 = vsel %vm2502, %v2731, %v2738
        %v2740 = vrot.slane %v2735, 4
        %v2742 = vshrl.u32 %v2497, 16
        %v2744 = vrot.slane %v2742, 7
        %v2745 = vshll.u32 %v2497, 16
        %v2747 = vor.u32 %v2744, %v2745
        %v2748 = vrot.slane %v2744, 4
        %v2750 = vshrl.u32 %v2498, 16
        %v2752 = vrot.slane %v2750, 7
        %v2753 = vshll.u32 %v2498, 16
        %v2755 = vor.u32 %v2752, %v2753
        %v2756 = vsel %vm2502, %v2748, %v2755
        %v2757 = vrot.slane %v2752, 4
        %v2759 = vshrl.u32 %v2499, 16
        %v2761 = vrot.slane %v2759, 7
        %v2762 = vshll.u32 %v2499, 16
        %v2764 = vor.u32 %v2761, %v2762
        %v2765 = vrot.slane %v2761, 4
        %v2767 = vshrl.u32 %v2500, 16
        %v2769 = vrot.slane %v2767, 7
        %v2770 = vshll.u32 %v2500, 16
        %v2772 = vor.u32 %v2769, %v2770
        %v2773 = vsel %vm2502, %v2765, %v2772
        %v2774 = vrot.slane %v2769, 4
        %s2823 = scalar_lea.vmem [#allocation2], 16
        %vm2824 = vcmask 1043456
        %vm2825 = vmand %vm2824, %vm2413
        %v2826 = vld [vmem:[%s2823] sm:$0xf]
        %v2827 = vsel %vm2825, %v2509, %v2826
        %2828 = vst [vmem:[%s2823] sm:$0xf] %v2827
        %2829 = vst [vmem:[%s2823 + $0x4] sm:$0xf] %v2518
        %v2830 = vld [vmem:[%s2823 + $0x8] sm:$0x1]
        %v2831 = vsel %vm2358, %v2519, %v2830
        %2832 = vst [vmem:[%s2823 + $0x8] sm:$0x1] %v2831
        %v2833 = vld [vmem:[%s2823 + $0x10] sm:$0xf]
        %v2834 = vsel %vm2825, %v2526, %v2833
        %2835 = vst [vmem:[%s2823 + $0x10] sm:$0xf] %v2834
        %2836 = vst [vmem:[%s2823 + $0x14] sm:$0xf] %v2535
        %v2837 = vld [vmem:[%s2823 + $0x18] sm:$0x1]
        %v2838 = vsel %vm2358, %v2536, %v2837
        %2839 = vst [vmem:[%s2823 + $0x18] sm:$0x1] %v2838
        %v2840 = vld [vmem:[%s2823 + $0x20] sm:$0xf]
        %v2841 = vsel %vm2825, %v2543, %v2840
        %2842 = vst [vmem:[%s2823 + $0x20] sm:$0xf] %v2841
        %2843 = vst [vmem:[%s2823 + $0x24] sm:$0xf] %v2552
        %v2844 = vld [vmem:[%s2823 + $0x28] sm:$0x1]
        %v2845 = vsel %vm2358, %v2553, %v2844
        %2846 = vst [vmem:[%s2823 + $0x28] sm:$0x1] %v2845
        %v2847 = vld [vmem:[%s2823 + $0x30] sm:$0xf]
        %v2848 = vsel %vm2825, %v2560, %v2847
        %2849 = vst [vmem:[%s2823 + $0x30] sm:$0xf] %v2848
        %2850 = vst [vmem:[%s2823 + $0x34] sm:$0xf] %v2569
        %v2851 = vld [vmem:[%s2823 + $0x38] sm:$0x1]
        %v2852 = vsel %vm2358, %v2570, %v2851
        %2853 = vst [vmem:[%s2823 + $0x38] sm:$0x1] %v2852
        %v2854 = vld [vmem:[%s2823 + $0x40] sm:$0xf]
        %v2855 = vsel %vm2825, %v2577, %v2854
        %2856 = vst [vmem:[%s2823 + $0x40] sm:$0xf] %v2855
        %2857 = vst [vmem:[%s2823 + $0x44] sm:$0xf] %v2586
        %v2858 = vld [vmem:[%s2823 + $0x48] sm:$0x1]
        %v2859 = vsel %vm2358, %v2587, %v2858
        %2860 = vst [vmem:[%s2823 + $0x48] sm:$0x1] %v2859
        %v2861 = vld [vmem:[%s2823 + $0x50] sm:$0xf]
        %v2862 = vsel %vm2825, %v2594, %v2861
        %2863 = vst [vmem:[%s2823 + $0x50] sm:$0xf] %v2862
        %2864 = vst [vmem:[%s2823 + $0x54] sm:$0xf] %v2603
        %v2865 = vld [vmem:[%s2823 + $0x58] sm:$0x1]
        %v2866 = vsel %vm2358, %v2604, %v2865
        %2867 = vst [vmem:[%s2823 + $0x58] sm:$0x1] %v2866
        %v2868 = vld [vmem:[%s2823 + $0x60] sm:$0xf]
        %v2869 = vsel %vm2825, %v2611, %v2868
        %2870 = vst [vmem:[%s2823 + $0x60] sm:$0xf] %v2869
        %2871 = vst [vmem:[%s2823 + $0x64] sm:$0xf] %v2620
        %v2872 = vld [vmem:[%s2823 + $0x68] sm:$0x1]
        %v2873 = vsel %vm2358, %v2621, %v2872
        %2874 = vst [vmem:[%s2823 + $0x68] sm:$0x1] %v2873
        %v2875 = vld [vmem:[%s2823 + $0x70] sm:$0xf]
        %v2876 = vsel %vm2825, %v2628, %v2875
        %2877 = vst [vmem:[%s2823 + $0x70] sm:$0xf] %v2876
        %2878 = vst [vmem:[%s2823 + $0x74] sm:$0xf] %v2637
        %v2879 = vld [vmem:[%s2823 + $0x78] sm:$0x1]
        %v2880 = vsel %vm2358, %v2638, %v2879
        %2881 = vst [vmem:[%s2823 + $0x78] sm:$0x1] %v2880
        %v2882 = vld [vmem:[%s2823 + $0x80] sm:$0xf]
        %v2883 = vsel %vm2825, %v2645, %v2882
        %2884 = vst [vmem:[%s2823 + $0x80] sm:$0xf] %v2883
        %2885 = vst [vmem:[%s2823 + $0x84] sm:$0xf] %v2654
        %v2886 = vld [vmem:[%s2823 + $0x88] sm:$0x1]
        %v2887 = vsel %vm2358, %v2655, %v2886
        %2888 = vst [vmem:[%s2823 + $0x88] sm:$0x1] %v2887
        %v2889 = vld [vmem:[%s2823 + $0x90] sm:$0xf]
        %v2890 = vsel %vm2825, %v2662, %v2889
        %2891 = vst [vmem:[%s2823 + $0x90] sm:$0xf] %v2890
        %2892 = vst [vmem:[%s2823 + $0x94] sm:$0xf] %v2671
        %v2893 = vld [vmem:[%s2823 + $0x98] sm:$0x1]
        %v2894 = vsel %vm2358, %v2672, %v2893
        %2895 = vst [vmem:[%s2823 + $0x98] sm:$0x1] %v2894
        %v2896 = vld [vmem:[%s2823 + $0xa0] sm:$0xf]
        %v2897 = vsel %vm2825, %v2679, %v2896
        %2898 = vst [vmem:[%s2823 + $0xa0] sm:$0xf] %v2897
        %2899 = vst [vmem:[%s2823 + $0xa4] sm:$0xf] %v2688
        %v2900 = vld [vmem:[%s2823 + $0xa8] sm:$0x1]
        %v2901 = vsel %vm2358, %v2689, %v2900
        %2902 = vst [vmem:[%s2823 + $0xa8] sm:$0x1] %v2901
        %v2903 = vld [vmem:[%s2823 + $0xb0] sm:$0xf]
        %v2904 = vsel %vm2825, %v2696, %v2903
        %2905 = vst [vmem:[%s2823 + $0xb0] sm:$0xf] %v2904
        %2906 = vst [vmem:[%s2823 + $0xb4] sm:$0xf] %v2705
        %v2907 = vld [vmem:[%s2823 + $0xb8] sm:$0x1]
        %v2908 = vsel %vm2358, %v2706, %v2907
        %2909 = vst [vmem:[%s2823 + $0xb8] sm:$0x1] %v2908
        %v2910 = vld [vmem:[%s2823 + $0xc0] sm:$0xf]
        %v2911 = vsel %vm2825, %v2713, %v2910
        %2912 = vst [vmem:[%s2823 + $0xc0] sm:$0xf] %v2911
        %2913 = vst [vmem:[%s2823 + $0xc4] sm:$0xf] %v2722
        %v2914 = vld [vmem:[%s2823 + $0xc8] sm:$0x1]
        %v2915 = vsel %vm2358, %v2723, %v2914
        %2916 = vst [vmem:[%s2823 + $0xc8] sm:$0x1] %v2915
        %v2917 = vld [vmem:[%s2823 + $0xd0] sm:$0xf]
        %v2918 = vsel %vm2825, %v2730, %v2917
        %2919 = vst [vmem:[%s2823 + $0xd0] sm:$0xf] %v2918
        %2920 = vst [vmem:[%s2823 + $0xd4] sm:$0xf] %v2739
        %v2921 = vld [vmem:[%s2823 + $0xd8] sm:$0x1]
        %v2922 = vsel %vm2358, %v2740, %v2921
        %2923 = vst [vmem:[%s2823 + $0xd8] sm:$0x1] %v2922
        %v2924 = vld [vmem:[%s2823 + $0xe0] sm:$0xf]
        %v2925 = vsel %vm2825, %v2747, %v2924
        %2926 = vst [vmem:[%s2823 + $0xe0] sm:$0xf] %v2925
        %2927 = vst [vmem:[%s2823 + $0xe4] sm:$0xf] %v2756
        %v2928 = vld [vmem:[%s2823 + $0xe8] sm:$0x1]
        %v2929 = vsel %vm2358, %v2757, %v2928
        %2930 = vst [vmem:[%s2823 + $0xe8] sm:$0x1] %v2929
        %v2931 = vld [vmem:[%s2823 + $0xf0] sm:$0xf]
        %v2932 = vsel %vm2825, %v2764, %v2931
        %2933 = vst [vmem:[%s2823 + $0xf0] sm:$0xf] %v2932
        %2934 = vst [vmem:[%s2823 + $0xf4] sm:$0xf] %v2773
        %v2935 = vld [vmem:[%s2823 + $0xf8] sm:$0x1]
        %v2936 = vsel %vm2358, %v2774, %v2935
        %2937 = vst [vmem:[%s2823 + $0xf8] sm:$0x1] %v2936
        %v2938 = vld [vmem:[#allocation2] sm:$0xf]
        %v2939 = vld [vmem:[#allocation2 + $0x4] sm:$0xf]
        %v2940 = vld [vmem:[#allocation2 + $0x10] sm:$0xf]
        %v2941 = vld [vmem:[#allocation2 + $0x14] sm:$0xf]
        %v2942 = vld [vmem:[#allocation2 + $0x20] sm:$0xf]
        %v2943 = vld [vmem:[#allocation2 + $0x24] sm:$0xf]
        %v2944 = vld [vmem:[#allocation2 + $0x30] sm:$0xf]
        %v2945 = vld [vmem:[#allocation2 + $0x34] sm:$0xf]
        %v2946 = vld [vmem:[#allocation2 + $0x40] sm:$0xf]
        %v2947 = vld [vmem:[#allocation2 + $0x44] sm:$0xf]
        %v2948 = vld [vmem:[#allocation2 + $0x50] sm:$0xf]
        %v2949 = vld [vmem:[#allocation2 + $0x54] sm:$0xf]
        %v2950 = vld [vmem:[#allocation2 + $0x60] sm:$0xf]
        %v2951 = vld [vmem:[#allocation2 + $0x64] sm:$0xf]
        %v2952 = vld [vmem:[#allocation2 + $0x70] sm:$0xf]
        %v2953 = vld [vmem:[#allocation2 + $0x74] sm:$0xf]
        %v2954 = vld [vmem:[#allocation2 + $0x80] sm:$0xf]
        %v2955 = vld [vmem:[#allocation2 + $0x84] sm:$0xf]
        %v2956 = vld [vmem:[#allocation2 + $0x90] sm:$0xf]
        %v2957 = vld [vmem:[#allocation2 + $0x94] sm:$0xf]
        %v2958 = vld [vmem:[#allocation2 + $0xa0] sm:$0xf]
        %v2959 = vld [vmem:[#allocation2 + $0xa4] sm:$0xf]
        %v2960 = vld [vmem:[#allocation2 + $0xb0] sm:$0xf]
        %v2961 = vld [vmem:[#allocation2 + $0xb4] sm:$0xf]
        %v2962 = vld [vmem:[#allocation2 + $0xc0] sm:$0xf]
        %v2963 = vld [vmem:[#allocation2 + $0xc4] sm:$0xf]
        %v2964 = vld [vmem:[#allocation2 + $0xd0] sm:$0xf]
        %v2965 = vld [vmem:[#allocation2 + $0xd4] sm:$0xf]
        %v2966 = vld [vmem:[#allocation2 + $0xe0] sm:$0xf]
        %v2967 = vld [vmem:[#allocation2 + $0xe4] sm:$0xf]
        %v2968 = vld [vmem:[#allocation2 + $0xf0] sm:$0xf]
        %v2969 = vld [vmem:[#allocation2 + $0xf4] sm:$0xf]
        %v2970 = vld [vmem:[#allocation2 + $0x8] sm:$0x1]
        %v2971 = vld [vmem:[#allocation2 + $0x18] sm:$0x1]
        %v2972 = vld [vmem:[#allocation2 + $0x28] sm:$0x1]
        %v2973 = vld [vmem:[#allocation2 + $0x38] sm:$0x1]
        %v2974 = vld [vmem:[#allocation2 + $0x48] sm:$0x1]
        %v2975 = vld [vmem:[#allocation2 + $0x58] sm:$0x1]
        %v2976 = vld [vmem:[#allocation2 + $0x68] sm:$0x1]
        %v2977 = vld [vmem:[#allocation2 + $0x78] sm:$0x1]
        %v2978 = vld [vmem:[#allocation2 + $0x88] sm:$0x1]
        %v2979 = vld [vmem:[#allocation2 + $0x98] sm:$0x1]
        %v2980 = vld [vmem:[#allocation2 + $0xa8] sm:$0x1]
        %v2981 = vld [vmem:[#allocation2 + $0xb8] sm:$0x1]
        %v2982 = vld [vmem:[#allocation2 + $0xc8] sm:$0x1]
        %v2983 = vld [vmem:[#allocation2 + $0xd8] sm:$0x1]
        %v2984 = vld [vmem:[#allocation2 + $0xe8] sm:$0x1]
        %v2985 = vld [vmem:[#allocation2 + $0xf8] sm:$0x1]
        %v2986 = vld [vmem:[#allocation2] sm:$0xe]
        %v2987 = vld [vmem:[#allocation2 + $0x10] sm:$0xe]
        %v2988 = vld [vmem:[#allocation2 + $0x20] sm:$0xe]
        %v2989 = vld [vmem:[#allocation2 + $0x30] sm:$0xe]
        %v2990 = vld [vmem:[#allocation2 + $0x40] sm:$0xe]
        %v2991 = vld [vmem:[#allocation2 + $0x50] sm:$0xe]
        %v2992 = vld [vmem:[#allocation2 + $0x60] sm:$0xe]
        %v2993 = vld [vmem:[#allocation2 + $0x70] sm:$0xe]
        %v2994 = vld [vmem:[#allocation2 + $0x80] sm:$0xe]
        %v2995 = vld [vmem:[#allocation2 + $0x90] sm:$0xe]
        %v2996 = vld [vmem:[#allocation2 + $0xa0] sm:$0xe]
        %v2997 = vld [vmem:[#allocation2 + $0xb0] sm:$0xe]
        %v2998 = vld [vmem:[#allocation2 + $0xc0] sm:$0xe]
        %v2999 = vld [vmem:[#allocation2 + $0xd0] sm:$0xe]
        %v3000 = vld [vmem:[#allocation2 + $0xe0] sm:$0xe]
        %v3001 = vld [vmem:[#allocation2 + $0xf0] sm:$0xe]
        %v3002 = vld [vmem:[%s2823] sm:$0xf]
        %v3003 = vld [vmem:[%s2823 + $0x4] sm:$0xf]
        %v3004 = vld [vmem:[%s2823 + $0x10] sm:$0xf]
        %v3005 = vld [vmem:[%s2823 + $0x14] sm:$0xf]
        %v3006 = vld [vmem:[%s2823 + $0x20] sm:$0xf]
        %v3007 = vld [vmem:[%s2823 + $0x24] sm:$0xf]
        %v3008 = vld [vmem:[%s2823 + $0x30] sm:$0xf]
        %v3009 = vld [vmem:[%s2823 + $0x34] sm:$0xf]
        %v3010 = vld [vmem:[%s2823 + $0x40] sm:$0xf]
        %v3011 = vld [vmem:[%s2823 + $0x44] sm:$0xf]
        %v3012 = vld [vmem:[%s2823 + $0x50] sm:$0xf]
        %v3013 = vld [vmem:[%s2823 + $0x54] sm:$0xf]
        %v3014 = vld [vmem:[%s2823 + $0x60] sm:$0xf]
        %v3015 = vld [vmem:[%s2823 + $0x64] sm:$0xf]
        %v3016 = vld [vmem:[%s2823 + $0x70] sm:$0xf]
        %v3017 = vld [vmem:[%s2823 + $0x74] sm:$0xf]
        %v3018 = vld [vmem:[%s2823 + $0x80] sm:$0xf]
        %v3019 = vld [vmem:[%s2823 + $0x84] sm:$0xf]
        %v3020 = vld [vmem:[%s2823 + $0x90] sm:$0xf]
        %v3021 = vld [vmem:[%s2823 + $0x94] sm:$0xf]
        %v3022 = vld [vmem:[%s2823 + $0xa0] sm:$0xf]
        %v3023 = vld [vmem:[%s2823 + $0xa4] sm:$0xf]
        %v3024 = vld [vmem:[%s2823 + $0xb0] sm:$0xf]
        %v3025 = vld [vmem:[%s2823 + $0xb4] sm:$0xf]
        %v3026 = vld [vmem:[%s2823 + $0xc0] sm:$0xf]
        %v3027 = vld [vmem:[%s2823 + $0xc4] sm:$0xf]
        %v3028 = vld [vmem:[%s2823 + $0xd0] sm:$0xf]
        %v3029 = vld [vmem:[%s2823 + $0xd4] sm:$0xf]
        %v3030 = vld [vmem:[%s2823 + $0xe0] sm:$0xf]
        %v3031 = vld [vmem:[%s2823 + $0xe4] sm:$0xf]
        %v3032 = vld [vmem:[%s2823 + $0xf0] sm:$0xf]
        %v3033 = vld [vmem:[%s2823 + $0xf4] sm:$0xf]
        %v3034 = vld [vmem:[%s2823 + $0x8] sm:$0x1]
        %v3035 = vld [vmem:[%s2823 + $0x18] sm:$0x1]
        %v3036 = vld [vmem:[%s2823 + $0x28] sm:$0x1]
        %v3037 = vld [vmem:[%s2823 + $0x38] sm:$0x1]
        %v3038 = vld [vmem:[%s2823 + $0x48] sm:$0x1]
        %v3039 = vld [vmem:[%s2823 + $0x58] sm:$0x1]
        %v3040 = vld [vmem:[%s2823 + $0x68] sm:$0x1]
        %v3041 = vld [vmem:[%s2823 + $0x78] sm:$0x1]
        %v3042 = vld [vmem:[%s2823 + $0x88] sm:$0x1]
        %v3043 = vld [vmem:[%s2823 + $0x98] sm:$0x1]
        %v3044 = vld [vmem:[%s2823 + $0xa8] sm:$0x1]
        %v3045 = vld [vmem:[%s2823 + $0xb8] sm:$0x1]
        %v3046 = vld [vmem:[%s2823 + $0xc8] sm:$0x1]
        %v3047 = vld [vmem:[%s2823 + $0xd8] sm:$0x1]
        %v3048 = vld [vmem:[%s2823 + $0xe8] sm:$0x1]
        %v3049 = vld [vmem:[%s2823 + $0xf8] sm:$0x1]
        %v3050 = vld [vmem:[%s2823] sm:$0xe]
        %v3051 = vld [vmem:[%s2823 + $0x10] sm:$0xe]
        %v3052 = vld [vmem:[%s2823 + $0x20] sm:$0xe]
        %v3053 = vld [vmem:[%s2823 + $0x30] sm:$0xe]
        %v3054 = vld [vmem:[%s2823 + $0x40] sm:$0xe]
        %v3055 = vld [vmem:[%s2823 + $0x50] sm:$0xe]
        %v3056 = vld [vmem:[%s2823 + $0x60] sm:$0xe]
        %v3057 = vld [vmem:[%s2823 + $0x70] sm:$0xe]
        %v3058 = vld [vmem:[%s2823 + $0x80] sm:$0xe]
        %v3059 = vld [vmem:[%s2823 + $0x90] sm:$0xe]
        %v3060 = vld [vmem:[%s2823 + $0xa0] sm:$0xe]
        %v3061 = vld [vmem:[%s2823 + $0xb0] sm:$0xe]
        %v3062 = vld [vmem:[%s2823 + $0xc0] sm:$0xe]
        %v3063 = vld [vmem:[%s2823 + $0xd0] sm:$0xe]
        %v3064 = vld [vmem:[%s2823 + $0xe0] sm:$0xe]
        %v3065 = vld [vmem:[%s2823 + $0xf0] sm:$0xe]
        %s3066 = scalar_lea.vmem [#allocation2], 32
        %v3067 = vld [vmem:[%s3066] sm:$0xf]
        %v3068 = vld [vmem:[%s3066 + $0x4] sm:$0xf]
        %v3069 = vld [vmem:[%s3066 + $0x10] sm:$0xf]
        %v3070 = vld [vmem:[%s3066 + $0x14] sm:$0xf]
        %v3071 = vld [vmem:[%s3066 + $0x20] sm:$0xf]
        %v3072 = vld [vmem:[%s3066 + $0x24] sm:$0xf]
        %v3073 = vld [vmem:[%s3066 + $0x30] sm:$0xf]
        %v3074 = vld [vmem:[%s3066 + $0x34] sm:$0xf]
        %v3075 = vld [vmem:[%s3066 + $0x40] sm:$0xf]
        %v3076 = vld [vmem:[%s3066 + $0x44] sm:$0xf]
        %v3077 = vld [vmem:[%s3066 + $0x50] sm:$0xf]
        %v3078 = vld [vmem:[%s3066 + $0x54] sm:$0xf]
        %v3079 = vld [vmem:[%s3066 + $0x60] sm:$0xf]
        %v3080 = vld [vmem:[%s3066 + $0x64] sm:$0xf]
        %v3081 = vld [vmem:[%s3066 + $0x70] sm:$0xf]
        %v3082 = vld [vmem:[%s3066 + $0x74] sm:$0xf]
        %v3083 = vld [vmem:[%s3066 + $0x80] sm:$0xf]
        %v3084 = vld [vmem:[%s3066 + $0x84] sm:$0xf]
        %v3085 = vld [vmem:[%s3066 + $0x90] sm:$0xf]
        %v3086 = vld [vmem:[%s3066 + $0x94] sm:$0xf]
        %v3087 = vld [vmem:[%s3066 + $0xa0] sm:$0xf]
        %v3088 = vld [vmem:[%s3066 + $0xa4] sm:$0xf]
        %v3089 = vld [vmem:[%s3066 + $0xb0] sm:$0xf]
        %v3090 = vld [vmem:[%s3066 + $0xb4] sm:$0xf]
        %v3091 = vld [vmem:[%s3066 + $0xc0] sm:$0xf]
        %v3092 = vld [vmem:[%s3066 + $0xc4] sm:$0xf]
        %v3093 = vld [vmem:[%s3066 + $0xd0] sm:$0xf]
        %v3094 = vld [vmem:[%s3066 + $0xd4] sm:$0xf]
        %v3095 = vld [vmem:[%s3066 + $0xe0] sm:$0xf]
        %v3096 = vld [vmem:[%s3066 + $0xe4] sm:$0xf]
        %v3097 = vld [vmem:[%s3066 + $0xf0] sm:$0xf]
        %v3098 = vld [vmem:[%s3066 + $0xf4] sm:$0xf]
        %v3099 = vld [vmem:[%s3066 + $0x8] sm:$0x1]
        %v3100 = vld [vmem:[%s3066 + $0x18] sm:$0x1]
        %v3101 = vld [vmem:[%s3066 + $0x28] sm:$0x1]
        %v3102 = vld [vmem:[%s3066 + $0x38] sm:$0x1]
        %v3103 = vld [vmem:[%s3066 + $0x48] sm:$0x1]
        %v3104 = vld [vmem:[%s3066 + $0x58] sm:$0x1]
        %v3105 = vld [vmem:[%s3066 + $0x68] sm:$0x1]
        %v3106 = vld [vmem:[%s3066 + $0x78] sm:$0x1]
        %v3107 = vld [vmem:[%s3066 + $0x88] sm:$0x1]
        %v3108 = vld [vmem:[%s3066 + $0x98] sm:$0x1]
        %v3109 = vld [vmem:[%s3066 + $0xa8] sm:$0x1]
        %v3110 = vld [vmem:[%s3066 + $0xb8] sm:$0x1]
        %v3111 = vld [vmem:[%s3066 + $0xc8] sm:$0x1]
        %v3112 = vld [vmem:[%s3066 + $0xd8] sm:$0x1]
        %v3113 = vld [vmem:[%s3066 + $0xe8] sm:$0x1]
        %v3114 = vld [vmem:[%s3066 + $0xf8] sm:$0x1]
        %v3115 = vld [vmem:[%s3066] sm:$0xe]
        %v3116 = vld [vmem:[%s3066 + $0x10] sm:$0xe]
        %v3117 = vld [vmem:[%s3066 + $0x20] sm:$0xe]
        %v3118 = vld [vmem:[%s3066 + $0x30] sm:$0xe]
        %v3119 = vld [vmem:[%s3066 + $0x40] sm:$0xe]
        %v3120 = vld [vmem:[%s3066 + $0x50] sm:$0xe]
        %v3121 = vld [vmem:[%s3066 + $0x60] sm:$0xe]
        %v3122 = vld [vmem:[%s3066 + $0x70] sm:$0xe]
        %v3123 = vld [vmem:[%s3066 + $0x80] sm:$0xe]
        %v3124 = vld [vmem:[%s3066 + $0x90] sm:$0xe]
        %v3125 = vld [vmem:[%s3066 + $0xa0] sm:$0xe]
        %v3126 = vld [vmem:[%s3066 + $0xb0] sm:$0xe]
        %v3127 = vld [vmem:[%s3066 + $0xc0] sm:$0xe]
        %v3128 = vld [vmem:[%s3066 + $0xd0] sm:$0xe]
        %v3129 = vld [vmem:[%s3066 + $0xe0] sm:$0xe]
        %v3130 = vld [vmem:[%s3066 + $0xf0] sm:$0xe]
        %v3163 = vunpack.c.l.b16 %v2938
        %v3164 = vunpack.c.l.b16 %v2939
        %v3165 = vunpack.c.l.b16 %v2940
        %v3166 = vunpack.c.l.b16 %v2941
        %v3167 = vunpack.c.l.b16 %v2942
        %v3168 = vunpack.c.l.b16 %v2943
        %v3169 = vunpack.c.l.b16 %v2944
        %v3170 = vunpack.c.l.b16 %v2945
        %v3171 = vunpack.c.l.b16 %v2946
        %v3172 = vunpack.c.l.b16 %v2947
        %v3173 = vunpack.c.l.b16 %v2948
        %v3174 = vunpack.c.l.b16 %v2949
        %v3175 = vunpack.c.l.b16 %v2950
        %v3176 = vunpack.c.l.b16 %v2951
        %v3177 = vunpack.c.l.b16 %v2952
        %v3178 = vunpack.c.l.b16 %v2953
        %v3179 = vunpack.c.l.b16 %v2954
        %v3180 = vunpack.c.l.b16 %v2955
        %v3181 = vunpack.c.l.b16 %v2956
        %v3182 = vunpack.c.l.b16 %v2957
        %v3183 = vunpack.c.l.b16 %v2958
        %v3184 = vunpack.c.l.b16 %v2959
        %v3185 = vunpack.c.l.b16 %v2960
        %v3186 = vunpack.c.l.b16 %v2961
        %v3187 = vunpack.c.l.b16 %v2962
        %v3188 = vunpack.c.l.b16 %v2963
        %v3189 = vunpack.c.l.b16 %v2964
        %v3190 = vunpack.c.l.b16 %v2965
        %v3191 = vunpack.c.l.b16 %v2966
        %v3192 = vunpack.c.l.b16 %v2967
        %v3193 = vunpack.c.l.b16 %v2968
        %v3194 = vunpack.c.l.b16 %v2969
        %v3195 = vpack.c.b16 %v3164, %v3163
        %v3196 = vpack.c.b16 %v3166, %v3165
        %v3197 = vpack.c.b16 %v3168, %v3167
        %v3198 = vpack.c.b16 %v3170, %v3169
        %v3199 = vpack.c.b16 %v3172, %v3171
        %v3200 = vpack.c.b16 %v3174, %v3173
        %v3201 = vpack.c.b16 %v3176, %v3175
        %v3202 = vpack.c.b16 %v3178, %v3177
        %v3203 = vpack.c.b16 %v3180, %v3179
        %v3204 = vpack.c.b16 %v3182, %v3181
        %v3205 = vpack.c.b16 %v3184, %v3183
        %v3206 = vpack.c.b16 %v3186, %v3185
        %v3207 = vpack.c.b16 %v3188, %v3187
        %v3208 = vpack.c.b16 %v3190, %v3189
        %v3209 = vpack.c.b16 %v3192, %v3191
        %v3210 = vpack.c.b16 %v3194, %v3193
        %v3243 = vunpack.c.l.b16 %v2970
        %v3244 = vunpack.c.l.b16 %v2971
        %v3245 = vunpack.c.l.b16 %v2972
        %v3246 = vunpack.c.l.b16 %v2973
        %v3247 = vunpack.c.l.b16 %v2974
        %v3248 = vunpack.c.l.b16 %v2975
        %v3249 = vunpack.c.l.b16 %v2976
        %v3250 = vunpack.c.l.b16 %v2977
        %v3251 = vunpack.c.l.b16 %v2978
        %v3252 = vunpack.c.l.b16 %v2979
        %v3253 = vunpack.c.l.b16 %v2980
        %v3254 = vunpack.c.l.b16 %v2981
        %v3255 = vunpack.c.l.b16 %v2982
        %v3256 = vunpack.c.l.b16 %v2983
        %v3257 = vunpack.c.l.b16 %v2984
        %v3258 = vunpack.c.l.b16 %v2985
        %v3259 = vpack.c.b16 %v3243, %v3243
        %v3260 = vpack.c.b16 %v3244, %v3244
        %v3261 = vpack.c.b16 %v3245, %v3245
        %v3262 = vpack.c.b16 %v3246, %v3246
        %v3263 = vpack.c.b16 %v3247, %v3247
        %v3264 = vpack.c.b16 %v3248, %v3248
        %v3265 = vpack.c.b16 %v3249, %v3249
        %v3266 = vpack.c.b16 %v3250, %v3250
        %v3267 = vpack.c.b16 %v3251, %v3251
        %v3268 = vpack.c.b16 %v3252, %v3252
        %v3269 = vpack.c.b16 %v3253, %v3253
        %v3270 = vpack.c.b16 %v3254, %v3254
        %v3271 = vpack.c.b16 %v3255, %v3255
        %v3272 = vpack.c.b16 %v3256, %v3256
        %v3273 = vpack.c.b16 %v3257, %v3257
        %v3274 = vpack.c.b16 %v3258, %v3258
        %v3276 = vshrl.u32 %v3195, 16
        %v3278 = vshll.u32 %v3195, 16
        %v3280 = vrot.slane %v3278, 1
        %v3281 = vor.u32 %v3276, %v3280
        %v3283 = vshll.u32 %v3259, 16
        %v3285 = vrot.slane %v3283, 1
        %v3286 = vsel %vm612, %v3281, %v3285
        %v3288 = vshrl.u32 %v3196, 16
        %v3290 = vshll.u32 %v3196, 16
        %v3292 = vrot.slane %v3290, 1
        %v3293 = vor.u32 %v3288, %v3292
        %v3295 = vshll.u32 %v3260, 16
        %v3297 = vrot.slane %v3295, 1
        %v3298 = vsel %vm612, %v3293, %v3297
        %v3300 = vshrl.u32 %v3197, 16
        %v3302 = vshll.u32 %v3197, 16
        %v3304 = vrot.slane %v3302, 1
        %v3305 = vor.u32 %v3300, %v3304
        %v3307 = vshll.u32 %v3261, 16
        %v3309 = vrot.slane %v3307, 1
        %v3310 = vsel %vm612, %v3305, %v3309
        %v3312 = vshrl.u32 %v3198, 16
        %v3314 = vshll.u32 %v3198, 16
        %v3316 = vrot.slane %v3314, 1
        %v3317 = vor.u32 %v3312, %v3316
        %v3319 = vshll.u32 %v3262, 16
        %v3321 = vrot.slane %v3319, 1
        %v3322 = vsel %vm612, %v3317, %v3321
        %v3324 = vshrl.u32 %v3199, 16
        %v3326 = vshll.u32 %v3199, 16
        %v3328 = vrot.slane %v3326, 1
        %v3329 = vor.u32 %v3324, %v3328
        %v3331 = vshll.u32 %v3263, 16
        %v3333 = vrot.slane %v3331, 1
        %v3334 = vsel %vm612, %v3329, %v3333
        %v3336 = vshrl.u32 %v3200, 16
        %v3338 = vshll.u32 %v3200, 16
        %v3340 = vrot.slane %v3338, 1
        %v3341 = vor.u32 %v3336, %v3340
        %v3343 = vshll.u32 %v3264, 16
        %v3345 = vrot.slane %v3343, 1
        %v3346 = vsel %vm612, %v3341, %v3345
        %v3348 = vshrl.u32 %v3201, 16
        %v3350 = vshll.u32 %v3201, 16
        %v3352 = vrot.slane %v3350, 1
        %v3353 = vor.u32 %v3348, %v3352
        %v3355 = vshll.u32 %v3265, 16
        %v3357 = vrot.slane %v3355, 1
        %v3358 = vsel %vm612, %v3353, %v3357
        %v3360 = vshrl.u32 %v3202, 16
        %v3362 = vshll.u32 %v3202, 16
        %v3364 = vrot.slane %v3362, 1
        %v3365 = vor.u32 %v3360, %v3364
        %v3367 = vshll.u32 %v3266, 16
        %v3369 = vrot.slane %v3367, 1
        %v3370 = vsel %vm612, %v3365, %v3369
        %v3372 = vshrl.u32 %v3203, 16
        %v3374 = vshll.u32 %v3203, 16
        %v3376 = vrot.slane %v3374, 1
        %v3377 = vor.u32 %v3372, %v3376
        %v3379 = vshll.u32 %v3267, 16
        %v3381 = vrot.slane %v3379, 1
        %v3382 = vsel %vm612, %v3377, %v3381
        %v3384 = vshrl.u32 %v3204, 16
        %v3386 = vshll.u32 %v3204, 16
        %v3388 = vrot.slane %v3386, 1
        %v3389 = vor.u32 %v3384, %v3388
        %v3391 = vshll.u32 %v3268, 16
        %v3393 = vrot.slane %v3391, 1
        %v3394 = vsel %vm612, %v3389, %v3393
        %v3396 = vshrl.u32 %v3205, 16
        %v3398 = vshll.u32 %v3205, 16
        %v3400 = vrot.slane %v3398, 1
        %v3401 = vor.u32 %v3396, %v3400
        %v3403 = vshll.u32 %v3269, 16
        %v3405 = vrot.slane %v3403, 1
        %v3406 = vsel %vm612, %v3401, %v3405
        %v3408 = vshrl.u32 %v3206, 16
        %v3410 = vshll.u32 %v3206, 16
        %v3412 = vrot.slane %v3410, 1
        %v3413 = vor.u32 %v3408, %v3412
        %v3415 = vshll.u32 %v3270, 16
        %v3417 = vrot.slane %v3415, 1
        %v3418 = vsel %vm612, %v3413, %v3417
        %v3420 = vshrl.u32 %v3207, 16
        %v3422 = vshll.u32 %v3207, 16
        %v3424 = vrot.slane %v3422, 1
        %v3425 = vor.u32 %v3420, %v3424
        %v3427 = vshll.u32 %v3271, 16
        %v3429 = vrot.slane %v3427, 1
        %v3430 = vsel %vm612, %v3425, %v3429
        %v3432 = vshrl.u32 %v3208, 16
        %v3434 = vshll.u32 %v3208, 16
        %v3436 = vrot.slane %v3434, 1
        %v3437 = vor.u32 %v3432, %v3436
        %v3439 = vshll.u32 %v3272, 16
        %v3441 = vrot.slane %v3439, 1
        %v3442 = vsel %vm612, %v3437, %v3441
        %v3444 = vshrl.u32 %v3209, 16
        %v3446 = vshll.u32 %v3209, 16
        %v3448 = vrot.slane %v3446, 1
        %v3449 = vor.u32 %v3444, %v3448
        %v3451 = vshll.u32 %v3273, 16
        %v3453 = vrot.slane %v3451, 1
        %v3454 = vsel %vm612, %v3449, %v3453
        %v3456 = vshrl.u32 %v3210, 16
        %v3458 = vshll.u32 %v3210, 16
        %v3460 = vrot.slane %v3458, 1
        %v3461 = vor.u32 %v3456, %v3460
        %v3463 = vshll.u32 %v3274, 16
        %v3465 = vrot.slane %v3463, 1
        %v3466 = vsel %vm612, %v3461, %v3465
        %v3499 = vunpack.c.l.b16 %v2986
        %v3500 = vunpack.c.l.b16 %v2987
        %v3501 = vunpack.c.l.b16 %v2988
        %v3502 = vunpack.c.l.b16 %v2989
        %v3503 = vunpack.c.l.b16 %v2990
        %v3504 = vunpack.c.l.b16 %v2991
        %v3505 = vunpack.c.l.b16 %v2992
        %v3506 = vunpack.c.l.b16 %v2993
        %v3507 = vunpack.c.l.b16 %v2994
        %v3508 = vunpack.c.l.b16 %v2995
        %v3509 = vunpack.c.l.b16 %v2996
        %v3510 = vunpack.c.l.b16 %v2997
        %v3511 = vunpack.c.l.b16 %v2998
        %v3512 = vunpack.c.l.b16 %v2999
        %v3513 = vunpack.c.l.b16 %v3000
        %v3514 = vunpack.c.l.b16 %v3001
        %v3515 = vpack.c.b16 %v3164, %v3499
        %v3516 = vpack.c.b16 %v3166, %v3500
        %v3517 = vpack.c.b16 %v3168, %v3501
        %v3518 = vpack.c.b16 %v3170, %v3502
        %v3519 = vpack.c.b16 %v3172, %v3503
        %v3520 = vpack.c.b16 %v3174, %v3504
        %v3521 = vpack.c.b16 %v3176, %v3505
        %v3522 = vpack.c.b16 %v3178, %v3506
        %v3523 = vpack.c.b16 %v3180, %v3507
        %v3524 = vpack.c.b16 %v3182, %v3508
        %v3525 = vpack.c.b16 %v3184, %v3509
        %v3526 = vpack.c.b16 %v3186, %v3510
        %v3527 = vpack.c.b16 %v3188, %v3511
        %v3528 = vpack.c.b16 %v3190, %v3512
        %v3529 = vpack.c.b16 %v3192, %v3513
        %v3530 = vpack.c.b16 %v3194, %v3514
        %v3531 = vrot.slane %v3515, 1
        %v3532 = vrot.slane %v3259, 1
        %v3533 = vsel %vm821, %v3531, %v3532
        %v3534 = vrot.slane %v3516, 1
        %v3535 = vrot.slane %v3260, 1
        %v3536 = vsel %vm821, %v3534, %v3535
        %v3537 = vrot.slane %v3517, 1
        %v3538 = vrot.slane %v3261, 1
        %v3539 = vsel %vm821, %v3537, %v3538
        %v3540 = vrot.slane %v3518, 1
        %v3541 = vrot.slane %v3262, 1
        %v3542 = vsel %vm821, %v3540, %v3541
        %v3543 = vrot.slane %v3519, 1
        %v3544 = vrot.slane %v3263, 1
        %v3545 = vsel %vm821, %v3543, %v3544
        %v3546 = vrot.slane %v3520, 1
        %v3547 = vrot.slane %v3264, 1
        %v3548 = vsel %vm821, %v3546, %v3547
        %v3549 = vrot.slane %v3521, 1
        %v3550 = vrot.slane %v3265, 1
        %v3551 = vsel %vm821, %v3549, %v3550
        %v3552 = vrot.slane %v3522, 1
        %v3553 = vrot.slane %v3266, 1
        %v3554 = vsel %vm821, %v3552, %v3553
        %v3555 = vrot.slane %v3523, 1
        %v3556 = vrot.slane %v3267, 1
        %v3557 = vsel %vm821, %v3555, %v3556
        %v3558 = vrot.slane %v3524, 1
        %v3559 = vrot.slane %v3268, 1
        %v3560 = vsel %vm821, %v3558, %v3559
        %v3561 = vrot.slane %v3525, 1
        %v3562 = vrot.slane %v3269, 1
        %v3563 = vsel %vm821, %v3561, %v3562
        %v3564 = vrot.slane %v3526, 1
        %v3565 = vrot.slane %v3270, 1
        %v3566 = vsel %vm821, %v3564, %v3565
        %v3567 = vrot.slane %v3527, 1
        %v3568 = vrot.slane %v3271, 1
        %v3569 = vsel %vm821, %v3567, %v3568
        %v3570 = vrot.slane %v3528, 1
        %v3571 = vrot.slane %v3272, 1
        %v3572 = vsel %vm821, %v3570, %v3571
        %v3573 = vrot.slane %v3529, 1
        %v3574 = vrot.slane %v3273, 1
        %v3575 = vsel %vm821, %v3573, %v3574
        %v3576 = vrot.slane %v3530, 1
        %v3577 = vrot.slane %v3274, 1
        %v3578 = vsel %vm821, %v3576, %v3577
        %v3627 = vunpack.c.l.b16 %v3002
        %v3628 = vunpack.c.l.b16 %v3003
        %v3629 = vunpack.c.l.b16 %v3004
        %v3630 = vunpack.c.l.b16 %v3005
        %v3631 = vunpack.c.l.b16 %v3006
        %v3632 = vunpack.c.l.b16 %v3007
        %v3633 = vunpack.c.l.b16 %v3008
        %v3634 = vunpack.c.l.b16 %v3009
        %v3635 = vunpack.c.l.b16 %v3010
        %v3636 = vunpack.c.l.b16 %v3011
        %v3637 = vunpack.c.l.b16 %v3012
        %v3638 = vunpack.c.l.b16 %v3013
        %v3639 = vunpack.c.l.b16 %v3014
        %v3640 = vunpack.c.l.b16 %v3015
        %v3641 = vunpack.c.l.b16 %v3016
        %v3642 = vunpack.c.l.b16 %v3017
        %v3643 = vunpack.c.l.b16 %v3018
        %v3644 = vunpack.c.l.b16 %v3019
        %v3645 = vunpack.c.l.b16 %v3020
        %v3646 = vunpack.c.l.b16 %v3021
        %v3647 = vunpack.c.l.b16 %v3022
        %v3648 = vunpack.c.l.b16 %v3023
        %v3649 = vunpack.c.l.b16 %v3024
        %v3650 = vunpack.c.l.b16 %v3025
        %v3651 = vunpack.c.l.b16 %v3026
        %v3652 = vunpack.c.l.b16 %v3027
        %v3653 = vunpack.c.l.b16 %v3028
        %v3654 = vunpack.c.l.b16 %v3029
        %v3655 = vunpack.c.l.b16 %v3030
        %v3656 = vunpack.c.l.b16 %v3031
        %v3657 = vunpack.c.l.b16 %v3032
        %v3658 = vunpack.c.l.b16 %v3033
        %v3659 = vpack.c.b16 %v3628, %v3627
        %v3660 = vpack.c.b16 %v3630, %v3629
        %v3661 = vpack.c.b16 %v3632, %v3631
        %v3662 = vpack.c.b16 %v3634, %v3633
        %v3663 = vpack.c.b16 %v3636, %v3635
        %v3664 = vpack.c.b16 %v3638, %v3637
        %v3665 = vpack.c.b16 %v3640, %v3639
        %v3666 = vpack.c.b16 %v3642, %v3641
        %v3667 = vpack.c.b16 %v3644, %v3643
        %v3668 = vpack.c.b16 %v3646, %v3645
        %v3669 = vpack.c.b16 %v3648, %v3647
        %v3670 = vpack.c.b16 %v3650, %v3649
        %v3671 = vpack.c.b16 %v3652, %v3651
        %v3672 = vpack.c.b16 %v3654, %v3653
        %v3673 = vpack.c.b16 %v3656, %v3655
        %v3674 = vpack.c.b16 %v3658, %v3657
        %v3707 = vunpack.c.l.b16 %v3034
        %v3708 = vunpack.c.l.b16 %v3035
        %v3709 = vunpack.c.l.b16 %v3036
        %v3710 = vunpack.c.l.b16 %v3037
        %v3711 = vunpack.c.l.b16 %v3038
        %v3712 = vunpack.c.l.b16 %v3039
        %v3713 = vunpack.c.l.b16 %v3040
        %v3714 = vunpack.c.l.b16 %v3041
        %v3715 = vunpack.c.l.b16 %v3042
        %v3716 = vunpack.c.l.b16 %v3043
        %v3717 = vunpack.c.l.b16 %v3044
        %v3718 = vunpack.c.l.b16 %v3045
        %v3719 = vunpack.c.l.b16 %v3046
        %v3720 = vunpack.c.l.b16 %v3047
        %v3721 = vunpack.c.l.b16 %v3048
        %v3722 = vunpack.c.l.b16 %v3049
        %v3723 = vpack.c.b16 %v3707, %v3707
        %v3724 = vpack.c.b16 %v3708, %v3708
        %v3725 = vpack.c.b16 %v3709, %v3709
        %v3726 = vpack.c.b16 %v3710, %v3710
        %v3727 = vpack.c.b16 %v3711, %v3711
        %v3728 = vpack.c.b16 %v3712, %v3712
        %v3729 = vpack.c.b16 %v3713, %v3713
        %v3730 = vpack.c.b16 %v3714, %v3714
        %v3731 = vpack.c.b16 %v3715, %v3715
        %v3732 = vpack.c.b16 %v3716, %v3716
        %v3733 = vpack.c.b16 %v3717, %v3717
        %v3734 = vpack.c.b16 %v3718, %v3718
        %v3735 = vpack.c.b16 %v3719, %v3719
        %v3736 = vpack.c.b16 %v3720, %v3720
        %v3737 = vpack.c.b16 %v3721, %v3721
        %v3738 = vpack.c.b16 %v3722, %v3722
        %v3740 = vshrl.u32 %v3659, 16
        %v3742 = vshll.u32 %v3659, 16
        %v3744 = vrot.slane %v3742, 1
        %v3745 = vor.u32 %v3740, %v3744
        %v3747 = vshll.u32 %v3723, 16
        %v3749 = vrot.slane %v3747, 1
        %v3750 = vsel %vm612, %v3745, %v3749
        %v3752 = vshrl.u32 %v3660, 16
        %v3754 = vshll.u32 %v3660, 16
        %v3756 = vrot.slane %v3754, 1
        %v3757 = vor.u32 %v3752, %v3756
        %v3759 = vshll.u32 %v3724, 16
        %v3761 = vrot.slane %v3759, 1
        %v3762 = vsel %vm612, %v3757, %v3761
        %v3764 = vshrl.u32 %v3661, 16
        %v3766 = vshll.u32 %v3661, 16
        %v3768 = vrot.slane %v3766, 1
        %v3769 = vor.u32 %v3764, %v3768
        %v3771 = vshll.u32 %v3725, 16
        %v3773 = vrot.slane %v3771, 1
        %v3774 = vsel %vm612, %v3769, %v3773
        %v3776 = vshrl.u32 %v3662, 16
        %v3778 = vshll.u32 %v3662, 16
        %v3780 = vrot.slane %v3778, 1
        %v3781 = vor.u32 %v3776, %v3780
        %v3783 = vshll.u32 %v3726, 16
        %v3785 = vrot.slane %v3783, 1
        %v3786 = vsel %vm612, %v3781, %v3785
        %v3788 = vshrl.u32 %v3663, 16
        %v3790 = vshll.u32 %v3663, 16
        %v3792 = vrot.slane %v3790, 1
        %v3793 = vor.u32 %v3788, %v3792
        %v3795 = vshll.u32 %v3727, 16
        %v3797 = vrot.slane %v3795, 1
        %v3798 = vsel %vm612, %v3793, %v3797
        %v3800 = vshrl.u32 %v3664, 16
        %v3802 = vshll.u32 %v3664, 16
        %v3804 = vrot.slane %v3802, 1
        %v3805 = vor.u32 %v3800, %v3804
        %v3807 = vshll.u32 %v3728, 16
        %v3809 = vrot.slane %v3807, 1
        %v3810 = vsel %vm612, %v3805, %v3809
        %v3812 = vshrl.u32 %v3665, 16
        %v3814 = vshll.u32 %v3665, 16
        %v3816 = vrot.slane %v3814, 1
        %v3817 = vor.u32 %v3812, %v3816
        %v3819 = vshll.u32 %v3729, 16
        %v3821 = vrot.slane %v3819, 1
        %v3822 = vsel %vm612, %v3817, %v3821
        %v3824 = vshrl.u32 %v3666, 16
        %v3826 = vshll.u32 %v3666, 16
        %v3828 = vrot.slane %v3826, 1
        %v3829 = vor.u32 %v3824, %v3828
        %v3831 = vshll.u32 %v3730, 16
        %v3833 = vrot.slane %v3831, 1
        %v3834 = vsel %vm612, %v3829, %v3833
        %v3836 = vshrl.u32 %v3667, 16
        %v3838 = vshll.u32 %v3667, 16
        %v3840 = vrot.slane %v3838, 1
        %v3841 = vor.u32 %v3836, %v3840
        %v3843 = vshll.u32 %v3731, 16
        %v3845 = vrot.slane %v3843, 1
        %v3846 = vsel %vm612, %v3841, %v3845
        %v3848 = vshrl.u32 %v3668, 16
        %v3850 = vshll.u32 %v3668, 16
        %v3852 = vrot.slane %v3850, 1
        %v3853 = vor.u32 %v3848, %v3852
        %v3855 = vshll.u32 %v3732, 16
        %v3857 = vrot.slane %v3855, 1
        %v3858 = vsel %vm612, %v3853, %v3857
        %v3860 = vshrl.u32 %v3669, 16
        %v3862 = vshll.u32 %v3669, 16
        %v3864 = vrot.slane %v3862, 1
        %v3865 = vor.u32 %v3860, %v3864
        %v3867 = vshll.u32 %v3733, 16
        %v3869 = vrot.slane %v3867, 1
        %v3870 = vsel %vm612, %v3865, %v3869
        %v3872 = vshrl.u32 %v3670, 16
        %v3874 = vshll.u32 %v3670, 16
        %v3876 = vrot.slane %v3874, 1
        %v3877 = vor.u32 %v3872, %v3876
        %v3879 = vshll.u32 %v3734, 16
        %v3881 = vrot.slane %v3879, 1
        %v3882 = vsel %vm612, %v3877, %v3881
        %v3884 = vshrl.u32 %v3671, 16
        %v3886 = vshll.u32 %v3671, 16
        %v3888 = vrot.slane %v3886, 1
        %v3889 = vor.u32 %v3884, %v3888
        %v3891 = vshll.u32 %v3735, 16
        %v3893 = vrot.slane %v3891, 1
        %v3894 = vsel %vm612, %v3889, %v3893
        %v3896 = vshrl.u32 %v3672, 16
        %v3898 = vshll.u32 %v3672, 16
        %v3900 = vrot.slane %v3898, 1
        %v3901 = vor.u32 %v3896, %v3900
        %v3903 = vshll.u32 %v3736, 16
        %v3905 = vrot.slane %v3903, 1
        %v3906 = vsel %vm612, %v3901, %v3905
        %v3908 = vshrl.u32 %v3673, 16
        %v3910 = vshll.u32 %v3673, 16
        %v3912 = vrot.slane %v3910, 1
        %v3913 = vor.u32 %v3908, %v3912
        %v3915 = vshll.u32 %v3737, 16
        %v3917 = vrot.slane %v3915, 1
        %v3918 = vsel %vm612, %v3913, %v3917
        %v3920 = vshrl.u32 %v3674, 16
        %v3922 = vshll.u32 %v3674, 16
        %v3924 = vrot.slane %v3922, 1
        %v3925 = vor.u32 %v3920, %v3924
        %v3927 = vshll.u32 %v3738, 16
        %v3929 = vrot.slane %v3927, 1
        %v3930 = vsel %vm612, %v3925, %v3929
        %v3963 = vunpack.c.l.b16 %v3050
        %v3964 = vunpack.c.l.b16 %v3051
        %v3965 = vunpack.c.l.b16 %v3052
        %v3966 = vunpack.c.l.b16 %v3053
        %v3967 = vunpack.c.l.b16 %v3054
        %v3968 = vunpack.c.l.b16 %v3055
        %v3969 = vunpack.c.l.b16 %v3056
        %v3970 = vunpack.c.l.b16 %v3057
        %v3971 = vunpack.c.l.b16 %v3058
        %v3972 = vunpack.c.l.b16 %v3059
        %v3973 = vunpack.c.l.b16 %v3060
        %v3974 = vunpack.c.l.b16 %v3061
        %v3975 = vunpack.c.l.b16 %v3062
        %v3976 = vunpack.c.l.b16 %v3063
        %v3977 = vunpack.c.l.b16 %v3064
        %v3978 = vunpack.c.l.b16 %v3065
        %v3979 = vpack.c.b16 %v3628, %v3963
        %v3980 = vpack.c.b16 %v3630, %v3964
        %v3981 = vpack.c.b16 %v3632, %v3965
        %v3982 = vpack.c.b16 %v3634, %v3966
        %v3983 = vpack.c.b16 %v3636, %v3967
        %v3984 = vpack.c.b16 %v3638, %v3968
        %v3985 = vpack.c.b16 %v3640, %v3969
        %v3986 = vpack.c.b16 %v3642, %v3970
        %v3987 = vpack.c.b16 %v3644, %v3971
        %v3988 = vpack.c.b16 %v3646, %v3972
        %v3989 = vpack.c.b16 %v3648, %v3973
        %v3990 = vpack.c.b16 %v3650, %v3974
        %v3991 = vpack.c.b16 %v3652, %v3975
        %v3992 = vpack.c.b16 %v3654, %v3976
        %v3993 = vpack.c.b16 %v3656, %v3977
        %v3994 = vpack.c.b16 %v3658, %v3978
        %v3995 = vrot.slane %v3979, 1
        %v3996 = vrot.slane %v3723, 1
        %v3997 = vsel %vm821, %v3995, %v3996
        %v3998 = vrot.slane %v3980, 1
        %v3999 = vrot.slane %v3724, 1
        %v4000 = vsel %vm821, %v3998, %v3999
        %v4001 = vrot.slane %v3981, 1
        %v4002 = vrot.slane %v3725, 1
        %v4003 = vsel %vm821, %v4001, %v4002
        %v4004 = vrot.slane %v3982, 1
        %v4005 = vrot.slane %v3726, 1
        %v4006 = vsel %vm821, %v4004, %v4005
        %v4007 = vrot.slane %v3983, 1
        %v4008 = vrot.slane %v3727, 1
        %v4009 = vsel %vm821, %v4007, %v4008
        %v4010 = vrot.slane %v3984, 1
        %v4011 = vrot.slane %v3728, 1
        %v4012 = vsel %vm821, %v4010, %v4011
        %v4013 = vrot.slane %v3985, 1
        %v4014 = vrot.slane %v3729, 1
        %v4015 = vsel %vm821, %v4013, %v4014
        %v4016 = vrot.slane %v3986, 1
        %v4017 = vrot.slane %v3730, 1
        %v4018 = vsel %vm821, %v4016, %v4017
        %v4019 = vrot.slane %v3987, 1
        %v4020 = vrot.slane %v3731, 1
        %v4021 = vsel %vm821, %v4019, %v4020
        %v4022 = vrot.slane %v3988, 1
        %v4023 = vrot.slane %v3732, 1
        %v4024 = vsel %vm821, %v4022, %v4023
        %v4025 = vrot.slane %v3989, 1
        %v4026 = vrot.slane %v3733, 1
        %v4027 = vsel %vm821, %v4025, %v4026
        %v4028 = vrot.slane %v3990, 1
        %v4029 = vrot.slane %v3734, 1
        %v4030 = vsel %vm821, %v4028, %v4029
        %v4031 = vrot.slane %v3991, 1
        %v4032 = vrot.slane %v3735, 1
        %v4033 = vsel %vm821, %v4031, %v4032
        %v4034 = vrot.slane %v3992, 1
        %v4035 = vrot.slane %v3736, 1
        %v4036 = vsel %vm821, %v4034, %v4035
        %v4037 = vrot.slane %v3993, 1
        %v4038 = vrot.slane %v3737, 1
        %v4039 = vsel %vm821, %v4037, %v4038
        %v4040 = vrot.slane %v3994, 1
        %v4041 = vrot.slane %v3738, 1
        %v4042 = vsel %vm821, %v4040, %v4041
        %v4091 = vunpack.c.l.b16 %v3067
        %v4092 = vunpack.c.l.b16 %v3068
        %v4093 = vunpack.c.l.b16 %v3069
        %v4094 = vunpack.c.l.b16 %v3070
        %v4095 = vunpack.c.l.b16 %v3071
        %v4096 = vunpack.c.l.b16 %v3072
        %v4097 = vunpack.c.l.b16 %v3073
        %v4098 = vunpack.c.l.b16 %v3074
        %v4099 = vunpack.c.l.b16 %v3075
        %v4100 = vunpack.c.l.b16 %v3076
        %v4101 = vunpack.c.l.b16 %v3077
        %v4102 = vunpack.c.l.b16 %v3078
        %v4103 = vunpack.c.l.b16 %v3079
        %v4104 = vunpack.c.l.b16 %v3080
        %v4105 = vunpack.c.l.b16 %v3081
        %v4106 = vunpack.c.l.b16 %v3082
        %v4107 = vunpack.c.l.b16 %v3083
        %v4108 = vunpack.c.l.b16 %v3084
        %v4109 = vunpack.c.l.b16 %v3085
        %v4110 = vunpack.c.l.b16 %v3086
        %v4111 = vunpack.c.l.b16 %v3087
        %v4112 = vunpack.c.l.b16 %v3088
        %v4113 = vunpack.c.l.b16 %v3089
        %v4114 = vunpack.c.l.b16 %v3090
        %v4115 = vunpack.c.l.b16 %v3091
        %v4116 = vunpack.c.l.b16 %v3092
        %v4117 = vunpack.c.l.b16 %v3093
        %v4118 = vunpack.c.l.b16 %v3094
        %v4119 = vunpack.c.l.b16 %v3095
        %v4120 = vunpack.c.l.b16 %v3096
        %v4121 = vunpack.c.l.b16 %v3097
        %v4122 = vunpack.c.l.b16 %v3098
        %v4123 = vpack.c.b16 %v4092, %v4091
        %v4124 = vpack.c.b16 %v4094, %v4093
        %v4125 = vpack.c.b16 %v4096, %v4095
        %v4126 = vpack.c.b16 %v4098, %v4097
        %v4127 = vpack.c.b16 %v4100, %v4099
        %v4128 = vpack.c.b16 %v4102, %v4101
        %v4129 = vpack.c.b16 %v4104, %v4103
        %v4130 = vpack.c.b16 %v4106, %v4105
        %v4131 = vpack.c.b16 %v4108, %v4107
        %v4132 = vpack.c.b16 %v4110, %v4109
        %v4133 = vpack.c.b16 %v4112, %v4111
        %v4134 = vpack.c.b16 %v4114, %v4113
        %v4135 = vpack.c.b16 %v4116, %v4115
        %v4136 = vpack.c.b16 %v4118, %v4117
        %v4137 = vpack.c.b16 %v4120, %v4119
        %v4138 = vpack.c.b16 %v4122, %v4121
        %v4171 = vunpack.c.l.b16 %v3099
        %v4172 = vunpack.c.l.b16 %v3100
        %v4173 = vunpack.c.l.b16 %v3101
        %v4174 = vunpack.c.l.b16 %v3102
        %v4175 = vunpack.c.l.b16 %v3103
        %v4176 = vunpack.c.l.b16 %v3104
        %v4177 = vunpack.c.l.b16 %v3105
        %v4178 = vunpack.c.l.b16 %v3106
        %v4179 = vunpack.c.l.b16 %v3107
        %v4180 = vunpack.c.l.b16 %v3108
        %v4181 = vunpack.c.l.b16 %v3109
        %v4182 = vunpack.c.l.b16 %v3110
        %v4183 = vunpack.c.l.b16 %v3111
        %v4184 = vunpack.c.l.b16 %v3112
        %v4185 = vunpack.c.l.b16 %v3113
        %v4186 = vunpack.c.l.b16 %v3114
        %v4187 = vpack.c.b16 %v4171, %v4171
        %v4188 = vpack.c.b16 %v4172, %v4172
        %v4189 = vpack.c.b16 %v4173, %v4173
        %v4190 = vpack.c.b16 %v4174, %v4174
        %v4191 = vpack.c.b16 %v4175, %v4175
        %v4192 = vpack.c.b16 %v4176, %v4176
        %v4193 = vpack.c.b16 %v4177, %v4177
        %v4194 = vpack.c.b16 %v4178, %v4178
        %v4195 = vpack.c.b16 %v4179, %v4179
        %v4196 = vpack.c.b16 %v4180, %v4180
        %v4197 = vpack.c.b16 %v4181, %v4181
        %v4198 = vpack.c.b16 %v4182, %v4182
        %v4199 = vpack.c.b16 %v4183, %v4183
        %v4200 = vpack.c.b16 %v4184, %v4184
        %v4201 = vpack.c.b16 %v4185, %v4185
        %v4202 = vpack.c.b16 %v4186, %v4186
        %v4204 = vshrl.u32 %v4123, 16
        %v4206 = vshll.u32 %v4123, 16
        %v4208 = vrot.slane %v4206, 1
        %v4209 = vor.u32 %v4204, %v4208
        %v4211 = vshll.u32 %v4187, 16
        %v4213 = vrot.slane %v4211, 1
        %v4214 = vsel %vm612, %v4209, %v4213
        %v4216 = vshrl.u32 %v4124, 16
        %v4218 = vshll.u32 %v4124, 16
        %v4220 = vrot.slane %v4218, 1
        %v4221 = vor.u32 %v4216, %v4220
        %v4223 = vshll.u32 %v4188, 16
        %v4225 = vrot.slane %v4223, 1
        %v4226 = vsel %vm612, %v4221, %v4225
        %v4228 = vshrl.u32 %v4125, 16
        %v4230 = vshll.u32 %v4125, 16
        %v4232 = vrot.slane %v4230, 1
        %v4233 = vor.u32 %v4228, %v4232
        %v4235 = vshll.u32 %v4189, 16
        %v4237 = vrot.slane %v4235, 1
        %v4238 = vsel %vm612, %v4233, %v4237
        %v4240 = vshrl.u32 %v4126, 16
        %v4242 = vshll.u32 %v4126, 16
        %v4244 = vrot.slane %v4242, 1
        %v4245 = vor.u32 %v4240, %v4244
        %v4247 = vshll.u32 %v4190, 16
        %v4249 = vrot.slane %v4247, 1
        %v4250 = vsel %vm612, %v4245, %v4249
        %v4252 = vshrl.u32 %v4127, 16
        %v4254 = vshll.u32 %v4127, 16
        %v4256 = vrot.slane %v4254, 1
        %v4257 = vor.u32 %v4252, %v4256
        %v4259 = vshll.u32 %v4191, 16
        %v4261 = vrot.slane %v4259, 1
        %v4262 = vsel %vm612, %v4257, %v4261
        %v4264 = vshrl.u32 %v4128, 16
        %v4266 = vshll.u32 %v4128, 16
        %v4268 = vrot.slane %v4266, 1
        %v4269 = vor.u32 %v4264, %v4268
        %v4271 = vshll.u32 %v4192, 16
        %v4273 = vrot.slane %v4271, 1
        %v4274 = vsel %vm612, %v4269, %v4273
        %v4276 = vshrl.u32 %v4129, 16
        %v4278 = vshll.u32 %v4129, 16
        %v4280 = vrot.slane %v4278, 1
        %v4281 = vor.u32 %v4276, %v4280
        %v4283 = vshll.u32 %v4193, 16
        %v4285 = vrot.slane %v4283, 1
        %v4286 = vsel %vm612, %v4281, %v4285
        %v4288 = vshrl.u32 %v4130, 16
        %v4290 = vshll.u32 %v4130, 16
        %v4292 = vrot.slane %v4290, 1
        %v4293 = vor.u32 %v4288, %v4292
        %v4295 = vshll.u32 %v4194, 16
        %v4297 = vrot.slane %v4295, 1
        %v4298 = vsel %vm612, %v4293, %v4297
        %v4300 = vshrl.u32 %v4131, 16
        %v4302 = vshll.u32 %v4131, 16
        %v4304 = vrot.slane %v4302, 1
        %v4305 = vor.u32 %v4300, %v4304
        %v4307 = vshll.u32 %v4195, 16
        %v4309 = vrot.slane %v4307, 1
        %v4310 = vsel %vm612, %v4305, %v4309
        %v4312 = vshrl.u32 %v4132, 16
        %v4314 = vshll.u32 %v4132, 16
        %v4316 = vrot.slane %v4314, 1
        %v4317 = vor.u32 %v4312, %v4316
        %v4319 = vshll.u32 %v4196, 16
        %v4321 = vrot.slane %v4319, 1
        %v4322 = vsel %vm612, %v4317, %v4321
        %v4324 = vshrl.u32 %v4133, 16
        %v4326 = vshll.u32 %v4133, 16
        %v4328 = vrot.slane %v4326, 1
        %v4329 = vor.u32 %v4324, %v4328
        %v4331 = vshll.u32 %v4197, 16
        %v4333 = vrot.slane %v4331, 1
        %v4334 = vsel %vm612, %v4329, %v4333
        %v4336 = vshrl.u32 %v4134, 16
        %v4338 = vshll.u32 %v4134, 16
        %v4340 = vrot.slane %v4338, 1
        %v4341 = vor.u32 %v4336, %v4340
        %v4343 = vshll.u32 %v4198, 16
        %v4345 = vrot.slane %v4343, 1
        %v4346 = vsel %vm612, %v4341, %v4345
        %v4348 = vshrl.u32 %v4135, 16
        %v4350 = vshll.u32 %v4135, 16
        %v4352 = vrot.slane %v4350, 1
        %v4353 = vor.u32 %v4348, %v4352
        %v4355 = vshll.u32 %v4199, 16
        %v4357 = vrot.slane %v4355, 1
        %v4358 = vsel %vm612, %v4353, %v4357
        %v4360 = vshrl.u32 %v4136, 16
        %v4362 = vshll.u32 %v4136, 16
        %v4364 = vrot.slane %v4362, 1
        %v4365 = vor.u32 %v4360, %v4364
        %v4367 = vshll.u32 %v4200, 16
        %v4369 = vrot.slane %v4367, 1
        %v4370 = vsel %vm612, %v4365, %v4369
        %v4372 = vshrl.u32 %v4137, 16
        %v4374 = vshll.u32 %v4137, 16
        %v4376 = vrot.slane %v4374, 1
        %v4377 = vor.u32 %v4372, %v4376
        %v4379 = vshll.u32 %v4201, 16
        %v4381 = vrot.slane %v4379, 1
        %v4382 = vsel %vm612, %v4377, %v4381
        %v4384 = vshrl.u32 %v4138, 16
        %v4386 = vshll.u32 %v4138, 16
        %v4388 = vrot.slane %v4386, 1
        %v4389 = vor.u32 %v4384, %v4388
        %v4391 = vshll.u32 %v4202, 16
        %v4393 = vrot.slane %v4391, 1
        %v4394 = vsel %vm612, %v4389, %v4393
        %v4427 = vunpack.c.l.b16 %v3115
        %v4428 = vunpack.c.l.b16 %v3116
        %v4429 = vunpack.c.l.b16 %v3117
        %v4430 = vunpack.c.l.b16 %v3118
        %v4431 = vunpack.c.l.b16 %v3119
        %v4432 = vunpack.c.l.b16 %v3120
        %v4433 = vunpack.c.l.b16 %v3121
        %v4434 = vunpack.c.l.b16 %v3122
        %v4435 = vunpack.c.l.b16 %v3123
        %v4436 = vunpack.c.l.b16 %v3124
        %v4437 = vunpack.c.l.b16 %v3125
        %v4438 = vunpack.c.l.b16 %v3126
        %v4439 = vunpack.c.l.b16 %v3127
        %v4440 = vunpack.c.l.b16 %v3128
        %v4441 = vunpack.c.l.b16 %v3129
        %v4442 = vunpack.c.l.b16 %v3130
        %v4443 = vpack.c.b16 %v4092, %v4427
        %v4444 = vpack.c.b16 %v4094, %v4428
        %v4445 = vpack.c.b16 %v4096, %v4429
        %v4446 = vpack.c.b16 %v4098, %v4430
        %v4447 = vpack.c.b16 %v4100, %v4431
        %v4448 = vpack.c.b16 %v4102, %v4432
        %v4449 = vpack.c.b16 %v4104, %v4433
        %v4450 = vpack.c.b16 %v4106, %v4434
        %v4451 = vpack.c.b16 %v4108, %v4435
        %v4452 = vpack.c.b16 %v4110, %v4436
        %v4453 = vpack.c.b16 %v4112, %v4437
        %v4454 = vpack.c.b16 %v4114, %v4438
        %v4455 = vpack.c.b16 %v4116, %v4439
        %v4456 = vpack.c.b16 %v4118, %v4440
        %v4457 = vpack.c.b16 %v4120, %v4441
        %v4458 = vpack.c.b16 %v4122, %v4442
        %v4459 = vrot.slane %v4443, 1
        %v4460 = vrot.slane %v4187, 1
        %v4461 = vsel %vm821, %v4459, %v4460
        %v4462 = vrot.slane %v4444, 1
        %v4463 = vrot.slane %v4188, 1
        %v4464 = vsel %vm821, %v4462, %v4463
        %v4465 = vrot.slane %v4445, 1
        %v4466 = vrot.slane %v4189, 1
        %v4467 = vsel %vm821, %v4465, %v4466
        %v4468 = vrot.slane %v4446, 1
        %v4469 = vrot.slane %v4190, 1
        %v4470 = vsel %vm821, %v4468, %v4469
        %v4471 = vrot.slane %v4447, 1
        %v4472 = vrot.slane %v4191, 1
        %v4473 = vsel %vm821, %v4471, %v4472
        %v4474 = vrot.slane %v4448, 1
        %v4475 = vrot.slane %v4192, 1
        %v4476 = vsel %vm821, %v4474, %v4475
        %v4477 = vrot.slane %v4449, 1
        %v4478 = vrot.slane %v4193, 1
        %v4479 = vsel %vm821, %v4477, %v4478
        %v4480 = vrot.slane %v4450, 1
        %v4481 = vrot.slane %v4194, 1
        %v4482 = vsel %vm821, %v4480, %v4481
        %v4483 = vrot.slane %v4451, 1
        %v4484 = vrot.slane %v4195, 1
        %v4485 = vsel %vm821, %v4483, %v4484
        %v4486 = vrot.slane %v4452, 1
        %v4487 = vrot.slane %v4196, 1
        %v4488 = vsel %vm821, %v4486, %v4487
        %v4489 = vrot.slane %v4453, 1
        %v4490 = vrot.slane %v4197, 1
        %v4491 = vsel %vm821, %v4489, %v4490
        %v4492 = vrot.slane %v4454, 1
        %v4493 = vrot.slane %v4198, 1
        %v4494 = vsel %vm821, %v4492, %v4493
        %v4495 = vrot.slane %v4455, 1
        %v4496 = vrot.slane %v4199, 1
        %v4497 = vsel %vm821, %v4495, %v4496
        %v4498 = vrot.slane %v4456, 1
        %v4499 = vrot.slane %v4200, 1
        %v4500 = vsel %vm821, %v4498, %v4499
        %v4501 = vrot.slane %v4457, 1
        %v4502 = vrot.slane %v4201, 1
        %v4503 = vsel %vm821, %v4501, %v4502
        %v4504 = vrot.slane %v4458, 1
        %v4505 = vrot.slane %v4202, 1
        %v4506 = vsel %vm821, %v4504, %v4505
        %s4523 = scalar_lea.vmem %s215, 16 [#allocation4]
        %v4524 = vld [vmem:[%s4523] sm:$0xf]
        %v4525 = vld [vmem:[%s4523 + $0x4] sm:$0xf]
        %v4526 = vld [vmem:[%s4523 + $0x8] sm:$0x1]
        %v4527 = vld [vmem:[%s4523 + $0x10] sm:$0xf]
        %v4528 = vld [vmem:[%s4523 + $0x14] sm:$0xf]
        %v4529 = vld [vmem:[%s4523 + $0x18] sm:$0x1]
        %v4530 = vld [vmem:[%s4523 + $0x20] sm:$0xf]
        %v4531 = vld [vmem:[%s4523 + $0x24] sm:$0xf]
        %v4532 = vld [vmem:[%s4523 + $0x28] sm:$0x1]
        %v4533 = vld [vmem:[%s4523 + $0x30] sm:$0xf]
        %v4534 = vld [vmem:[%s4523 + $0x34] sm:$0xf]
        %v4535 = vld [vmem:[%s4523 + $0x38] sm:$0x1]
        %v4536 = vld [vmem:[%s4523 + $0x40] sm:$0xf]
        %v4537 = vld [vmem:[%s4523 + $0x44] sm:$0xf]
        %v4538 = vld [vmem:[%s4523 + $0x48] sm:$0x1]
        %v4539 = vld [vmem:[%s4523 + $0x50] sm:$0xf]
        %v4540 = vld [vmem:[%s4523 + $0x54] sm:$0xf]
        %v4541 = vld [vmem:[%s4523 + $0x58] sm:$0x1]
        %v4542 = vld [vmem:[%s4523 + $0x60] sm:$0xf]
        %v4543 = vld [vmem:[%s4523 + $0x64] sm:$0xf]
        %v4544 = vld [vmem:[%s4523 + $0x68] sm:$0x1]
        %v4545 = vld [vmem:[%s4523 + $0x70] sm:$0xf]
        %v4546 = vld [vmem:[%s4523 + $0x74] sm:$0xf]
        %v4547 = vld [vmem:[%s4523 + $0x78] sm:$0x1]
        %v4548 = vld [vmem:[%s4523 + $0x80] sm:$0xf]
        %v4549 = vld [vmem:[%s4523 + $0x84] sm:$0xf]
        %v4550 = vld [vmem:[%s4523 + $0x88] sm:$0x1]
        %v4551 = vld [vmem:[%s4523 + $0x90] sm:$0xf]
        %v4552 = vld [vmem:[%s4523 + $0x94] sm:$0xf]
        %v4553 = vld [vmem:[%s4523 + $0x98] sm:$0x1]
        %v4554 = vld [vmem:[%s4523 + $0xa0] sm:$0xf]
        %v4555 = vld [vmem:[%s4523 + $0xa4] sm:$0xf]
        %v4556 = vld [vmem:[%s4523 + $0xa8] sm:$0x1]
        %v4557 = vld [vmem:[%s4523 + $0xb0] sm:$0xf]
        %v4558 = vld [vmem:[%s4523 + $0xb4] sm:$0xf]
        %v4559 = vld [vmem:[%s4523 + $0xb8] sm:$0x1]
        %v4560 = vld [vmem:[%s4523 + $0xc0] sm:$0xf]
        %v4561 = vld [vmem:[%s4523 + $0xc4] sm:$0xf]
        %v4562 = vld [vmem:[%s4523 + $0xc8] sm:$0x1]
        %v4563 = vld [vmem:[%s4523 + $0xd0] sm:$0xf]
        %v4564 = vld [vmem:[%s4523 + $0xd4] sm:$0xf]
        %v4565 = vld [vmem:[%s4523 + $0xd8] sm:$0x1]
        %v4566 = vld [vmem:[%s4523 + $0xe0] sm:$0xf]
        %v4567 = vld [vmem:[%s4523 + $0xe4] sm:$0xf]
        %v4568 = vld [vmem:[%s4523 + $0xe8] sm:$0x1]
        %v4569 = vld [vmem:[%s4523 + $0xf0] sm:$0xf]
        %v4570 = vld [vmem:[%s4523 + $0xf4] sm:$0xf]
        %v4571 = vld [vmem:[%s4523 + $0xf8] sm:$0x1]
        %vm4572 = vsmask.f32 3328
        %vm4573 = vsmask.f32 7440
        %vm4574 = vmor %vm4572, %vm4573
        %v4576 = vshrl.u32 %v4524, 16
        %v4578 = vrot.slane %v4576, 4
        %v4579 = vshll.u32 %v4524, 16
        %v4581 = vrot.slane %v4579, 5
        %v4582 = vor.u32 %v4578, %v4581
        %v4583 = vrot.slane %v4582, 4
        %v4585 = vshll.u32 %v4525, 16
        %v4587 = vrot.slane %v4585, 5
        %v4588 = vsel %vm4574, %v4583, %v4587
        %v4589 = vshrl.u32 %v4525, 16
        %v4591 = vrot.slane %v4589, 4
        %v4592 = vor.u32 %v4591, %v4587
        %v4593 = vrot.slane %v4592, 4
        %v4595 = vshll.u32 %v4526, 16
        %v4597 = vrot.slane %v4595, 5
        %v4598 = vsel %vm4574, %v4593, %v4597
        %v4600 = vshrl.u32 %v4527, 16
        %v4602 = vrot.slane %v4600, 4
        %v4603 = vshll.u32 %v4527, 16
        %v4605 = vrot.slane %v4603, 5
        %v4606 = vor.u32 %v4602, %v4605
        %v4607 = vrot.slane %v4606, 4
        %v4609 = vshll.u32 %v4528, 16
        %v4611 = vrot.slane %v4609, 5
        %v4612 = vsel %vm4574, %v4607, %v4611
        %v4613 = vshrl.u32 %v4528, 16
        %v4615 = vrot.slane %v4613, 4
        %v4616 = vor.u32 %v4615, %v4611
        %v4617 = vrot.slane %v4616, 4
        %v4619 = vshll.u32 %v4529, 16
        %v4621 = vrot.slane %v4619, 5
        %v4622 = vsel %vm4574, %v4617, %v4621
        %v4624 = vshrl.u32 %v4530, 16
        %v4626 = vrot.slane %v4624, 4
        %v4627 = vshll.u32 %v4530, 16
        %v4629 = vrot.slane %v4627, 5
        %v4630 = vor.u32 %v4626, %v4629
        %v4631 = vrot.slane %v4630, 4
        %v4633 = vshll.u32 %v4531, 16
        %v4635 = vrot.slane %v4633, 5
        %v4636 = vsel %vm4574, %v4631, %v4635
        %v4637 = vshrl.u32 %v4531, 16
        %v4639 = vrot.slane %v4637, 4
        %v4640 = vor.u32 %v4639, %v4635
        %v4641 = vrot.slane %v4640, 4
        %v4643 = vshll.u32 %v4532, 16
        %v4645 = vrot.slane %v4643, 5
        %v4646 = vsel %vm4574, %v4641, %v4645
        %v4648 = vshrl.u32 %v4533, 16
        %v4650 = vrot.slane %v4648, 4
        %v4651 = vshll.u32 %v4533, 16
        %v4653 = vrot.slane %v4651, 5
        %v4654 = vor.u32 %v4650, %v4653
        %v4655 = vrot.slane %v4654, 4
        %v4657 = vshll.u32 %v4534, 16
        %v4659 = vrot.slane %v4657, 5
        %v4660 = vsel %vm4574, %v4655, %v4659
        %v4661 = vshrl.u32 %v4534, 16
        %v4663 = vrot.slane %v4661, 4
        %v4664 = vor.u32 %v4663, %v4659
        %v4665 = vrot.slane %v4664, 4
        %v4667 = vshll.u32 %v4535, 16
        %v4669 = vrot.slane %v4667, 5
        %v4670 = vsel %vm4574, %v4665, %v4669
        %v4672 = vshrl.u32 %v4536, 16
        %v4674 = vrot.slane %v4672, 4
        %v4675 = vshll.u32 %v4536, 16
        %v4677 = vrot.slane %v4675, 5
        %v4678 = vor.u32 %v4674, %v4677
        %v4679 = vrot.slane %v4678, 4
        %v4681 = vshll.u32 %v4537, 16
        %v4683 = vrot.slane %v4681, 5
        %v4684 = vsel %vm4574, %v4679, %v4683
        %v4685 = vshrl.u32 %v4537, 16
        %v4687 = vrot.slane %v4685, 4
        %v4688 = vor.u32 %v4687, %v4683
        %v4689 = vrot.slane %v4688, 4
        %v4691 = vshll.u32 %v4538, 16
        %v4693 = vrot.slane %v4691, 5
        %v4694 = vsel %vm4574, %v4689, %v4693
        %v4696 = vshrl.u32 %v4539, 16
        %v4698 = vrot.slane %v4696, 4
        %v4699 = vshll.u32 %v4539, 16
        %v4701 = vrot.slane %v4699, 5
        %v4702 = vor.u32 %v4698, %v4701
        %v4703 = vrot.slane %v4702, 4
        %v4705 = vshll.u32 %v4540, 16
        %v4707 = vrot.slane %v4705, 5
        %v4708 = vsel %vm4574, %v4703, %v4707
        %v4709 = vshrl.u32 %v4540, 16
        %v4711 = vrot.slane %v4709, 4
        %v4712 = vor.u32 %v4711, %v4707
        %v4713 = vrot.slane %v4712, 4
        %v4715 = vshll.u32 %v4541, 16
        %v4717 = vrot.slane %v4715, 5
        %v4718 = vsel %vm4574, %v4713, %v4717
        %v4720 = vshrl.u32 %v4542, 16
        %v4722 = vrot.slane %v4720, 4
        %v4723 = vshll.u32 %v4542, 16
        %v4725 = vrot.slane %v4723, 5
        %v4726 = vor.u32 %v4722, %v4725
        %v4727 = vrot.slane %v4726, 4
        %v4729 = vshll.u32 %v4543, 16
        %v4731 = vrot.slane %v4729, 5
        %v4732 = vsel %vm4574, %v4727, %v4731
        %v4733 = vshrl.u32 %v4543, 16
        %v4735 = vrot.slane %v4733, 4
        %v4736 = vor.u32 %v4735, %v4731
        %v4737 = vrot.slane %v4736, 4
        %v4739 = vshll.u32 %v4544, 16
        %v4741 = vrot.slane %v4739, 5
        %v4742 = vsel %vm4574, %v4737, %v4741
        %v4744 = vshrl.u32 %v4545, 16
        %v4746 = vrot.slane %v4744, 4
        %v4747 = vshll.u32 %v4545, 16
        %v4749 = vrot.slane %v4747, 5
        %v4750 = vor.u32 %v4746, %v4749
        %v4751 = vrot.slane %v4750, 4
        %v4753 = vshll.u32 %v4546, 16
        %v4755 = vrot.slane %v4753, 5
        %v4756 = vsel %vm4574, %v4751, %v4755
        %v4757 = vshrl.u32 %v4546, 16
        %v4759 = vrot.slane %v4757, 4
        %v4760 = vor.u32 %v4759, %v4755
        %v4761 = vrot.slane %v4760, 4
        %v4763 = vshll.u32 %v4547, 16
        %v4765 = vrot.slane %v4763, 5
        %v4766 = vsel %vm4574, %v4761, %v4765
        %v4768 = vshrl.u32 %v4548, 16
        %v4770 = vrot.slane %v4768, 4
        %v4771 = vshll.u32 %v4548, 16
        %v4773 = vrot.slane %v4771, 5
        %v4774 = vor.u32 %v4770, %v4773
        %v4775 = vrot.slane %v4774, 4
        %v4777 = vshll.u32 %v4549, 16
        %v4779 = vrot.slane %v4777, 5
        %v4780 = vsel %vm4574, %v4775, %v4779
        %v4781 = vshrl.u32 %v4549, 16
        %v4783 = vrot.slane %v4781, 4
        %v4784 = vor.u32 %v4783, %v4779
        %v4785 = vrot.slane %v4784, 4
        %v4787 = vshll.u32 %v4550, 16
        %v4789 = vrot.slane %v4787, 5
        %v4790 = vsel %vm4574, %v4785, %v4789
        %v4792 = vshrl.u32 %v4551, 16
        %v4794 = vrot.slane %v4792, 4
        %v4795 = vshll.u32 %v4551, 16
        %v4797 = vrot.slane %v4795, 5
        %v4798 = vor.u32 %v4794, %v4797
        %v4799 = vrot.slane %v4798, 4
        %v4801 = vshll.u32 %v4552, 16
        %v4803 = vrot.slane %v4801, 5
        %v4804 = vsel %vm4574, %v4799, %v4803
        %v4805 = vshrl.u32 %v4552, 16
        %v4807 = vrot.slane %v4805, 4
        %v4808 = vor.u32 %v4807, %v4803
        %v4809 = vrot.slane %v4808, 4
        %v4811 = vshll.u32 %v4553, 16
        %v4813 = vrot.slane %v4811, 5
        %v4814 = vsel %vm4574, %v4809, %v4813
        %v4816 = vshrl.u32 %v4554, 16
        %v4818 = vrot.slane %v4816, 4
        %v4819 = vshll.u32 %v4554, 16
        %v4821 = vrot.slane %v4819, 5
        %v4822 = vor.u32 %v4818, %v4821
        %v4823 = vrot.slane %v4822, 4
        %v4825 = vshll.u32 %v4555, 16
        %v4827 = vrot.slane %v4825, 5
        %v4828 = vsel %vm4574, %v4823, %v4827
        %v4829 = vshrl.u32 %v4555, 16
        %v4831 = vrot.slane %v4829, 4
        %v4832 = vor.u32 %v4831, %v4827
        %v4833 = vrot.slane %v4832, 4
        %v4835 = vshll.u32 %v4556, 16
        %v4837 = vrot.slane %v4835, 5
        %v4838 = vsel %vm4574, %v4833, %v4837
        %v4840 = vshrl.u32 %v4557, 16
        %v4842 = vrot.slane %v4840, 4
        %v4843 = vshll.u32 %v4557, 16
        %v4845 = vrot.slane %v4843, 5
        %v4846 = vor.u32 %v4842, %v4845
        %v4847 = vrot.slane %v4846, 4
        %v4849 = vshll.u32 %v4558, 16
        %v4851 = vrot.slane %v4849, 5
        %v4852 = vsel %vm4574, %v4847, %v4851
        %v4853 = vshrl.u32 %v4558, 16
        %v4855 = vrot.slane %v4853, 4
        %v4856 = vor.u32 %v4855, %v4851
        %v4857 = vrot.slane %v4856, 4
        %v4859 = vshll.u32 %v4559, 16
        %v4861 = vrot.slane %v4859, 5
        %v4862 = vsel %vm4574, %v4857, %v4861
        %v4864 = vshrl.u32 %v4560, 16
        %v4866 = vrot.slane %v4864, 4
        %v4867 = vshll.u32 %v4560, 16
        %v4869 = vrot.slane %v4867, 5
        %v4870 = vor.u32 %v4866, %v4869
        %v4871 = vrot.slane %v4870, 4
        %v4873 = vshll.u32 %v4561, 16
        %v4875 = vrot.slane %v4873, 5
        %v4876 = vsel %vm4574, %v4871, %v4875
        %v4877 = vshrl.u32 %v4561, 16
        %v4879 = vrot.slane %v4877, 4
        %v4880 = vor.u32 %v4879, %v4875
        %v4881 = vrot.slane %v4880, 4
        %v4883 = vshll.u32 %v4562, 16
        %v4885 = vrot.slane %v4883, 5
        %v4886 = vsel %vm4574, %v4881, %v4885
        %v4888 = vshrl.u32 %v4563, 16
        %v4890 = vrot.slane %v4888, 4
        %v4891 = vshll.u32 %v4563, 16
        %v4893 = vrot.slane %v4891, 5
        %v4894 = vor.u32 %v4890, %v4893
        %v4895 = vrot.slane %v4894, 4
        %v4897 = vshll.u32 %v4564, 16
        %v4899 = vrot.slane %v4897, 5
        %v4900 = vsel %vm4574, %v4895, %v4899
        %v4901 = vshrl.u32 %v4564, 16
        %v4903 = vrot.slane %v4901, 4
        %v4904 = vor.u32 %v4903, %v4899
        %v4905 = vrot.slane %v4904, 4
        %v4907 = vshll.u32 %v4565, 16
        %v4909 = vrot.slane %v4907, 5
        %v4910 = vsel %vm4574, %v4905, %v4909
        %v4912 = vshrl.u32 %v4566, 16
        %v4914 = vrot.slane %v4912, 4
        %v4915 = vshll.u32 %v4566, 16
        %v4917 = vrot.slane %v4915, 5
        %v4918 = vor.u32 %v4914, %v4917
        %v4919 = vrot.slane %v4918, 4
        %v4921 = vshll.u32 %v4567, 16
        %v4923 = vrot.slane %v4921, 5
        %v4924 = vsel %vm4574, %v4919, %v4923
        %v4925 = vshrl.u32 %v4567, 16
        %v4927 = vrot.slane %v4925, 4
        %v4928 = vor.u32 %v4927, %v4923
        %v4929 = vrot.slane %v4928, 4
        %v4931 = vshll.u32 %v4568, 16
        %v4933 = vrot.slane %v4931, 5
        %v4934 = vsel %vm4574, %v4929, %v4933
        %v4936 = vshrl.u32 %v4569, 16
        %v4938 = vrot.slane %v4936, 4
        %v4939 = vshll.u32 %v4569, 16
        %v4941 = vrot.slane %v4939, 5
        %v4942 = vor.u32 %v4938, %v4941
        %v4943 = vrot.slane %v4942, 4
        %v4945 = vshll.u32 %v4570, 16
        %v4947 = vrot.slane %v4945, 5
        %v4948 = vsel %vm4574, %v4943, %v4947
        %v4949 = vshrl.u32 %v4570, 16
        %v4951 = vrot.slane %v4949, 4
        %v4952 = vor.u32 %v4951, %v4947
        %v4953 = vrot.slane %v4952, 4
        %v4955 = vshll.u32 %v4571, 16
        %v4957 = vrot.slane %v4955, 5
        %v4958 = vsel %vm4574, %v4953, %v4957
        %v4959 = vunpack.c.l.b16 %v4588
        %v4960 = vunpack.c.l.b16 %v4598
        %v4961 = vunpack.c.l.b16 %v4612
        %v4962 = vunpack.c.l.b16 %v4622
        %v4963 = vunpack.c.l.b16 %v4636
        %v4964 = vunpack.c.l.b16 %v4646
        %v4965 = vunpack.c.l.b16 %v4660
        %v4966 = vunpack.c.l.b16 %v4670
        %v4967 = vunpack.c.l.b16 %v4684
        %v4968 = vunpack.c.l.b16 %v4694
        %v4969 = vunpack.c.l.b16 %v4708
        %v4970 = vunpack.c.l.b16 %v4718
        %v4971 = vunpack.c.l.b16 %v4732
        %v4972 = vunpack.c.l.b16 %v4742
        %v4973 = vunpack.c.l.b16 %v4756
        %v4974 = vunpack.c.l.b16 %v4766
        %v4975 = vunpack.c.l.b16 %v4780
        %v4976 = vunpack.c.l.b16 %v4790
        %v4977 = vunpack.c.l.b16 %v4804
        %v4978 = vunpack.c.l.b16 %v4814
        %v4979 = vunpack.c.l.b16 %v4828
        %v4980 = vunpack.c.l.b16 %v4838
        %v4981 = vunpack.c.l.b16 %v4852
        %v4982 = vunpack.c.l.b16 %v4862
        %v4983 = vunpack.c.l.b16 %v4876
        %v4984 = vunpack.c.l.b16 %v4886
        %v4985 = vunpack.c.l.b16 %v4900
        %v4986 = vunpack.c.l.b16 %v4910
        %v4987 = vunpack.c.l.b16 %v4924
        %v4988 = vunpack.c.l.b16 %v4934
        %v4989 = vunpack.c.l.b16 %v4948
        %v4990 = vunpack.c.l.b16 %v4958
        %v4991 = vpack.c.b16 %v4960, %v4959
        %v4992 = vpack.c.b16 %v4962, %v4961
        %v4993 = vpack.c.b16 %v4964, %v4963
        %v4994 = vpack.c.b16 %v4966, %v4965
        %v4995 = vpack.c.b16 %v4968, %v4967
        %v4996 = vpack.c.b16 %v4970, %v4969
        %v4997 = vpack.c.b16 %v4972, %v4971
        %v4998 = vpack.c.b16 %v4974, %v4973
        %v4999 = vpack.c.b16 %v4976, %v4975
        %v5000 = vpack.c.b16 %v4978, %v4977
        %v5001 = vpack.c.b16 %v4980, %v4979
        %v5002 = vpack.c.b16 %v4982, %v4981
        %v5003 = vpack.c.b16 %v4984, %v4983
        %v5004 = vpack.c.b16 %v4986, %v4985
        %v5005 = vpack.c.b16 %v4988, %v4987
        %v5006 = vpack.c.b16 %v4990, %v4989
        %v5023 = vld [vmem:[#allocation9] sm:$0xf]
        %v5024 = vld [vmem:[#allocation9 + $0x4] sm:$0xf]
        %v5025 = vld [vmem:[#allocation9 + $0x8] sm:$0xf]
        %v5026 = vld [vmem:[#allocation9 + $0xc] sm:$0xf]
        %v5027 = vld [vmem:[#allocation9 + $0x10] sm:$0xf]
        %v5028 = vld [vmem:[#allocation9 + $0x14] sm:$0xf]
        %v5029 = vld [vmem:[#allocation9 + $0x18] sm:$0xf]
        %v5030 = vld [vmem:[#allocation9 + $0x1c] sm:$0xf]
        %v5031 = vld [vmem:[#allocation9 + $0x20] sm:$0xf]
        %v5032 = vld [vmem:[#allocation9 + $0x24] sm:$0xf]
        %v5033 = vld [vmem:[#allocation9 + $0x28] sm:$0xf]
        %v5034 = vld [vmem:[#allocation9 + $0x2c] sm:$0xf]
        %v5035 = vld [vmem:[#allocation9 + $0x30] sm:$0xf]
        %v5036 = vld [vmem:[#allocation9 + $0x34] sm:$0xf]
        %v5037 = vld [vmem:[#allocation9 + $0x38] sm:$0xf]
        %v5038 = vld [vmem:[#allocation9 + $0x3c] sm:$0xf]
        %v5039 = vld [vmem:[#allocation9 + $0x40] sm:$0xf]
        %v5040 = vld [vmem:[#allocation9 + $0x44] sm:$0xf]
        %v5041 = vld [vmem:[#allocation9 + $0x48] sm:$0xf]
        %v5042 = vld [vmem:[#allocation9 + $0x4c] sm:$0xf]
        %v5043 = vld [vmem:[#allocation9 + $0x50] sm:$0xf]
        %v5044 = vld [vmem:[#allocation9 + $0x54] sm:$0xf]
        %v5045 = vld [vmem:[#allocation9 + $0x58] sm:$0xf]
        %v5046 = vld [vmem:[#allocation9 + $0x5c] sm:$0xf]
        %v5047 = vld [vmem:[#allocation9 + $0x60] sm:$0xf]
        %v5048 = vld [vmem:[#allocation9 + $0x64] sm:$0xf]
        %v5049 = vld [vmem:[#allocation9 + $0x68] sm:$0xf]
        %v5050 = vld [vmem:[#allocation9 + $0x6c] sm:$0xf]
        %v5051 = vld [vmem:[#allocation9 + $0x70] sm:$0xf]
        %v5052 = vld [vmem:[#allocation9 + $0x74] sm:$0xf]
        %v5053 = vld [vmem:[#allocation9 + $0x78] sm:$0xf]
        %v5054 = vld [vmem:[#allocation9 + $0x7c] sm:$0xf]
        %v5055 = vld [vmem:[#allocation9 + $0x80] sm:$0xf]
        %v5056 = vld [vmem:[#allocation9 + $0x84] sm:$0xf]
        %v5057 = vld [vmem:[#allocation9 + $0x88] sm:$0xf]
        %v5058 = vld [vmem:[#allocation9 + $0x8c] sm:$0xf]
        %v5059 = vld [vmem:[#allocation9 + $0x90] sm:$0xf]
        %v5060 = vld [vmem:[#allocation9 + $0x94] sm:$0xf]
        %v5061 = vld [vmem:[#allocation9 + $0x98] sm:$0xf]
        %v5062 = vld [vmem:[#allocation9 + $0x9c] sm:$0xf]
        %v5063 = vld [vmem:[#allocation9 + $0xa0] sm:$0xf]
        %v5064 = vld [vmem:[#allocation9 + $0xa4] sm:$0xf]
        %v5065 = vld [vmem:[#allocation9 + $0xa8] sm:$0xf]
        %v5066 = vld [vmem:[#allocation9 + $0xac] sm:$0xf]
        %v5067 = vld [vmem:[#allocation9 + $0xb0] sm:$0xf]
        %v5068 = vld [vmem:[#allocation9 + $0xb4] sm:$0xf]
        %v5069 = vld [vmem:[#allocation9 + $0xb8] sm:$0xf]
        %v5070 = vld [vmem:[#allocation9 + $0xbc] sm:$0xf]
        %v5071 = vld [vmem:[#allocation9 + $0xc0] sm:$0xf]
        %v5072 = vld [vmem:[#allocation9 + $0xc4] sm:$0xf]
        %v5073 = vld [vmem:[#allocation9 + $0xc8] sm:$0xf]
        %v5074 = vld [vmem:[#allocation9 + $0xcc] sm:$0xf]
        %v5075 = vld [vmem:[#allocation9 + $0xd0] sm:$0xf]
        %v5076 = vld [vmem:[#allocation9 + $0xd4] sm:$0xf]
        %v5077 = vld [vmem:[#allocation9 + $0xd8] sm:$0xf]
        %v5078 = vld [vmem:[#allocation9 + $0xdc] sm:$0xf]
        %v5079 = vld [vmem:[#allocation9 + $0xe0] sm:$0xf]
        %v5080 = vld [vmem:[#allocation9 + $0xe4] sm:$0xf]
        %v5081 = vld [vmem:[#allocation9 + $0xe8] sm:$0xf]
        %v5082 = vld [vmem:[#allocation9 + $0xec] sm:$0xf]
        %v5083 = vld [vmem:[#allocation9 + $0xf0] sm:$0xf]
        %v5084 = vld [vmem:[#allocation9 + $0xf4] sm:$0xf]
        %v5085 = vld [vmem:[#allocation9 + $0xf8] sm:$0xf]
        %v5086 = vld [vmem:[#allocation9 + $0xfc] sm:$0xf]
        %v5087 = vld [vmem:[#allocation9 + $0x100] sm:$0xf]
        %v5088 = vld [vmem:[#allocation9 + $0x104] sm:$0xf]
        %v5089 = vld [vmem:[#allocation9 + $0x108] sm:$0xf]
        %v5090 = vld [vmem:[#allocation9 + $0x10c] sm:$0xf]
        %v5091 = vld [vmem:[#allocation9 + $0x110] sm:$0xf]
        %v5092 = vld [vmem:[#allocation9 + $0x114] sm:$0xf]
        %v5093 = vld [vmem:[#allocation9 + $0x118] sm:$0xf]
        %v5094 = vld [vmem:[#allocation9 + $0x11c] sm:$0xf]
        %v5095 = vld [vmem:[#allocation9 + $0x120] sm:$0xf]
        %v5096 = vld [vmem:[#allocation9 + $0x124] sm:$0xf]
        %v5097 = vld [vmem:[#allocation9 + $0x128] sm:$0xf]
        %v5098 = vld [vmem:[#allocation9 + $0x12c] sm:$0xf]
        %v5099 = vld [vmem:[#allocation9 + $0x130] sm:$0xf]
        %v5100 = vld [vmem:[#allocation9 + $0x134] sm:$0xf]
        %v5101 = vld [vmem:[#allocation9 + $0x138] sm:$0xf]
        %v5102 = vld [vmem:[#allocation9 + $0x13c] sm:$0xf]
        %v5103 = vld [vmem:[#allocation9 + $0x140] sm:$0xf]
        %v5104 = vld [vmem:[#allocation9 + $0x144] sm:$0xf]
        %v5105 = vld [vmem:[#allocation9 + $0x148] sm:$0xf]
        %v5106 = vld [vmem:[#allocation9 + $0x14c] sm:$0xf]
        %v5107 = vld [vmem:[#allocation9 + $0x150] sm:$0xf]
        %v5108 = vld [vmem:[#allocation9 + $0x154] sm:$0xf]
        %v5109 = vld [vmem:[#allocation9 + $0x158] sm:$0xf]
        %v5110 = vld [vmem:[#allocation9 + $0x15c] sm:$0xf]
        %v5111 = vld [vmem:[#allocation9 + $0x160] sm:$0xf]
        %v5112 = vld [vmem:[#allocation9 + $0x164] sm:$0xf]
        %v5113 = vld [vmem:[#allocation9 + $0x168] sm:$0xf]
        %v5114 = vld [vmem:[#allocation9 + $0x16c] sm:$0xf]
        %v5115 = vld [vmem:[#allocation9 + $0x170] sm:$0xf]
        %v5116 = vld [vmem:[#allocation9 + $0x174] sm:$0xf]
        %v5117 = vld [vmem:[#allocation9 + $0x178] sm:$0xf]
        %v5118 = vld [vmem:[#allocation9 + $0x17c] sm:$0xf]
        %v5119 = vld [vmem:[#allocation9 + $0x180] sm:$0xf]
        %v5120 = vld [vmem:[#allocation9 + $0x184] sm:$0xf]
        %v5121 = vld [vmem:[#allocation9 + $0x188] sm:$0xf]
        %v5122 = vld [vmem:[#allocation9 + $0x18c] sm:$0xf]
        %v5123 = vld [vmem:[#allocation9 + $0x190] sm:$0xf]
        %v5124 = vld [vmem:[#allocation9 + $0x194] sm:$0xf]
        %v5125 = vld [vmem:[#allocation9 + $0x198] sm:$0xf]
        %v5126 = vld [vmem:[#allocation9 + $0x19c] sm:$0xf]
        %v5127 = vld [vmem:[#allocation9 + $0x1a0] sm:$0xf]
        %v5128 = vld [vmem:[#allocation9 + $0x1a4] sm:$0xf]
        %v5129 = vld [vmem:[#allocation9 + $0x1a8] sm:$0xf]
        %v5130 = vld [vmem:[#allocation9 + $0x1ac] sm:$0xf]
        %v5131 = vld [vmem:[#allocation9 + $0x1b0] sm:$0xf]
        %v5132 = vld [vmem:[#allocation9 + $0x1b4] sm:$0xf]
        %v5133 = vld [vmem:[#allocation9 + $0x1b8] sm:$0xf]
        %v5134 = vld [vmem:[#allocation9 + $0x1bc] sm:$0xf]
        %v5135 = vld [vmem:[#allocation9 + $0x1c0] sm:$0xf]
        %v5136 = vld [vmem:[#allocation9 + $0x1c4] sm:$0xf]
        %v5137 = vld [vmem:[#allocation9 + $0x1c8] sm:$0xf]
        %v5138 = vld [vmem:[#allocation9 + $0x1cc] sm:$0xf]
        %v5139 = vld [vmem:[#allocation9 + $0x1d0] sm:$0xf]
        %v5140 = vld [vmem:[#allocation9 + $0x1d4] sm:$0xf]
        %v5141 = vld [vmem:[#allocation9 + $0x1d8] sm:$0xf]
        %v5142 = vld [vmem:[#allocation9 + $0x1dc] sm:$0xf]
        %v5143 = vld [vmem:[#allocation9 + $0x1e0] sm:$0xf]
        %v5144 = vld [vmem:[#allocation9 + $0x1e4] sm:$0xf]
        %v5145 = vld [vmem:[#allocation9 + $0x1e8] sm:$0xf]
        %v5146 = vld [vmem:[#allocation9 + $0x1ec] sm:$0xf]
        %v5147 = vld [vmem:[#allocation9 + $0x1f0] sm:$0xf]
        %v5148 = vld [vmem:[#allocation9 + $0x1f4] sm:$0xf]
        %v5149 = vld [vmem:[#allocation9 + $0x1f8] sm:$0xf]
        %v5150 = vld [vmem:[#allocation9 + $0x1fc] sm:$0xf]
        %v5151 = vld [vmem:[#allocation9 + $0x200] sm:$0xf]
        %v5152 = vld [vmem:[#allocation9 + $0x204] sm:$0xf]
        %v5153 = vld [vmem:[#allocation9 + $0x208] sm:$0xf]
        %v5154 = vld [vmem:[#allocation9 + $0x20c] sm:$0xf]
        %v5155 = vld [vmem:[#allocation9 + $0x210] sm:$0xf]
        %v5156 = vld [vmem:[#allocation9 + $0x214] sm:$0xf]
        %v5157 = vld [vmem:[#allocation9 + $0x218] sm:$0xf]
        %v5158 = vld [vmem:[#allocation9 + $0x21c] sm:$0xf]
        %v5159 = vld [vmem:[#allocation9 + $0x220] sm:$0xf]
        %v5160 = vld [vmem:[#allocation9 + $0x224] sm:$0xf]
        %v5161 = vld [vmem:[#allocation9 + $0x228] sm:$0xf]
        %v5162 = vld [vmem:[#allocation9 + $0x22c] sm:$0xf]
        %v5163 = vld [vmem:[#allocation9 + $0x230] sm:$0xf]
        %v5164 = vld [vmem:[#allocation9 + $0x234] sm:$0xf]
        %v5165 = vld [vmem:[#allocation9 + $0x238] sm:$0xf]
        %v5166 = vld [vmem:[#allocation9 + $0x23c] sm:$0xf]
        %v5167 = vld [vmem:[#allocation9 + $0x240] sm:$0xf]
        %v5168 = vld [vmem:[#allocation9 + $0x244] sm:$0xf]
        %v5169 = vld [vmem:[#allocation9 + $0x248] sm:$0xf]
        %v5170 = vld [vmem:[#allocation9 + $0x24c] sm:$0xf]
        %v5171 = vld [vmem:[#allocation9 + $0x250] sm:$0xf]
        %v5172 = vld [vmem:[#allocation9 + $0x254] sm:$0xf]
        %v5173 = vld [vmem:[#allocation9 + $0x258] sm:$0xf]
        %v5174 = vld [vmem:[#allocation9 + $0x25c] sm:$0xf]
        %v5175 = vld [vmem:[#allocation9 + $0x260] sm:$0xf]
        %v5176 = vld [vmem:[#allocation9 + $0x264] sm:$0xf]
        %v5177 = vld [vmem:[#allocation9 + $0x268] sm:$0xf]
        %v5178 = vld [vmem:[#allocation9 + $0x26c] sm:$0xf]
        %v5179 = vld [vmem:[#allocation9 + $0x270] sm:$0xf]
        %v5180 = vld [vmem:[#allocation9 + $0x274] sm:$0xf]
        %v5181 = vld [vmem:[#allocation9 + $0x278] sm:$0xf]
        %v5182 = vld [vmem:[#allocation9 + $0x27c] sm:$0xf]
        %v5183 = vld [vmem:[%s3 + $0x1] sm:$0x1]
        %v5184 = vperm.slane %v5183, 0
        %v5345 = vunpack.c.l.b16 %v5023
        %v5346 = vunpack.c.l.b16 %v5024
        %v5347 = vunpack.c.l.b16 %v5025
        %v5348 = vunpack.c.l.b16 %v5026
        %v5349 = vunpack.c.l.b16 %v5027
        %v5350 = vunpack.c.l.b16 %v5028
        %v5351 = vunpack.c.l.b16 %v5029
        %v5352 = vunpack.c.l.b16 %v5030
        %v5353 = vunpack.c.l.b16 %v5031
        %v5354 = vunpack.c.l.b16 %v5032
        %v5355 = vunpack.c.l.b16 %v5033
        %v5356 = vunpack.c.l.b16 %v5034
        %v5357 = vunpack.c.l.b16 %v5035
        %v5358 = vunpack.c.l.b16 %v5036
        %v5359 = vunpack.c.l.b16 %v5037
        %v5360 = vunpack.c.l.b16 %v5038
        %v5361 = vunpack.c.l.b16 %v5039
        %v5362 = vunpack.c.l.b16 %v5040
        %v5363 = vunpack.c.l.b16 %v5041
        %v5364 = vunpack.c.l.b16 %v5042
        %v5365 = vunpack.c.l.b16 %v5043
        %v5366 = vunpack.c.l.b16 %v5044
        %v5367 = vunpack.c.l.b16 %v5045
        %v5368 = vunpack.c.l.b16 %v5046
        %v5369 = vunpack.c.l.b16 %v5047
        %v5370 = vunpack.c.l.b16 %v5048
        %v5371 = vunpack.c.l.b16 %v5049
        %v5372 = vunpack.c.l.b16 %v5050
        %v5373 = vunpack.c.l.b16 %v5051
        %v5374 = vunpack.c.l.b16 %v5052
        %v5375 = vunpack.c.l.b16 %v5053
        %v5376 = vunpack.c.l.b16 %v5054
        %v5377 = vunpack.c.l.b16 %v5055
        %v5378 = vunpack.c.l.b16 %v5056
        %v5379 = vunpack.c.l.b16 %v5057
        %v5380 = vunpack.c.l.b16 %v5058
        %v5381 = vunpack.c.l.b16 %v5059
        %v5382 = vunpack.c.l.b16 %v5060
        %v5383 = vunpack.c.l.b16 %v5061
        %v5384 = vunpack.c.l.b16 %v5062
        %v5385 = vunpack.c.l.b16 %v5063
        %v5386 = vunpack.c.l.b16 %v5064
        %v5387 = vunpack.c.l.b16 %v5065
        %v5388 = vunpack.c.l.b16 %v5066
        %v5389 = vunpack.c.l.b16 %v5067
        %v5390 = vunpack.c.l.b16 %v5068
        %v5391 = vunpack.c.l.b16 %v5069
        %v5392 = vunpack.c.l.b16 %v5070
        %v5393 = vunpack.c.l.b16 %v5071
        %v5394 = vunpack.c.l.b16 %v5072
        %v5395 = vunpack.c.l.b16 %v5073
        %v5396 = vunpack.c.l.b16 %v5074
        %v5397 = vunpack.c.l.b16 %v5075
        %v5398 = vunpack.c.l.b16 %v5076
        %v5399 = vunpack.c.l.b16 %v5077
        %v5400 = vunpack.c.l.b16 %v5078
        %v5401 = vunpack.c.l.b16 %v5079
        %v5402 = vunpack.c.l.b16 %v5080
        %v5403 = vunpack.c.l.b16 %v5081
        %v5404 = vunpack.c.l.b16 %v5082
        %v5405 = vunpack.c.l.b16 %v5083
        %v5406 = vunpack.c.l.b16 %v5084
        %v5407 = vunpack.c.l.b16 %v5085
        %v5408 = vunpack.c.l.b16 %v5086
        %v5409 = vunpack.c.l.b16 %v5087
        %v5410 = vunpack.c.l.b16 %v5088
        %v5411 = vunpack.c.l.b16 %v5089
        %v5412 = vunpack.c.l.b16 %v5090
        %v5413 = vunpack.c.l.b16 %v5091
        %v5414 = vunpack.c.l.b16 %v5092
        %v5415 = vunpack.c.l.b16 %v5093
        %v5416 = vunpack.c.l.b16 %v5094
        %v5417 = vunpack.c.l.b16 %v5095
        %v5418 = vunpack.c.l.b16 %v5096
        %v5419 = vunpack.c.l.b16 %v5097
        %v5420 = vunpack.c.l.b16 %v5098
        %v5421 = vunpack.c.l.b16 %v5099
        %v5422 = vunpack.c.l.b16 %v5100
        %v5423 = vunpack.c.l.b16 %v5101
        %v5424 = vunpack.c.l.b16 %v5102
        %v5425 = vunpack.c.l.b16 %v5103
        %v5426 = vunpack.c.l.b16 %v5104
        %v5427 = vunpack.c.l.b16 %v5105
        %v5428 = vunpack.c.l.b16 %v5106
        %v5429 = vunpack.c.l.b16 %v5107
        %v5430 = vunpack.c.l.b16 %v5108
        %v5431 = vunpack.c.l.b16 %v5109
        %v5432 = vunpack.c.l.b16 %v5110
        %v5433 = vunpack.c.l.b16 %v5111
        %v5434 = vunpack.c.l.b16 %v5112
        %v5435 = vunpack.c.l.b16 %v5113
        %v5436 = vunpack.c.l.b16 %v5114
        %v5437 = vunpack.c.l.b16 %v5115
        %v5438 = vunpack.c.l.b16 %v5116
        %v5439 = vunpack.c.l.b16 %v5117
        %v5440 = vunpack.c.l.b16 %v5118
        %v5441 = vunpack.c.l.b16 %v5119
        %v5442 = vunpack.c.l.b16 %v5120
        %v5443 = vunpack.c.l.b16 %v5121
        %v5444 = vunpack.c.l.b16 %v5122
        %v5445 = vunpack.c.l.b16 %v5123
        %v5446 = vunpack.c.l.b16 %v5124
        %v5447 = vunpack.c.l.b16 %v5125
        %v5448 = vunpack.c.l.b16 %v5126
        %v5449 = vunpack.c.l.b16 %v5127
        %v5450 = vunpack.c.l.b16 %v5128
        %v5451 = vunpack.c.l.b16 %v5129
        %v5452 = vunpack.c.l.b16 %v5130
        %v5453 = vunpack.c.l.b16 %v5131
        %v5454 = vunpack.c.l.b16 %v5132
        %v5455 = vunpack.c.l.b16 %v5133
        %v5456 = vunpack.c.l.b16 %v5134
        %v5457 = vunpack.c.l.b16 %v5135
        %v5458 = vunpack.c.l.b16 %v5136
        %v5459 = vunpack.c.l.b16 %v5137
        %v5460 = vunpack.c.l.b16 %v5138
        %v5461 = vunpack.c.l.b16 %v5139
        %v5462 = vunpack.c.l.b16 %v5140
        %v5463 = vunpack.c.l.b16 %v5141
        %v5464 = vunpack.c.l.b16 %v5142
        %v5465 = vunpack.c.l.b16 %v5143
        %v5466 = vunpack.c.l.b16 %v5144
        %v5467 = vunpack.c.l.b16 %v5145
        %v5468 = vunpack.c.l.b16 %v5146
        %v5469 = vunpack.c.l.b16 %v5147
        %v5470 = vunpack.c.l.b16 %v5148
        %v5471 = vunpack.c.l.b16 %v5149
        %v5472 = vunpack.c.l.b16 %v5150
        %v5473 = vunpack.c.l.b16 %v5151
        %v5474 = vunpack.c.l.b16 %v5152
        %v5475 = vunpack.c.l.b16 %v5153
        %v5476 = vunpack.c.l.b16 %v5154
        %v5477 = vunpack.c.l.b16 %v5155
        %v5478 = vunpack.c.l.b16 %v5156
        %v5479 = vunpack.c.l.b16 %v5157
        %v5480 = vunpack.c.l.b16 %v5158
        %v5481 = vunpack.c.l.b16 %v5159
        %v5482 = vunpack.c.l.b16 %v5160
        %v5483 = vunpack.c.l.b16 %v5161
        %v5484 = vunpack.c.l.b16 %v5162
        %v5485 = vunpack.c.l.b16 %v5163
        %v5486 = vunpack.c.l.b16 %v5164
        %v5487 = vunpack.c.l.b16 %v5165
        %v5488 = vunpack.c.l.b16 %v5166
        %v5489 = vunpack.c.l.b16 %v5167
        %v5490 = vunpack.c.l.b16 %v5168
        %v5491 = vunpack.c.l.b16 %v5169
        %v5492 = vunpack.c.l.b16 %v5170
        %v5493 = vunpack.c.l.b16 %v5171
        %v5494 = vunpack.c.l.b16 %v5172
        %v5495 = vunpack.c.l.b16 %v5173
        %v5496 = vunpack.c.l.b16 %v5174
        %v5497 = vunpack.c.l.b16 %v5175
        %v5498 = vunpack.c.l.b16 %v5176
        %v5499 = vunpack.c.l.b16 %v5177
        %v5500 = vunpack.c.l.b16 %v5178
        %v5501 = vunpack.c.l.b16 %v5179
        %v5502 = vunpack.c.l.b16 %v5180
        %v5503 = vunpack.c.l.b16 %v5181
        %v5504 = vunpack.c.l.b16 %v5182
        %v5505 = vpack.c.b16 %v5346, %v5345
        %v5506 = vpack.c.b16 %v5348, %v5347
        %v5507 = vpack.c.b16 %v5350, %v5349
        %v5508 = vpack.c.b16 %v5352, %v5351
        %v5509 = vpack.c.b16 %v5354, %v5353
        %v5510 = vpack.c.b16 %v5356, %v5355
        %v5511 = vpack.c.b16 %v5358, %v5357
        %v5512 = vpack.c.b16 %v5360, %v5359
        %v5513 = vpack.c.b16 %v5362, %v5361
        %v5514 = vpack.c.b16 %v5364, %v5363
        %v5515 = vpack.c.b16 %v5366, %v5365
        %v5516 = vpack.c.b16 %v5368, %v5367
        %v5517 = vpack.c.b16 %v5370, %v5369
        %v5518 = vpack.c.b16 %v5372, %v5371
        %v5519 = vpack.c.b16 %v5374, %v5373
        %v5520 = vpack.c.b16 %v5376, %v5375
        %v5521 = vpack.c.b16 %v5378, %v5377
        %v5522 = vpack.c.b16 %v5380, %v5379
        %v5523 = vpack.c.b16 %v5382, %v5381
        %v5524 = vpack.c.b16 %v5384, %v5383
        %v5525 = vpack.c.b16 %v5386, %v5385
        %v5526 = vpack.c.b16 %v5388, %v5387
        %v5527 = vpack.c.b16 %v5390, %v5389
        %v5528 = vpack.c.b16 %v5392, %v5391
        %v5529 = vpack.c.b16 %v5394, %v5393
        %v5530 = vpack.c.b16 %v5396, %v5395
        %v5531 = vpack.c.b16 %v5398, %v5397
        %v5532 = vpack.c.b16 %v5400, %v5399
        %v5533 = vpack.c.b16 %v5402, %v5401
        %v5534 = vpack.c.b16 %v5404, %v5403
        %v5535 = vpack.c.b16 %v5406, %v5405
        %v5536 = vpack.c.b16 %v5408, %v5407
        %v5537 = vpack.c.b16 %v5410, %v5409
        %v5538 = vpack.c.b16 %v5412, %v5411
        %v5539 = vpack.c.b16 %v5414, %v5413
        %v5540 = vpack.c.b16 %v5416, %v5415
        %v5541 = vpack.c.b16 %v5418, %v5417
        %v5542 = vpack.c.b16 %v5420, %v5419
        %v5543 = vpack.c.b16 %v5422, %v5421
        %v5544 = vpack.c.b16 %v5424, %v5423
        %v5545 = vpack.c.b16 %v5426, %v5425
        %v5546 = vpack.c.b16 %v5428, %v5427
        %v5547 = vpack.c.b16 %v5430, %v5429
        %v5548 = vpack.c.b16 %v5432, %v5431
        %v5549 = vpack.c.b16 %v5434, %v5433
        %v5550 = vpack.c.b16 %v5436, %v5435
        %v5551 = vpack.c.b16 %v5438, %v5437
        %v5552 = vpack.c.b16 %v5440, %v5439
        %v5553 = vpack.c.b16 %v5442, %v5441
        %v5554 = vpack.c.b16 %v5444, %v5443
        %v5555 = vpack.c.b16 %v5446, %v5445
        %v5556 = vpack.c.b16 %v5448, %v5447
        %v5557 = vpack.c.b16 %v5450, %v5449
        %v5558 = vpack.c.b16 %v5452, %v5451
        %v5559 = vpack.c.b16 %v5454, %v5453
        %v5560 = vpack.c.b16 %v5456, %v5455
        %v5561 = vpack.c.b16 %v5458, %v5457
        %v5562 = vpack.c.b16 %v5460, %v5459
        %v5563 = vpack.c.b16 %v5462, %v5461
        %v5564 = vpack.c.b16 %v5464, %v5463
        %v5565 = vpack.c.b16 %v5466, %v5465
        %v5566 = vpack.c.b16 %v5468, %v5467
        %v5567 = vpack.c.b16 %v5470, %v5469
        %v5568 = vpack.c.b16 %v5472, %v5471
        %v5569 = vpack.c.b16 %v5474, %v5473
        %v5570 = vpack.c.b16 %v5476, %v5475
        %v5571 = vpack.c.b16 %v5478, %v5477
        %v5572 = vpack.c.b16 %v5480, %v5479
        %v5573 = vpack.c.b16 %v5482, %v5481
        %v5574 = vpack.c.b16 %v5484, %v5483
        %v5575 = vpack.c.b16 %v5486, %v5485
        %v5576 = vpack.c.b16 %v5488, %v5487
        %v5577 = vpack.c.b16 %v5490, %v5489
        %v5578 = vpack.c.b16 %v5492, %v5491
        %v5579 = vpack.c.b16 %v5494, %v5493
        %v5580 = vpack.c.b16 %v5496, %v5495
        %v5581 = vpack.c.b16 %v5498, %v5497
        %v5582 = vpack.c.b16 %v5500, %v5499
        %v5583 = vpack.c.b16 %v5502, %v5501
        %v5584 = vpack.c.b16 %v5504, %v5503
        %5665 = vmatpush.bf16.msra.mxu0 %v5512
        %5666 = vmatpush.bf16.msra.mxu0 %v5511
        %5667 = vmatpush.bf16.msra.mxu0 %v5510
        %5668 = vmatpush.bf16.msra.mxu0 %v5509
        %5669 = vmatpush.bf16.msra.mxu0 %v5508
        %5670 = vmatpush.bf16.msra.mxu0 %v5507
        %5671 = vmatpush.bf16.msra.mxu0 %v5506
        %5672 = vmatpush.bf16.msra.mxu0 %v5505
        %5673 = vmatmul.bf16.gmra.mxu0 %v3195
        %v5674 = vpop.f32.mrf.mxu0
        %v5675 = vadd.f32 %v5184, %v5674
        %v5676 = vpop.f32.mrf.mxu0
        %v5677 = vadd.f32 %v5184, %v5676
        %5678 = vmatmul.bf16.gmra.mxu0 %v3196
        %v5679 = vpop.f32.mrf.mxu0
        %v5680 = vadd.f32 %v5184, %v5679
        %v5681 = vpop.f32.mrf.mxu0
        %v5682 = vadd.f32 %v5184, %v5681
        %5683 = vmatmul.bf16.gmra.mxu0 %v3197
        %v5684 = vpop.f32.mrf.mxu0
        %v5685 = vadd.f32 %v5184, %v5684
        %v5686 = vpop.f32.mrf.mxu0
        %v5687 = vadd.f32 %v5184, %v5686
        %5688 = vmatmul.bf16.gmra.mxu0 %v3198
        %v5689 = vpop.f32.mrf.mxu0
        %v5690 = vadd.f32 %v5184, %v5689
        %v5691 = vpop.f32.mrf.mxu0
        %v5692 = vadd.f32 %v5184, %v5691
        %5693 = vmatmul.bf16.gmra.mxu0 %v3199
        %v5694 = vpop.f32.mrf.mxu0
        %v5695 = vadd.f32 %v5184, %v5694
        %v5696 = vpop.f32.mrf.mxu0
        %v5697 = vadd.f32 %v5184, %v5696
        %5698 = vmatmul.bf16.gmra.mxu0 %v3200
        %v5699 = vpop.f32.mrf.mxu0
        %v5700 = vadd.f32 %v5184, %v5699
        %v5701 = vpop.f32.mrf.mxu0
        %v5702 = vadd.f32 %v5184, %v5701
        %5703 = vmatmul.bf16.gmra.mxu0 %v3201
        %v5704 = vpop.f32.mrf.mxu0
        %v5705 = vadd.f32 %v5184, %v5704
        %v5706 = vpop.f32.mrf.mxu0
        %v5707 = vadd.f32 %v5184, %v5706
        %5708 = vmatmul.bf16.gmra.mxu0 %v3202
        %v5709 = vpop.f32.mrf.mxu0
        %v5710 = vadd.f32 %v5184, %v5709
        %v5711 = vpop.f32.mrf.mxu0
        %v5712 = vadd.f32 %v5184, %v5711
        %5713 = vmatmul.bf16.gmra.mxu0 %v3203
        %v5714 = vpop.f32.mrf.mxu0
        %v5715 = vadd.f32 %v5184, %v5714
        %v5716 = vpop.f32.mrf.mxu0
        %v5717 = vadd.f32 %v5184, %v5716
        %5718 = vmatmul.bf16.gmra.mxu0 %v3204
        %v5719 = vpop.f32.mrf.mxu0
        %v5720 = vadd.f32 %v5184, %v5719
        %v5721 = vpop.f32.mrf.mxu0
        %v5722 = vadd.f32 %v5184, %v5721
        %5723 = vmatmul.bf16.gmra.mxu0 %v3205
        %v5724 = vpop.f32.mrf.mxu0
        %v5725 = vadd.f32 %v5184, %v5724
        %v5726 = vpop.f32.mrf.mxu0
        %v5727 = vadd.f32 %v5184, %v5726
        %5728 = vmatmul.bf16.gmra.mxu0 %v3206
        %v5729 = vpop.f32.mrf.mxu0
        %v5730 = vadd.f32 %v5184, %v5729
        %v5731 = vpop.f32.mrf.mxu0
        %v5732 = vadd.f32 %v5184, %v5731
        %5733 = vmatmul.bf16.gmra.mxu0 %v3207
        %v5734 = vpop.f32.mrf.mxu0
        %v5735 = vadd.f32 %v5184, %v5734
        %v5736 = vpop.f32.mrf.mxu0
        %v5737 = vadd.f32 %v5184, %v5736
        %5738 = vmatmul.bf16.gmra.mxu0 %v3208
        %v5739 = vpop.f32.mrf.mxu0
        %v5740 = vadd.f32 %v5184, %v5739
        %v5741 = vpop.f32.mrf.mxu0
        %v5742 = vadd.f32 %v5184, %v5741
        %5743 = vmatmul.bf16.gmra.mxu0 %v3209
        %v5744 = vpop.f32.mrf.mxu0
        %v5745 = vadd.f32 %v5184, %v5744
        %v5746 = vpop.f32.mrf.mxu0
        %v5747 = vadd.f32 %v5184, %v5746
        %5748 = vmatmul.bf16.gmra.mxu0 %v3210
        %v5749 = vpop.f32.mrf.mxu0
        %v5750 = vadd.f32 %v5184, %v5749
        %v5751 = vpop.f32.mrf.mxu0
        %v5752 = vadd.f32 %v5184, %v5751
        %5753 = vdwg.mxu0
        %5754 = vmatpush.bf16.msra.mxu0 %v5520
        %5755 = vmatpush.bf16.msra.mxu0 %v5519
        %5756 = vmatpush.bf16.msra.mxu0 %v5518
        %5757 = vmatpush.bf16.msra.mxu0 %v5517
        %5758 = vmatpush.bf16.msra.mxu0 %v5516
        %5759 = vmatpush.bf16.msra.mxu0 %v5515
        %5760 = vmatpush.bf16.msra.mxu0 %v5514
        %5761 = vmatpush.bf16.msra.mxu0 %v5513
        %5762 = vmatmul.bf16.gmra.mxu0 %v3286
        %v5763 = vpop.f32.mrf.mxu0
        %v5764 = vadd.f32 %v5675, %v5763
        %v5765 = vpop.f32.mrf.mxu0
        %v5766 = vadd.f32 %v5677, %v5765
        %5767 = vmatmul.bf16.gmra.mxu0 %v3298
        %v5768 = vpop.f32.mrf.mxu0
        %v5769 = vadd.f32 %v5680, %v5768
        %v5770 = vpop.f32.mrf.mxu0
        %v5771 = vadd.f32 %v5682, %v5770
        %5772 = vmatmul.bf16.gmra.mxu0 %v3310
        %v5773 = vpop.f32.mrf.mxu0
        %v5774 = vadd.f32 %v5685, %v5773
        %v5775 = vpop.f32.mrf.mxu0
        %v5776 = vadd.f32 %v5687, %v5775
        %5777 = vmatmul.bf16.gmra.mxu0 %v3322
        %v5778 = vpop.f32.mrf.mxu0
        %v5779 = vadd.f32 %v5690, %v5778
        %v5780 = vpop.f32.mrf.mxu0
        %v5781 = vadd.f32 %v5692, %v5780
        %5782 = vmatmul.bf16.gmra.mxu0 %v3334
        %v5783 = vpop.f32.mrf.mxu0
        %v5784 = vadd.f32 %v5695, %v5783
        %v5785 = vpop.f32.mrf.mxu0
        %v5786 = vadd.f32 %v5697, %v5785
        %5787 = vmatmul.bf16.gmra.mxu0 %v3346
        %v5788 = vpop.f32.mrf.mxu0
        %v5789 = vadd.f32 %v5700, %v5788
        %v5790 = vpop.f32.mrf.mxu0
        %v5791 = vadd.f32 %v5702, %v5790
        %5792 = vmatmul.bf16.gmra.mxu0 %v3358
        %v5793 = vpop.f32.mrf.mxu0
        %v5794 = vadd.f32 %v5705, %v5793
        %v5795 = vpop.f32.mrf.mxu0
        %v5796 = vadd.f32 %v5707, %v5795
        %5797 = vmatmul.bf16.gmra.mxu0 %v3370
        %v5798 = vpop.f32.mrf.mxu0
        %v5799 = vadd.f32 %v5710, %v5798
        %v5800 = vpop.f32.mrf.mxu0
        %v5801 = vadd.f32 %v5712, %v5800
        %5802 = vmatmul.bf16.gmra.mxu0 %v3382
        %v5803 = vpop.f32.mrf.mxu0
        %v5804 = vadd.f32 %v5715, %v5803
        %v5805 = vpop.f32.mrf.mxu0
        %v5806 = vadd.f32 %v5717, %v5805
        %5807 = vmatmul.bf16.gmra.mxu0 %v3394
        %v5808 = vpop.f32.mrf.mxu0
        %v5809 = vadd.f32 %v5720, %v5808
        %v5810 = vpop.f32.mrf.mxu0
        %v5811 = vadd.f32 %v5722, %v5810
        %5812 = vmatmul.bf16.gmra.mxu0 %v3406
        %v5813 = vpop.f32.mrf.mxu0
        %v5814 = vadd.f32 %v5725, %v5813
        %v5815 = vpop.f32.mrf.mxu0
        %v5816 = vadd.f32 %v5727, %v5815
        %5817 = vmatmul.bf16.gmra.mxu0 %v3418
        %v5818 = vpop.f32.mrf.mxu0
        %v5819 = vadd.f32 %v5730, %v5818
        %v5820 = vpop.f32.mrf.mxu0
        %v5821 = vadd.f32 %v5732, %v5820
        %5822 = vmatmul.bf16.gmra.mxu0 %v3430
        %v5823 = vpop.f32.mrf.mxu0
        %v5824 = vadd.f32 %v5735, %v5823
        %v5825 = vpop.f32.mrf.mxu0
        %v5826 = vadd.f32 %v5737, %v5825
        %5827 = vmatmul.bf16.gmra.mxu0 %v3442
        %v5828 = vpop.f32.mrf.mxu0
        %v5829 = vadd.f32 %v5740, %v5828
        %v5830 = vpop.f32.mrf.mxu0
        %v5831 = vadd.f32 %v5742, %v5830
        %5832 = vmatmul.bf16.gmra.mxu0 %v3454
        %v5833 = vpop.f32.mrf.mxu0
        %v5834 = vadd.f32 %v5745, %v5833
        %v5835 = vpop.f32.mrf.mxu0
        %v5836 = vadd.f32 %v5747, %v5835
        %5837 = vmatmul.bf16.gmra.mxu0 %v3466
        %v5838 = vpop.f32.mrf.mxu0
        %v5839 = vadd.f32 %v5750, %v5838
        %v5840 = vpop.f32.mrf.mxu0
        %v5841 = vadd.f32 %v5752, %v5840
        %5842 = vdwg.mxu0
        %5843 = vmatpush.bf16.msra.mxu0 %v5528
        %5844 = vmatpush.bf16.msra.mxu0 %v5527
        %5845 = vmatpush.bf16.msra.mxu0 %v5526
        %5846 = vmatpush.bf16.msra.mxu0 %v5525
        %5847 = vmatpush.bf16.msra.mxu0 %v5524
        %5848 = vmatpush.bf16.msra.mxu0 %v5523
        %5849 = vmatpush.bf16.msra.mxu0 %v5522
        %5850 = vmatpush.bf16.msra.mxu0 %v5521
        %5851 = vmatmul.bf16.gmra.mxu0 %v3533
        %v5852 = vpop.f32.mrf.mxu0
        %v5853 = vadd.f32 %v5764, %v5852
        %v5854 = vpop.f32.mrf.mxu0
        %v5855 = vadd.f32 %v5766, %v5854
        %5856 = vmatmul.bf16.gmra.mxu0 %v3536
        %v5857 = vpop.f32.mrf.mxu0
        %v5858 = vadd.f32 %v5769, %v5857
        %v5859 = vpop.f32.mrf.mxu0
        %v5860 = vadd.f32 %v5771, %v5859
        %5861 = vmatmul.bf16.gmra.mxu0 %v3539
        %v5862 = vpop.f32.mrf.mxu0
        %v5863 = vadd.f32 %v5774, %v5862
        %v5864 = vpop.f32.mrf.mxu0
        %v5865 = vadd.f32 %v5776, %v5864
        %5866 = vmatmul.bf16.gmra.mxu0 %v3542
        %v5867 = vpop.f32.mrf.mxu0
        %v5868 = vadd.f32 %v5779, %v5867
        %v5869 = vpop.f32.mrf.mxu0
        %v5870 = vadd.f32 %v5781, %v5869
        %5871 = vmatmul.bf16.gmra.mxu0 %v3545
        %v5872 = vpop.f32.mrf.mxu0
        %v5873 = vadd.f32 %v5784, %v5872
        %v5874 = vpop.f32.mrf.mxu0
        %v5875 = vadd.f32 %v5786, %v5874
        %5876 = vmatmul.bf16.gmra.mxu0 %v3548
        %v5877 = vpop.f32.mrf.mxu0
        %v5878 = vadd.f32 %v5789, %v5877
        %v5879 = vpop.f32.mrf.mxu0
        %v5880 = vadd.f32 %v5791, %v5879
        %5881 = vmatmul.bf16.gmra.mxu0 %v3551
        %v5882 = vpop.f32.mrf.mxu0
        %v5883 = vadd.f32 %v5794, %v5882
        %v5884 = vpop.f32.mrf.mxu0
        %v5885 = vadd.f32 %v5796, %v5884
        %5886 = vmatmul.bf16.gmra.mxu0 %v3554
        %v5887 = vpop.f32.mrf.mxu0
        %v5888 = vadd.f32 %v5799, %v5887
        %v5889 = vpop.f32.mrf.mxu0
        %v5890 = vadd.f32 %v5801, %v5889
        %5891 = vmatmul.bf16.gmra.mxu0 %v3557
        %v5892 = vpop.f32.mrf.mxu0
        %v5893 = vadd.f32 %v5804, %v5892
        %v5894 = vpop.f32.mrf.mxu0
        %v5895 = vadd.f32 %v5806, %v5894
        %5896 = vmatmul.bf16.gmra.mxu0 %v3560
        %v5897 = vpop.f32.mrf.mxu0
        %v5898 = vadd.f32 %v5809, %v5897
        %v5899 = vpop.f32.mrf.mxu0
        %v5900 = vadd.f32 %v5811, %v5899
        %5901 = vmatmul.bf16.gmra.mxu0 %v3563
        %v5902 = vpop.f32.mrf.mxu0
        %v5903 = vadd.f32 %v5814, %v5902
        %v5904 = vpop.f32.mrf.mxu0
        %v5905 = vadd.f32 %v5816, %v5904
        %5906 = vmatmul.bf16.gmra.mxu0 %v3566
        %v5907 = vpop.f32.mrf.mxu0
        %v5908 = vadd.f32 %v5819, %v5907
        %v5909 = vpop.f32.mrf.mxu0
        %v5910 = vadd.f32 %v5821, %v5909
        %5911 = vmatmul.bf16.gmra.mxu0 %v3569
        %v5912 = vpop.f32.mrf.mxu0
        %v5913 = vadd.f32 %v5824, %v5912
        %v5914 = vpop.f32.mrf.mxu0
        %v5915 = vadd.f32 %v5826, %v5914
        %5916 = vmatmul.bf16.gmra.mxu0 %v3572
        %v5917 = vpop.f32.mrf.mxu0
        %v5918 = vadd.f32 %v5829, %v5917
        %v5919 = vpop.f32.mrf.mxu0
        %v5920 = vadd.f32 %v5831, %v5919
        %5921 = vmatmul.bf16.gmra.mxu0 %v3575
        %v5922 = vpop.f32.mrf.mxu0
        %v5923 = vadd.f32 %v5834, %v5922
        %v5924 = vpop.f32.mrf.mxu0
        %v5925 = vadd.f32 %v5836, %v5924
        %5926 = vmatmul.bf16.gmra.mxu0 %v3578
        %v5927 = vpop.f32.mrf.mxu0
        %v5928 = vadd.f32 %v5839, %v5927
        %v5929 = vpop.f32.mrf.mxu0
        %v5930 = vadd.f32 %v5841, %v5929
        %5931 = vdwg.mxu0
        %5932 = vmatpush.bf16.msra.mxu0 %v5536
        %5933 = vmatpush.bf16.msra.mxu0 %v5535
        %5934 = vmatpush.bf16.msra.mxu0 %v5534
        %5935 = vmatpush.bf16.msra.mxu0 %v5533
        %5936 = vmatpush.bf16.msra.mxu0 %v5532
        %5937 = vmatpush.bf16.msra.mxu0 %v5531
        %5938 = vmatpush.bf16.msra.mxu0 %v5530
        %5939 = vmatpush.bf16.msra.mxu0 %v5529
        %5940 = vmatmul.bf16.gmra.mxu0 %v3659
        %v5941 = vpop.f32.mrf.mxu0
        %v5942 = vadd.f32 %v5853, %v5941
        %v5943 = vpop.f32.mrf.mxu0
        %v5944 = vadd.f32 %v5855, %v5943
        %5945 = vmatmul.bf16.gmra.mxu0 %v3660
        %v5946 = vpop.f32.mrf.mxu0
        %v5947 = vadd.f32 %v5858, %v5946
        %v5948 = vpop.f32.mrf.mxu0
        %v5949 = vadd.f32 %v5860, %v5948
        %5950 = vmatmul.bf16.gmra.mxu0 %v3661
        %v5951 = vpop.f32.mrf.mxu0
        %v5952 = vadd.f32 %v5863, %v5951
        %v5953 = vpop.f32.mrf.mxu0
        %v5954 = vadd.f32 %v5865, %v5953
        %5955 = vmatmul.bf16.gmra.mxu0 %v3662
        %v5956 = vpop.f32.mrf.mxu0
        %v5957 = vadd.f32 %v5868, %v5956
        %v5958 = vpop.f32.mrf.mxu0
        %v5959 = vadd.f32 %v5870, %v5958
        %5960 = vmatmul.bf16.gmra.mxu0 %v3663
        %v5961 = vpop.f32.mrf.mxu0
        %v5962 = vadd.f32 %v5873, %v5961
        %v5963 = vpop.f32.mrf.mxu0
        %v5964 = vadd.f32 %v5875, %v5963
        %5965 = vmatmul.bf16.gmra.mxu0 %v3664
        %v5966 = vpop.f32.mrf.mxu0
        %v5967 = vadd.f32 %v5878, %v5966
        %v5968 = vpop.f32.mrf.mxu0
        %v5969 = vadd.f32 %v5880, %v5968
        %5970 = vmatmul.bf16.gmra.mxu0 %v3665
        %v5971 = vpop.f32.mrf.mxu0
        %v5972 = vadd.f32 %v5883, %v5971
        %v5973 = vpop.f32.mrf.mxu0
        %v5974 = vadd.f32 %v5885, %v5973
        %5975 = vmatmul.bf16.gmra.mxu0 %v3666
        %v5976 = vpop.f32.mrf.mxu0
        %v5977 = vadd.f32 %v5888, %v5976
        %v5978 = vpop.f32.mrf.mxu0
        %v5979 = vadd.f32 %v5890, %v5978
        %5980 = vmatmul.bf16.gmra.mxu0 %v3667
        %v5981 = vpop.f32.mrf.mxu0
        %v5982 = vadd.f32 %v5893, %v5981
        %v5983 = vpop.f32.mrf.mxu0
        %v5984 = vadd.f32 %v5895, %v5983
        %5985 = vmatmul.bf16.gmra.mxu0 %v3668
        %v5986 = vpop.f32.mrf.mxu0
        %v5987 = vadd.f32 %v5898, %v5986
        %v5988 = vpop.f32.mrf.mxu0
        %v5989 = vadd.f32 %v5900, %v5988
        %5990 = vmatmul.bf16.gmra.mxu0 %v3669
        %v5991 = vpop.f32.mrf.mxu0
        %v5992 = vadd.f32 %v5903, %v5991
        %v5993 = vpop.f32.mrf.mxu0
        %v5994 = vadd.f32 %v5905, %v5993
        %5995 = vmatmul.bf16.gmra.mxu0 %v3670
        %v5996 = vpop.f32.mrf.mxu0
        %v5997 = vadd.f32 %v5908, %v5996
        %v5998 = vpop.f32.mrf.mxu0
        %v5999 = vadd.f32 %v5910, %v5998
        %6000 = vmatmul.bf16.gmra.mxu0 %v3671
        %v6001 = vpop.f32.mrf.mxu0
        %v6002 = vadd.f32 %v5913, %v6001
        %v6003 = vpop.f32.mrf.mxu0
        %v6004 = vadd.f32 %v5915, %v6003
        %6005 = vmatmul.bf16.gmra.mxu0 %v3672
        %v6006 = vpop.f32.mrf.mxu0
        %v6007 = vadd.f32 %v5918, %v6006
        %v6008 = vpop.f32.mrf.mxu0
        %v6009 = vadd.f32 %v5920, %v6008
        %6010 = vmatmul.bf16.gmra.mxu0 %v3673
        %v6011 = vpop.f32.mrf.mxu0
        %v6012 = vadd.f32 %v5923, %v6011
        %v6013 = vpop.f32.mrf.mxu0
        %v6014 = vadd.f32 %v5925, %v6013
        %6015 = vmatmul.bf16.gmra.mxu0 %v3674
        %v6016 = vpop.f32.mrf.mxu0
        %v6017 = vadd.f32 %v5928, %v6016
        %v6018 = vpop.f32.mrf.mxu0
        %v6019 = vadd.f32 %v5930, %v6018
        %6020 = vdwg.mxu0
        %6021 = vmatpush.bf16.msra.mxu0 %v5544
        %6022 = vmatpush.bf16.msra.mxu0 %v5543
        %6023 = vmatpush.bf16.msra.mxu0 %v5542
        %6024 = vmatpush.bf16.msra.mxu0 %v5541
        %6025 = vmatpush.bf16.msra.mxu0 %v5540
        %6026 = vmatpush.bf16.msra.mxu0 %v5539
        %6027 = vmatpush.bf16.msra.mxu0 %v5538
        %6028 = vmatpush.bf16.msra.mxu0 %v5537
        %6029 = vmatmul.bf16.gmra.mxu0 %v3750
        %v6030 = vpop.f32.mrf.mxu0
        %v6031 = vadd.f32 %v5942, %v6030
        %v6032 = vpop.f32.mrf.mxu0
        %v6033 = vadd.f32 %v5944, %v6032
        %6034 = vmatmul.bf16.gmra.mxu0 %v3762
        %v6035 = vpop.f32.mrf.mxu0
        %v6036 = vadd.f32 %v5947, %v6035
        %v6037 = vpop.f32.mrf.mxu0
        %v6038 = vadd.f32 %v5949, %v6037
        %6039 = vmatmul.bf16.gmra.mxu0 %v3774
        %v6040 = vpop.f32.mrf.mxu0
        %v6041 = vadd.f32 %v5952, %v6040
        %v6042 = vpop.f32.mrf.mxu0
        %v6043 = vadd.f32 %v5954, %v6042
        %6044 = vmatmul.bf16.gmra.mxu0 %v3786
        %v6045 = vpop.f32.mrf.mxu0
        %v6046 = vadd.f32 %v5957, %v6045
        %v6047 = vpop.f32.mrf.mxu0
        %v6048 = vadd.f32 %v5959, %v6047
        %6049 = vmatmul.bf16.gmra.mxu0 %v3798
        %v6050 = vpop.f32.mrf.mxu0
        %v6051 = vadd.f32 %v5962, %v6050
        %v6052 = vpop.f32.mrf.mxu0
        %v6053 = vadd.f32 %v5964, %v6052
        %6054 = vmatmul.bf16.gmra.mxu0 %v3810
        %v6055 = vpop.f32.mrf.mxu0
        %v6056 = vadd.f32 %v5967, %v6055
        %v6057 = vpop.f32.mrf.mxu0
        %v6058 = vadd.f32 %v5969, %v6057
        %6059 = vmatmul.bf16.gmra.mxu0 %v3822
        %v6060 = vpop.f32.mrf.mxu0
        %v6061 = vadd.f32 %v5972, %v6060
        %v6062 = vpop.f32.mrf.mxu0
        %v6063 = vadd.f32 %v5974, %v6062
        %6064 = vmatmul.bf16.gmra.mxu0 %v3834
        %v6065 = vpop.f32.mrf.mxu0
        %v6066 = vadd.f32 %v5977, %v6065
        %v6067 = vpop.f32.mrf.mxu0
        %v6068 = vadd.f32 %v5979, %v6067
        %6069 = vmatmul.bf16.gmra.mxu0 %v3846
        %v6070 = vpop.f32.mrf.mxu0
        %v6071 = vadd.f32 %v5982, %v6070
        %v6072 = vpop.f32.mrf.mxu0
        %v6073 = vadd.f32 %v5984, %v6072
        %6074 = vmatmul.bf16.gmra.mxu0 %v3858
        %v6075 = vpop.f32.mrf.mxu0
        %v6076 = vadd.f32 %v5987, %v6075
        %v6077 = vpop.f32.mrf.mxu0
        %v6078 = vadd.f32 %v5989, %v6077
        %6079 = vmatmul.bf16.gmra.mxu0 %v3870
        %v6080 = vpop.f32.mrf.mxu0
        %v6081 = vadd.f32 %v5992, %v6080
        %v6082 = vpop.f32.mrf.mxu0
        %v6083 = vadd.f32 %v5994, %v6082
        %6084 = vmatmul.bf16.gmra.mxu0 %v3882
        %v6085 = vpop.f32.mrf.mxu0
        %v6086 = vadd.f32 %v5997, %v6085
        %v6087 = vpop.f32.mrf.mxu0
        %v6088 = vadd.f32 %v5999, %v6087
        %6089 = vmatmul.bf16.gmra.mxu0 %v3894
        %v6090 = vpop.f32.mrf.mxu0
        %v6091 = vadd.f32 %v6002, %v6090
        %v6092 = vpop.f32.mrf.mxu0
        %v6093 = vadd.f32 %v6004, %v6092
        %6094 = vmatmul.bf16.gmra.mxu0 %v3906
        %v6095 = vpop.f32.mrf.mxu0
        %v6096 = vadd.f32 %v6007, %v6095
        %v6097 = vpop.f32.mrf.mxu0
        %v6098 = vadd.f32 %v6009, %v6097
        %6099 = vmatmul.bf16.gmra.mxu0 %v3918
        %v6100 = vpop.f32.mrf.mxu0
        %v6101 = vadd.f32 %v6012, %v6100
        %v6102 = vpop.f32.mrf.mxu0
        %v6103 = vadd.f32 %v6014, %v6102
        %6104 = vmatmul.bf16.gmra.mxu0 %v3930
        %v6105 = vpop.f32.mrf.mxu0
        %v6106 = vadd.f32 %v6017, %v6105
        %v6107 = vpop.f32.mrf.mxu0
        %v6108 = vadd.f32 %v6019, %v6107
        %6109 = vdwg.mxu0
        %6110 = vmatpush.bf16.msra.mxu0 %v5552
        %6111 = vmatpush.bf16.msra.mxu0 %v5551
        %6112 = vmatpush.bf16.msra.mxu0 %v5550
        %6113 = vmatpush.bf16.msra.mxu0 %v5549
        %6114 = vmatpush.bf16.msra.mxu0 %v5548
        %6115 = vmatpush.bf16.msra.mxu0 %v5547
        %6116 = vmatpush.bf16.msra.mxu0 %v5546
        %6117 = vmatpush.bf16.msra.mxu0 %v5545
        %6118 = vmatmul.bf16.gmra.mxu0 %v3997
        %v6119 = vpop.f32.mrf.mxu0
        %v6120 = vadd.f32 %v6031, %v6119
        %v6121 = vpop.f32.mrf.mxu0
        %v6122 = vadd.f32 %v6033, %v6121
        %6123 = vmatmul.bf16.gmra.mxu0 %v4000
        %v6124 = vpop.f32.mrf.mxu0
        %v6125 = vadd.f32 %v6036, %v6124
        %v6126 = vpop.f32.mrf.mxu0
        %v6127 = vadd.f32 %v6038, %v6126
        %6128 = vmatmul.bf16.gmra.mxu0 %v4003
        %v6129 = vpop.f32.mrf.mxu0
        %v6130 = vadd.f32 %v6041, %v6129
        %v6131 = vpop.f32.mrf.mxu0
        %v6132 = vadd.f32 %v6043, %v6131
        %6133 = vmatmul.bf16.gmra.mxu0 %v4006
        %v6134 = vpop.f32.mrf.mxu0
        %v6135 = vadd.f32 %v6046, %v6134
        %v6136 = vpop.f32.mrf.mxu0
        %v6137 = vadd.f32 %v6048, %v6136
        %6138 = vmatmul.bf16.gmra.mxu0 %v4009
        %v6139 = vpop.f32.mrf.mxu0
        %v6140 = vadd.f32 %v6051, %v6139
        %v6141 = vpop.f32.mrf.mxu0
        %v6142 = vadd.f32 %v6053, %v6141
        %6143 = vmatmul.bf16.gmra.mxu0 %v4012
        %v6144 = vpop.f32.mrf.mxu0
        %v6145 = vadd.f32 %v6056, %v6144
        %v6146 = vpop.f32.mrf.mxu0
        %v6147 = vadd.f32 %v6058, %v6146
        %6148 = vmatmul.bf16.gmra.mxu0 %v4015
        %v6149 = vpop.f32.mrf.mxu0
        %v6150 = vadd.f32 %v6061, %v6149
        %v6151 = vpop.f32.mrf.mxu0
        %v6152 = vadd.f32 %v6063, %v6151
        %6153 = vmatmul.bf16.gmra.mxu0 %v4018
        %v6154 = vpop.f32.mrf.mxu0
        %v6155 = vadd.f32 %v6066, %v6154
        %v6156 = vpop.f32.mrf.mxu0
        %v6157 = vadd.f32 %v6068, %v6156
        %6158 = vmatmul.bf16.gmra.mxu0 %v4021
        %v6159 = vpop.f32.mrf.mxu0
        %v6160 = vadd.f32 %v6071, %v6159
        %v6161 = vpop.f32.mrf.mxu0
        %v6162 = vadd.f32 %v6073, %v6161
        %6163 = vmatmul.bf16.gmra.mxu0 %v4024
        %v6164 = vpop.f32.mrf.mxu0
        %v6165 = vadd.f32 %v6076, %v6164
        %v6166 = vpop.f32.mrf.mxu0
        %v6167 = vadd.f32 %v6078, %v6166
        %6168 = vmatmul.bf16.gmra.mxu0 %v4027
        %v6169 = vpop.f32.mrf.mxu0
        %v6170 = vadd.f32 %v6081, %v6169
        %v6171 = vpop.f32.mrf.mxu0
        %v6172 = vadd.f32 %v6083, %v6171
        %6173 = vmatmul.bf16.gmra.mxu0 %v4030
        %v6174 = vpop.f32.mrf.mxu0
        %v6175 = vadd.f32 %v6086, %v6174
        %v6176 = vpop.f32.mrf.mxu0
        %v6177 = vadd.f32 %v6088, %v6176
        %6178 = vmatmul.bf16.gmra.mxu0 %v4033
        %v6179 = vpop.f32.mrf.mxu0
        %v6180 = vadd.f32 %v6091, %v6179
        %v6181 = vpop.f32.mrf.mxu0
        %v6182 = vadd.f32 %v6093, %v6181
        %6183 = vmatmul.bf16.gmra.mxu0 %v4036
        %v6184 = vpop.f32.mrf.mxu0
        %v6185 = vadd.f32 %v6096, %v6184
        %v6186 = vpop.f32.mrf.mxu0
        %v6187 = vadd.f32 %v6098, %v6186
        %6188 = vmatmul.bf16.gmra.mxu0 %v4039
        %v6189 = vpop.f32.mrf.mxu0
        %v6190 = vadd.f32 %v6101, %v6189
        %v6191 = vpop.f32.mrf.mxu0
        %v6192 = vadd.f32 %v6103, %v6191
        %6193 = vmatmul.bf16.gmra.mxu0 %v4042
        %v6194 = vpop.f32.mrf.mxu0
        %v6195 = vadd.f32 %v6106, %v6194
        %v6196 = vpop.f32.mrf.mxu0
        %v6197 = vadd.f32 %v6108, %v6196
        %6198 = vdwg.mxu0
        %6199 = vmatpush.bf16.msra.mxu0 %v5560
        %6200 = vmatpush.bf16.msra.mxu0 %v5559
        %6201 = vmatpush.bf16.msra.mxu0 %v5558
        %6202 = vmatpush.bf16.msra.mxu0 %v5557
        %6203 = vmatpush.bf16.msra.mxu0 %v5556
        %6204 = vmatpush.bf16.msra.mxu0 %v5555
        %6205 = vmatpush.bf16.msra.mxu0 %v5554
        %6206 = vmatpush.bf16.msra.mxu0 %v5553
        %6207 = vmatmul.bf16.gmra.mxu0 %v4123
        %v6208 = vpop.f32.mrf.mxu0
        %v6209 = vadd.f32 %v6120, %v6208
        %v6210 = vpop.f32.mrf.mxu0
        %v6211 = vadd.f32 %v6122, %v6210
        %6212 = vmatmul.bf16.gmra.mxu0 %v4124
        %v6213 = vpop.f32.mrf.mxu0
        %v6214 = vadd.f32 %v6125, %v6213
        %v6215 = vpop.f32.mrf.mxu0
        %v6216 = vadd.f32 %v6127, %v6215
        %6217 = vmatmul.bf16.gmra.mxu0 %v4125
        %v6218 = vpop.f32.mrf.mxu0
        %v6219 = vadd.f32 %v6130, %v6218
        %v6220 = vpop.f32.mrf.mxu0
        %v6221 = vadd.f32 %v6132, %v6220
        %6222 = vmatmul.bf16.gmra.mxu0 %v4126
        %v6223 = vpop.f32.mrf.mxu0
        %v6224 = vadd.f32 %v6135, %v6223
        %v6225 = vpop.f32.mrf.mxu0
        %v6226 = vadd.f32 %v6137, %v6225
        %6227 = vmatmul.bf16.gmra.mxu0 %v4127
        %v6228 = vpop.f32.mrf.mxu0
        %v6229 = vadd.f32 %v6140, %v6228
        %v6230 = vpop.f32.mrf.mxu0
        %v6231 = vadd.f32 %v6142, %v6230
        %6232 = vmatmul.bf16.gmra.mxu0 %v4128
        %v6233 = vpop.f32.mrf.mxu0
        %v6234 = vadd.f32 %v6145, %v6233
        %v6235 = vpop.f32.mrf.mxu0
        %v6236 = vadd.f32 %v6147, %v6235
        %6237 = vmatmul.bf16.gmra.mxu0 %v4129
        %v6238 = vpop.f32.mrf.mxu0
        %v6239 = vadd.f32 %v6150, %v6238
        %v6240 = vpop.f32.mrf.mxu0
        %v6241 = vadd.f32 %v6152, %v6240
        %6242 = vmatmul.bf16.gmra.mxu0 %v4130
        %v6243 = vpop.f32.mrf.mxu0
        %v6244 = vadd.f32 %v6155, %v6243
        %v6245 = vpop.f32.mrf.mxu0
        %v6246 = vadd.f32 %v6157, %v6245
        %6247 = vmatmul.bf16.gmra.mxu0 %v4131
        %v6248 = vpop.f32.mrf.mxu0
        %v6249 = vadd.f32 %v6160, %v6248
        %v6250 = vpop.f32.mrf.mxu0
        %v6251 = vadd.f32 %v6162, %v6250
        %6252 = vmatmul.bf16.gmra.mxu0 %v4132
        %v6253 = vpop.f32.mrf.mxu0
        %v6254 = vadd.f32 %v6165, %v6253
        %v6255 = vpop.f32.mrf.mxu0
        %v6256 = vadd.f32 %v6167, %v6255
        %6257 = vmatmul.bf16.gmra.mxu0 %v4133
        %v6258 = vpop.f32.mrf.mxu0
        %v6259 = vadd.f32 %v6170, %v6258
        %v6260 = vpop.f32.mrf.mxu0
        %v6261 = vadd.f32 %v6172, %v6260
        %6262 = vmatmul.bf16.gmra.mxu0 %v4134
        %v6263 = vpop.f32.mrf.mxu0
        %v6264 = vadd.f32 %v6175, %v6263
        %v6265 = vpop.f32.mrf.mxu0
        %v6266 = vadd.f32 %v6177, %v6265
        %6267 = vmatmul.bf16.gmra.mxu0 %v4135
        %v6268 = vpop.f32.mrf.mxu0
        %v6269 = vadd.f32 %v6180, %v6268
        %v6270 = vpop.f32.mrf.mxu0
        %v6271 = vadd.f32 %v6182, %v6270
        %6272 = vmatmul.bf16.gmra.mxu0 %v4136
        %v6273 = vpop.f32.mrf.mxu0
        %v6274 = vadd.f32 %v6185, %v6273
        %v6275 = vpop.f32.mrf.mxu0
        %v6276 = vadd.f32 %v6187, %v6275
        %6277 = vmatmul.bf16.gmra.mxu0 %v4137
        %v6278 = vpop.f32.mrf.mxu0
        %v6279 = vadd.f32 %v6190, %v6278
        %v6280 = vpop.f32.mrf.mxu0
        %v6281 = vadd.f32 %v6192, %v6280
        %6282 = vmatmul.bf16.gmra.mxu0 %v4138
        %v6283 = vpop.f32.mrf.mxu0
        %v6284 = vadd.f32 %v6195, %v6283
        %v6285 = vpop.f32.mrf.mxu0
        %v6286 = vadd.f32 %v6197, %v6285
        %6287 = vdwg.mxu0
        %6288 = vmatpush.bf16.msra.mxu0 %v5568
        %6289 = vmatpush.bf16.msra.mxu0 %v5567
        %6290 = vmatpush.bf16.msra.mxu0 %v5566
        %6291 = vmatpush.bf16.msra.mxu0 %v5565
        %6292 = vmatpush.bf16.msra.mxu0 %v5564
        %6293 = vmatpush.bf16.msra.mxu0 %v5563
        %6294 = vmatpush.bf16.msra.mxu0 %v5562
        %6295 = vmatpush.bf16.msra.mxu0 %v5561
        %6296 = vmatmul.bf16.gmra.mxu0 %v4214
        %v6297 = vpop.f32.mrf.mxu0
        %v6298 = vadd.f32 %v6209, %v6297
        %v6299 = vpop.f32.mrf.mxu0
        %v6300 = vadd.f32 %v6211, %v6299
        %6301 = vmatmul.bf16.gmra.mxu0 %v4226
        %v6302 = vpop.f32.mrf.mxu0
        %v6303 = vadd.f32 %v6214, %v6302
        %v6304 = vpop.f32.mrf.mxu0
        %v6305 = vadd.f32 %v6216, %v6304
        %6306 = vmatmul.bf16.gmra.mxu0 %v4238
        %v6307 = vpop.f32.mrf.mxu0
        %v6308 = vadd.f32 %v6219, %v6307
        %v6309 = vpop.f32.mrf.mxu0
        %v6310 = vadd.f32 %v6221, %v6309
        %6311 = vmatmul.bf16.gmra.mxu0 %v4250
        %v6312 = vpop.f32.mrf.mxu0
        %v6313 = vadd.f32 %v6224, %v6312
        %v6314 = vpop.f32.mrf.mxu0
        %v6315 = vadd.f32 %v6226, %v6314
        %6316 = vmatmul.bf16.gmra.mxu0 %v4262
        %v6317 = vpop.f32.mrf.mxu0
        %v6318 = vadd.f32 %v6229, %v6317
        %v6319 = vpop.f32.mrf.mxu0
        %v6320 = vadd.f32 %v6231, %v6319
        %6321 = vmatmul.bf16.gmra.mxu0 %v4274
        %v6322 = vpop.f32.mrf.mxu0
        %v6323 = vadd.f32 %v6234, %v6322
        %v6324 = vpop.f32.mrf.mxu0
        %v6325 = vadd.f32 %v6236, %v6324
        %6326 = vmatmul.bf16.gmra.mxu0 %v4286
        %v6327 = vpop.f32.mrf.mxu0
        %v6328 = vadd.f32 %v6239, %v6327
        %v6329 = vpop.f32.mrf.mxu0
        %v6330 = vadd.f32 %v6241, %v6329
        %6331 = vmatmul.bf16.gmra.mxu0 %v4298
        %v6332 = vpop.f32.mrf.mxu0
        %v6333 = vadd.f32 %v6244, %v6332
        %v6334 = vpop.f32.mrf.mxu0
        %v6335 = vadd.f32 %v6246, %v6334
        %6336 = vmatmul.bf16.gmra.mxu0 %v4310
        %v6337 = vpop.f32.mrf.mxu0
        %v6338 = vadd.f32 %v6249, %v6337
        %v6339 = vpop.f32.mrf.mxu0
        %v6340 = vadd.f32 %v6251, %v6339
        %6341 = vmatmul.bf16.gmra.mxu0 %v4322
        %v6342 = vpop.f32.mrf.mxu0
        %v6343 = vadd.f32 %v6254, %v6342
        %v6344 = vpop.f32.mrf.mxu0
        %v6345 = vadd.f32 %v6256, %v6344
        %6346 = vmatmul.bf16.gmra.mxu0 %v4334
        %v6347 = vpop.f32.mrf.mxu0
        %v6348 = vadd.f32 %v6259, %v6347
        %v6349 = vpop.f32.mrf.mxu0
        %v6350 = vadd.f32 %v6261, %v6349
        %6351 = vmatmul.bf16.gmra.mxu0 %v4346
        %v6352 = vpop.f32.mrf.mxu0
        %v6353 = vadd.f32 %v6264, %v6352
        %v6354 = vpop.f32.mrf.mxu0
        %v6355 = vadd.f32 %v6266, %v6354
        %6356 = vmatmul.bf16.gmra.mxu0 %v4358
        %v6357 = vpop.f32.mrf.mxu0
        %v6358 = vadd.f32 %v6269, %v6357
        %v6359 = vpop.f32.mrf.mxu0
        %v6360 = vadd.f32 %v6271, %v6359
        %6361 = vmatmul.bf16.gmra.mxu0 %v4370
        %v6362 = vpop.f32.mrf.mxu0
        %v6363 = vadd.f32 %v6274, %v6362
        %v6364 = vpop.f32.mrf.mxu0
        %v6365 = vadd.f32 %v6276, %v6364
        %6366 = vmatmul.bf16.gmra.mxu0 %v4382
        %v6367 = vpop.f32.mrf.mxu0
        %v6368 = vadd.f32 %v6279, %v6367
        %v6369 = vpop.f32.mrf.mxu0
        %v6370 = vadd.f32 %v6281, %v6369
        %6371 = vmatmul.bf16.gmra.mxu0 %v4394
        %v6372 = vpop.f32.mrf.mxu0
        %v6373 = vadd.f32 %v6284, %v6372
        %v6374 = vpop.f32.mrf.mxu0
        %v6375 = vadd.f32 %v6286, %v6374
        %6376 = vdwg.mxu0
        %6377 = vmatpush.bf16.msra.mxu0 %v5576
        %6378 = vmatpush.bf16.msra.mxu0 %v5575
        %6379 = vmatpush.bf16.msra.mxu0 %v5574
        %6380 = vmatpush.bf16.msra.mxu0 %v5573
        %6381 = vmatpush.bf16.msra.mxu0 %v5572
        %6382 = vmatpush.bf16.msra.mxu0 %v5571
        %6383 = vmatpush.bf16.msra.mxu0 %v5570
        %6384 = vmatpush.bf16.msra.mxu0 %v5569
        %6385 = vmatmul.bf16.gmra.mxu0 %v4461
        %v6386 = vpop.f32.mrf.mxu0
        %v6387 = vadd.f32 %v6298, %v6386
        %v6388 = vpop.f32.mrf.mxu0
        %v6389 = vadd.f32 %v6300, %v6388
        %6390 = vmatmul.bf16.gmra.mxu0 %v4464
        %v6391 = vpop.f32.mrf.mxu0
        %v6392 = vadd.f32 %v6303, %v6391
        %v6393 = vpop.f32.mrf.mxu0
        %v6394 = vadd.f32 %v6305, %v6393
        %6395 = vmatmul.bf16.gmra.mxu0 %v4467
        %v6396 = vpop.f32.mrf.mxu0
        %v6397 = vadd.f32 %v6308, %v6396
        %v6398 = vpop.f32.mrf.mxu0
        %v6399 = vadd.f32 %v6310, %v6398
        %6400 = vmatmul.bf16.gmra.mxu0 %v4470
        %v6401 = vpop.f32.mrf.mxu0
        %v6402 = vadd.f32 %v6313, %v6401
        %v6403 = vpop.f32.mrf.mxu0
        %v6404 = vadd.f32 %v6315, %v6403
        %6405 = vmatmul.bf16.gmra.mxu0 %v4473
        %v6406 = vpop.f32.mrf.mxu0
        %v6407 = vadd.f32 %v6318, %v6406
        %v6408 = vpop.f32.mrf.mxu0
        %v6409 = vadd.f32 %v6320, %v6408
        %6410 = vmatmul.bf16.gmra.mxu0 %v4476
        %v6411 = vpop.f32.mrf.mxu0
        %v6412 = vadd.f32 %v6323, %v6411
        %v6413 = vpop.f32.mrf.mxu0
        %v6414 = vadd.f32 %v6325, %v6413
        %6415 = vmatmul.bf16.gmra.mxu0 %v4479
        %v6416 = vpop.f32.mrf.mxu0
        %v6417 = vadd.f32 %v6328, %v6416
        %v6418 = vpop.f32.mrf.mxu0
        %v6419 = vadd.f32 %v6330, %v6418
        %6420 = vmatmul.bf16.gmra.mxu0 %v4482
        %v6421 = vpop.f32.mrf.mxu0
        %v6422 = vadd.f32 %v6333, %v6421
        %v6423 = vpop.f32.mrf.mxu0
        %v6424 = vadd.f32 %v6335, %v6423
        %6425 = vmatmul.bf16.gmra.mxu0 %v4485
        %v6426 = vpop.f32.mrf.mxu0
        %v6427 = vadd.f32 %v6338, %v6426
        %v6428 = vpop.f32.mrf.mxu0
        %v6429 = vadd.f32 %v6340, %v6428
        %6430 = vmatmul.bf16.gmra.mxu0 %v4488
        %v6431 = vpop.f32.mrf.mxu0
        %v6432 = vadd.f32 %v6343, %v6431
        %v6433 = vpop.f32.mrf.mxu0
        %v6434 = vadd.f32 %v6345, %v6433
        %6435 = vmatmul.bf16.gmra.mxu0 %v4491
        %v6436 = vpop.f32.mrf.mxu0
        %v6437 = vadd.f32 %v6348, %v6436
        %v6438 = vpop.f32.mrf.mxu0
        %v6439 = vadd.f32 %v6350, %v6438
        %6440 = vmatmul.bf16.gmra.mxu0 %v4494
        %v6441 = vpop.f32.mrf.mxu0
        %v6442 = vadd.f32 %v6353, %v6441
        %v6443 = vpop.f32.mrf.mxu0
        %v6444 = vadd.f32 %v6355, %v6443
        %6445 = vmatmul.bf16.gmra.mxu0 %v4497
        %v6446 = vpop.f32.mrf.mxu0
        %v6447 = vadd.f32 %v6358, %v6446
        %v6448 = vpop.f32.mrf.mxu0
        %v6449 = vadd.f32 %v6360, %v6448
        %6450 = vmatmul.bf16.gmra.mxu0 %v4500
        %v6451 = vpop.f32.mrf.mxu0
        %v6452 = vadd.f32 %v6363, %v6451
        %v6453 = vpop.f32.mrf.mxu0
        %v6454 = vadd.f32 %v6365, %v6453
        %6455 = vmatmul.bf16.gmra.mxu0 %v4503
        %v6456 = vpop.f32.mrf.mxu0
        %v6457 = vadd.f32 %v6368, %v6456
        %v6458 = vpop.f32.mrf.mxu0
        %v6459 = vadd.f32 %v6370, %v6458
        %6460 = vmatmul.bf16.gmra.mxu0 %v4506
        %v6461 = vpop.f32.mrf.mxu0
        %v6462 = vadd.f32 %v6373, %v6461
        %v6463 = vpop.f32.mrf.mxu0
        %v6464 = vadd.f32 %v6375, %v6463
        %6465 = vdwg.mxu0
        %6466 = vmatpush.bf16.msra.mxu0 %v5584
        %6467 = vmatpush.bf16.msra.mxu0 %v5583
        %6468 = vmatpush.bf16.msra.mxu0 %v5582
        %6469 = vmatpush.bf16.msra.mxu0 %v5581
        %6470 = vmatpush.bf16.msra.mxu0 %v5580
        %6471 = vmatpush.bf16.msra.mxu0 %v5579
        %6472 = vmatpush.bf16.msra.mxu0 %v5578
        %6473 = vmatpush.bf16.msra.mxu0 %v5577
        %6474 = vmatmul.bf16.gmra.mxu0 %v4991
        %v6475 = vpop.f32.mrf.mxu0
        %v6476 = vadd.f32 %v6387, %v6475
        %v6477 = vpop.f32.mrf.mxu0
        %v6478 = vadd.f32 %v6389, %v6477
        %6479 = vmatmul.bf16.gmra.mxu0 %v4992
        %v6480 = vpop.f32.mrf.mxu0
        %v6481 = vadd.f32 %v6392, %v6480
        %v6482 = vpop.f32.mrf.mxu0
        %v6483 = vadd.f32 %v6394, %v6482
        %6484 = vmatmul.bf16.gmra.mxu0 %v4993
        %v6485 = vpop.f32.mrf.mxu0
        %v6486 = vadd.f32 %v6397, %v6485
        %v6487 = vpop.f32.mrf.mxu0
        %v6488 = vadd.f32 %v6399, %v6487
        %6489 = vmatmul.bf16.gmra.mxu0 %v4994
        %v6490 = vpop.f32.mrf.mxu0
        %v6491 = vadd.f32 %v6402, %v6490
        %v6492 = vpop.f32.mrf.mxu0
        %v6493 = vadd.f32 %v6404, %v6492
        %6494 = vmatmul.bf16.gmra.mxu0 %v4995
        %v6495 = vpop.f32.mrf.mxu0
        %v6496 = vadd.f32 %v6407, %v6495
        %v6497 = vpop.f32.mrf.mxu0
        %v6498 = vadd.f32 %v6409, %v6497
        %6499 = vmatmul.bf16.gmra.mxu0 %v4996
        %v6500 = vpop.f32.mrf.mxu0
        %v6501 = vadd.f32 %v6412, %v6500
        %v6502 = vpop.f32.mrf.mxu0
        %v6503 = vadd.f32 %v6414, %v6502
        %6504 = vmatmul.bf16.gmra.mxu0 %v4997
        %v6505 = vpop.f32.mrf.mxu0
        %v6506 = vadd.f32 %v6417, %v6505
        %v6507 = vpop.f32.mrf.mxu0
        %v6508 = vadd.f32 %v6419, %v6507
        %6509 = vmatmul.bf16.gmra.mxu0 %v4998
        %v6510 = vpop.f32.mrf.mxu0
        %v6511 = vadd.f32 %v6422, %v6510
        %v6512 = vpop.f32.mrf.mxu0
        %v6513 = vadd.f32 %v6424, %v6512
        %6514 = vmatmul.bf16.gmra.mxu0 %v4999
        %v6515 = vpop.f32.mrf.mxu0
        %v6516 = vadd.f32 %v6427, %v6515
        %v6517 = vpop.f32.mrf.mxu0
        %v6518 = vadd.f32 %v6429, %v6517
        %6519 = vmatmul.bf16.gmra.mxu0 %v5000
        %v6520 = vpop.f32.mrf.mxu0
        %v6521 = vadd.f32 %v6432, %v6520
        %v6522 = vpop.f32.mrf.mxu0
        %v6523 = vadd.f32 %v6434, %v6522
        %6524 = vmatmul.bf16.gmra.mxu0 %v5001
        %v6525 = vpop.f32.mrf.mxu0
        %v6526 = vadd.f32 %v6437, %v6525
        %v6527 = vpop.f32.mrf.mxu0
        %v6528 = vadd.f32 %v6439, %v6527
        %6529 = vmatmul.bf16.gmra.mxu0 %v5002
        %v6530 = vpop.f32.mrf.mxu0
        %v6531 = vadd.f32 %v6442, %v6530
        %v6532 = vpop.f32.mrf.mxu0
        %v6533 = vadd.f32 %v6444, %v6532
        %6534 = vmatmul.bf16.gmra.mxu0 %v5003
        %v6535 = vpop.f32.mrf.mxu0
        %v6536 = vadd.f32 %v6447, %v6535
        %v6537 = vpop.f32.mrf.mxu0
        %v6538 = vadd.f32 %v6449, %v6537
        %6539 = vmatmul.bf16.gmra.mxu0 %v5004
        %v6540 = vpop.f32.mrf.mxu0
        %v6541 = vadd.f32 %v6452, %v6540
        %v6542 = vpop.f32.mrf.mxu0
        %v6543 = vadd.f32 %v6454, %v6542
        %6544 = vmatmul.bf16.gmra.mxu0 %v5005
        %v6545 = vpop.f32.mrf.mxu0
        %v6546 = vadd.f32 %v6457, %v6545
        %v6547 = vpop.f32.mrf.mxu0
        %v6548 = vadd.f32 %v6459, %v6547
        %6549 = vmatmul.bf16.gmra.mxu0 %v5006
        %v6550 = vpop.f32.mrf.mxu0
        %v6551 = vadd.f32 %v6462, %v6550
        %v6552 = vpop.f32.mrf.mxu0
        %v6553 = vadd.f32 %v6464, %v6552
        %6554 = vdwg.mxu0
        %v6555 = vadd.f32 %v6476, %v6481
        %v6556 = vadd.f32 %v6478, %v6483
        %v6557 = vadd.f32 %v6486, %v6491
        %v6558 = vadd.f32 %v6488, %v6493
        %v6559 = vadd.f32 %v6496, %v6501
        %v6560 = vadd.f32 %v6498, %v6503
        %v6561 = vadd.f32 %v6506, %v6511
        %v6562 = vadd.f32 %v6508, %v6513
        %v6563 = vadd.f32 %v6516, %v6521
        %v6564 = vadd.f32 %v6518, %v6523
        %v6565 = vadd.f32 %v6526, %v6531
        %v6566 = vadd.f32 %v6528, %v6533
        %v6567 = vadd.f32 %v6536, %v6541
        %v6568 = vadd.f32 %v6538, %v6543
        %v6569 = vadd.f32 %v6546, %v6551
        %v6570 = vadd.f32 %v6548, %v6553
        %6571 = vst [vmem:[#allocation3] sm:$0xff] %v6555
        %6572 = vst [vmem:[#allocation3 + $0x8] sm:$0xff] %v6556
        %6573 = vst [vmem:[#allocation3 + $0x10] sm:$0xff] %v6557
        %6574 = vst [vmem:[#allocation3 + $0x18] sm:$0xff] %v6558
        %6575 = vst [vmem:[#allocation3 + $0x20] sm:$0xff] %v6559
        %6576 = vst [vmem:[#allocation3 + $0x28] sm:$0xff] %v6560
        %6577 = vst [vmem:[#allocation3 + $0x30] sm:$0xff] %v6561
        %6578 = vst [vmem:[#allocation3 + $0x38] sm:$0xff] %v6562
        %6579 = vst [vmem:[#allocation3 + $0x40] sm:$0xff] %v6563
        %6580 = vst [vmem:[#allocation3 + $0x48] sm:$0xff] %v6564
        %6581 = vst [vmem:[#allocation3 + $0x50] sm:$0xff] %v6565
        %6582 = vst [vmem:[#allocation3 + $0x58] sm:$0xff] %v6566
        %6583 = vst [vmem:[#allocation3 + $0x60] sm:$0xff] %v6567
        %6584 = vst [vmem:[#allocation3 + $0x68] sm:$0xff] %v6568
        %6585 = vst [vmem:[#allocation3 + $0x70] sm:$0xff] %v6569
        %6586 = vst [vmem:[#allocation3 + $0x78] sm:$0xff] %v6570
        %v6587 = vld [vmem:[#allocation3] ss:$2 sm:$0xff]
        %s6588 = scalar_lea.vmem [#allocation3], 16
        %v6589 = vld [vmem:[%s6588] ss:$2 sm:$0xff]
        %s6590 = scalar_lea.vmem [#allocation3], 32
        %v6591 = vld [vmem:[%s6590] ss:$2 sm:$0xff]
        %s6592 = scalar_lea.vmem [#allocation3], 48
        %v6593 = vld [vmem:[%s6592] ss:$2 sm:$0xff]
        %s6594 = scalar_lea.vmem [#allocation3], 64
        %v6595 = vld [vmem:[%s6594] ss:$2 sm:$0xff]
        %s6596 = scalar_lea.vmem [#allocation3], 80
        %v6597 = vld [vmem:[%s6596] ss:$2 sm:$0xff]
        %s6598 = scalar_lea.vmem [#allocation3], 96
        %v6599 = vld [vmem:[%s6598] ss:$2 sm:$0xff]
        %s6600 = scalar_lea.vmem [#allocation3], 112
        %v6601 = vld [vmem:[%s6600] ss:$2 sm:$0xff]
        %s6602 = scalar_lea.vmem [#allocation3], 1
        %v6603 = vld [vmem:[%s6602] ss:$2 sm:$0xff]
        %s6604 = scalar_lea.vmem [#allocation3], 17
        %v6605 = vld [vmem:[%s6604] ss:$2 sm:$0xff]
        %s6606 = scalar_lea.vmem [#allocation3], 33
        %v6607 = vld [vmem:[%s6606] ss:$2 sm:$0xff]
        %s6608 = scalar_lea.vmem [#allocation3], 49
        %v6609 = vld [vmem:[%s6608] ss:$2 sm:$0xff]
        %s6610 = scalar_lea.vmem [#allocation3], 65
        %v6611 = vld [vmem:[%s6610] ss:$2 sm:$0xff]
        %s6612 = scalar_lea.vmem [#allocation3], 81
        %v6613 = vld [vmem:[%s6612] ss:$2 sm:$0xff]
        %s6614 = scalar_lea.vmem [#allocation3], 97
        %v6615 = vld [vmem:[%s6614] ss:$2 sm:$0xff]
        %s6616 = scalar_lea.vmem [#allocation3], 113
        %v6617 = vld [vmem:[%s6616] ss:$2 sm:$0xff]
        %v6618 = vadd.f32 %v6587, %v6603
        %v6619 = vadd.f32 %v6589, %v6605
        %v6620 = vadd.f32 %v6591, %v6607
        %v6621 = vadd.f32 %v6593, %v6609
        %v6622 = vadd.f32 %v6595, %v6611
        %v6623 = vadd.f32 %v6597, %v6613
        %v6624 = vadd.f32 %v6599, %v6615
        %v6625 = vadd.f32 %v6601, %v6617
        %v6626 = vmul.f32 %v6618, 0.25
        %v6627 = vmul.f32 %v6619, 0.25
        %v6628 = vmul.f32 %v6620, 0.25
        %v6629 = vmul.f32 %v6621, 0.25
        %v6630 = vmul.f32 %v6622, 0.25
        %v6631 = vmul.f32 %v6623, 0.25
        %v6632 = vmul.f32 %v6624, 0.25
        %v6633 = vmul.f32 %v6625, 0.25
        %6634 = vst [vmem:[%s250] sm:$0xff] %v6626
        %6635 = vst [vmem:[%s250 + $0x8] sm:$0xff] %v6627
        %6636 = vst [vmem:[%s250 + $0x10] sm:$0xff] %v6628
        %6637 = vst [vmem:[%s250 + $0x18] sm:$0xff] %v6629
        %6638 = vst [vmem:[%s250 + $0x20] sm:$0xff] %v6630
        %6639 = vst [vmem:[%s250 + $0x28] sm:$0xff] %v6631
        %6640 = vst [vmem:[%s250 + $0x30] sm:$0xff] %v6632
        %6641 = vst [vmem:[%s250 + $0x38] sm:$0xff] %v6633
        %s6642 = sand.u32 %s119, 1
        %s6643 = scalar_lea.sflag [#allocation6], %s6642
        %s6644 = sand.u32 %s119, 1
        %s6645 = smul.addr %s6644, 64
        %s6646 = scalar_lea.vmem [#allocation10], %s6645
        // Predicated region
        $region49: #{tpu_custom_call.1} parent=35 // pred_check
          %p6647 = pneg %p129
        $region50: #{tpu_custom_call.1} parent=35 // pred_check_branch
          %6649 = sbr.rel (%p6647) target = $region52
        $region51: #{tpu_custom_call.1} parent=35 // pred_region
          %6651 = vsyncadd %s6643, 0
          %s6652 = smul.addr %s22, 8
          %s6653 = smul.addr %s6652, 8
          %s6654 = scalar_lea.hbm %s4, %s6653
          %s6655 = sshll.u32 %s6646, 4
          %s6656 = int_to_ptr.vmem [resolvable:$true] %s6655
          %s6657 = sshll.u32 %s6654, 4
          %s6658 = int_to_ptr.hbm [resolvable:$true] %s6657
          %6663 = dma.vmem_to_hbm [thread:$0]  %s6656, 1024, %s6658, %s6643, 128, 128, 8
        $region52: #{tpu_custom_call.1} parent=35 // pred_fallthru
          _
      $region36: #{tpu_custom_call.1} parent=5 // pred_fallthru
        _
      %p6664 = scmp.le.s32.totalorder 2, %s17
      // Predicated region
      $region53: #{tpu_custom_call.1} parent=5 // pred_check
        %p6665 = pneg %p6664
      $region54: #{tpu_custom_call.1} parent=5 // pred_check_branch
        %6667 = sbr.rel (%p6665) target = $region56
      $region55: #{tpu_custom_call.1} parent=5 // pred_region
        %s6668 = ssub.s32 %s17, 2
        // Predicated region
        $region57: #{tpu_custom_call.1} parent=55 // pred_check
          %p6669 = pneg %p135
        $region58: #{tpu_custom_call.1} parent=55 // pred_check_branch
          %6671 = sbr.rel (%p6669) target = $region60
        $region59: #{tpu_custom_call.1} parent=55 // pred_region
          %s6672 = sand.u32 %s120, 1
          %s6673 = scalar_lea.sflag [#allocation6], %s6672
          %s6674 = sand.u32 %s120, 1
          %s6675 = smul.addr %s6674, 64
          %s6676 = scalar_lea.vmem [#allocation10], %s6675
          %6678 = dma.done %s6673, 1024
        $region60: #{tpu_custom_call.1} parent=55 // pred_fallthru
          _
      $region56: #{tpu_custom_call.1} parent=5 // pred_fallthru
        _
    $region6: #{tpu_custom_call.1} parent=1 // loop_footer
      %s21 = sadd.s32 1, %s17
    $region7: #{tpu_custom_call.1} parent=1 // loop_footer_branch
      %16 = sbr.rel target = $region3
    $region8: #{tpu_custom_call.1} parent=1 // loop_exit
      _
    %6679 = vsyncpa [#allocation5], 1
    %s6680 = scalar_lea.sflag [#allocation5], 1
    %6681 = vsyncpa %s6680, 1
    %6682 = vsyncpa [#allocation8], 1
    %6683 = vsyncpa [#allocation6], 1
    %s6684 = scalar_lea.sflag [#allocation6], 1
    %6685 = vsyncpa %s6684, 1

</llo_original>
